<compile_context>
chip_gen: v6e
topology: v6e:2x2x1
jax: 0.10.0
libtpu: 0.0.40
codegen_flags: <defaults>
</compile_context>

<pallas_src>
import functools

import jax
import jax.numpy as jnp
from jax.experimental import pallas as pl
from jax.experimental.pallas import tpu as pltpu

EPS = 1e-5


# ----------------------------------------------------------------------------
# Kernel 1: nor_mean_std + 1x1 conv_mask + softmax(HW) + weighted spatial pool.
#   per-batch refs: style (1, C, HW), w (C, 1), bias (1, 1) -> ctx (1, C, 1)
#   grid=(B,), "parallel" (>= 2 steps).
#   The normalization is folded into the conv_mask weight:
#     logits = sum_c (w_c / sigma_c) * style_c  + (bias - sum_c (w_c/sigma_c)*mu_c)
#   so no (C, HW) normalized temporary is ever materialized.
# ----------------------------------------------------------------------------
def _spatial_context_kernel(style_ref, wcol_ref, bmask_ref, ctx_ref):
    style = style_ref[0]                                    # (C, HW) f32
    hw = style.shape[1]

    # One-pass per-channel stats (unbiased variance, eps under the sqrt).
    mean = jnp.mean(style, axis=1, keepdims=True)           # (C, 1)
    mean_sq = jnp.mean(style * style, axis=1, keepdims=True)
    var = (mean_sq - mean * mean) * (float(hw) / float(hw - 1))
    # TODO(synk): switch back to the two-pass centered variance if tighter
    # torch parity is required (costs one live (C, HW) temporary).

    scale = wcol_ref[...] * jax.lax.rsqrt(var + EPS)        # (C, 1): w/sigma
    off = bmask_ref[...] - jnp.sum(scale * mean, axis=0, keepdims=True)  # (1, 1)

    # conv_mask on the normalized style == folded multiply + channel reduce.
    logits = jnp.sum(style * scale, axis=0, keepdims=True) + off        # (1, HW)
    logits = logits - jnp.max(logits, axis=1, keepdims=True)
    e = jnp.exp(logits)
    mask = e * pl.reciprocal(jnp.sum(e, axis=1, keepdims=True))          # softmax(HW)

    # context = Fs @ mask^T : weighted pooling of the RAW style (VPU + lane
    # reduce; a transposed-operand MXU dot would need an in-kernel relayout).
    ctx_ref[0] = jnp.sum(style * mask, axis=1, keepdims=True)            # (C, 1)


def spatial_context(style_flat, w_col, b_mask):
    B, C, HW = style_flat.shape
    # TODO(synk): for production C/HW (e.g. 512 x 4096) add an HW-tiling grid
    # axis with online mean/var/softmax (or raise vmem_limit_bytes on v5e) so
    # the block pipelines inside v7x's 64 MiB / v5e's 16 MiB scoped VMEM.
    return pl.pallas_call(
        _spatial_context_kernel,
        out_shape=jax.ShapeDtypeStruct((B, C, 1), jnp.float32),
        grid=(B,),
        in_specs=[
            pl.BlockSpec((1, C, HW), lambda b: (b, 0, 0)),
            pl.BlockSpec((C, 1), lambda b: (0, 0)),
            pl.BlockSpec((1, 1), lambda b: (0, 0)),
        ],
        out_specs=pl.BlockSpec((1, C, 1), lambda b: (b, 0, 0)),
        compiler_params=pltpu.CompilerParams(dimension_semantics=("parallel",)),
    )(style_flat, w_col, b_mask)


# ----------------------------------------------------------------------------
# Kernel 2: channel_add fusion + external attention, batch folded into rows.
#   y = content_rows + add_col  (per-row context),  out = norm(softmax(y@mk))@mv
#   Row-tiled "parallel" grid; content is read from HBM exactly once per block.
# ----------------------------------------------------------------------------
def _ea_kernel(y_ref, add_ref, mk_ref, mv_ref, out_ref):
    y = y_ref[...] + add_ref[...]                                         # (TM, C)
    attn = jnp.dot(y, mk_ref[...], preferred_element_type=jnp.float32)    # (TM, 64)
    attn = attn - jnp.max(attn, axis=1, keepdims=True)
    e = jnp.exp(attn)
    # torch: softmax(dim=2) then a redundant renorm over the same axis; folded
    # into one normalization (ULP-level difference).
    attn = e * pl.reciprocal(jnp.sum(e, axis=1, keepdims=True))
    # NOTE: last dim is C (16 here) so this store is lane-sparse; a lane-dense
    # (C, TM)-major variant would need an extra HBM transpose afterwards since
    # the downstream .view() fixes the flat buffer layout.  Negligible at these
    # channel counts.  TODO(synk): lane-dense transposed variant for large C.
    out_ref[...] = jnp.dot(attn, mv_ref[...], preferred_element_type=jnp.float32)


def _row_tile(m, c, budget_bytes=512 * 1024):
    """Largest multiple-of-8 divisor of m within a VMEM byte budget, giving
    >= 2 grid steps and preferring an even step count (v7x: 2 TensorCores)."""
    budget_rows = max(8, (budget_bytes // (4 * c)) // 8 * 8)
    best = best_even = None
    t = 8
    while t <= min(m, budget_rows):
        if m % t == 0 and m // t >= 2:
            best = t
            if (m // t) % 2 == 0:
                best_even = t
        t += 8
    if best_even is not None:
        return best_even
    if best is not None:
        return best
    return m  # odd/tiny shapes: single grid step


def ea_attention(y_rows, add_col, mk_wt, mv_wt):
    M, C = y_rows.shape
    K = mk_wt.shape[1]  # 64
    tm = _row_tile(M, C)
    return pl.pallas_call(
        _ea_kernel,
        out_shape=jax.ShapeDtypeStruct((M, C), jnp.float32),
        grid=(M // tm,),
        in_specs=[
            pl.BlockSpec((tm, C), lambda i: (i, 0)),
            pl.BlockSpec((tm, 1), lambda i: (i, 0)),
            pl.BlockSpec((C, K), lambda i: (0, 0)),
            pl.BlockSpec((K, C), lambda i: (0, 0)),
        ],
        out_specs=pl.BlockSpec((tm, C), lambda i: (i, 0)),
        compiler_params=pltpu.CompilerParams(dimension_semantics=("parallel",)),
    )(y_rows, add_col, mk_wt, mv_wt)


# ----------------------------------------------------------------------------
# Kernel 3: 3x3 merge conv on the reflection-padded plane.
#   Per batch: stack the 9 shifted taps once in VMEM and run ONE
#   (C, 9C) @ (9C, H*Wp) MXU dot; store a compact (C, H*W) output (no crop pass).
# ----------------------------------------------------------------------------
def merge_conv3x3(x, merge_w, merge_b):
    B, C, H, W = x.shape
    Hp, Wp = H + 2, W + 2
    HWp = H * Wp                       # rows evaluated at padded width
    L = Hp * Wp + 2                    # +2 keeps the (kh=2,kw=2) tap in bounds
    xp = jnp.pad(x, ((0, 0), (0, 0), (1, 1), (1, 1)), mode="reflect")
    xpf = jnp.pad(xp.reshape(B, C, Hp * Wp), ((0, 0), (0, 0), (0, 2)))
    # (Cout, Cin, 3, 3) -> (Cout, 3, 3, Cin) -> (Cout, 9*Cin), k-major = kh*3+kw
    w_stacked = jnp.transpose(merge_w, (0, 2, 3, 1)).reshape(C, 9 * C)
    bias_col = merge_b.reshape(C, 1)

    def kernel(x_ref, w_ref, b_ref, o_ref):
        taps = []
        for kh in range(3):
            for kw in range(3):
                off = kh * Wp + kw
                taps.append(x_ref[0, :, off:off + HWp])       # (C, H*Wp)
        stacked = jnp.concatenate(taps, axis=0)               # (9C, H*Wp)
        out = (jnp.dot(w_ref[...], stacked, preferred_element_type=jnp.float32)
               + b_ref[...])                                   # (C, H*Wp)
        # Compact store: drop the 2 pad columns per row inside the kernel so no
        # post-kernel strided-slice HBM pass is needed.
        for h in range(H):
            o_ref[0, :, h * W:(h + 1) * W] = out[:, h * Wp:h * Wp + W]

    out_flat = pl.pallas_call(
        kernel,
        out_shape=jax.ShapeDtypeStruct((B, C, H * W), jnp.float32),
        grid=(B,),
        in_specs=[
            pl.BlockSpec((1, C, L), lambda b: (b, 0, 0)),
            pl.BlockSpec((C, 9 * C), lambda b: (0, 0)),
            pl.BlockSpec((C, 1), lambda b: (0, 0)),
        ],
        out_specs=pl.BlockSpec((1, C, H * W), lambda b: (b, 0, 0)),
        compiler_params=pltpu.CompilerParams(dimension_semantics=("parallel",)),
    )(xpf, w_stacked, bias_col)
    return out_flat.reshape(B, C, H, W)


# ----------------------------------------------------------------------------
# Plain-JAX glue (raw .view reshapes, nearest upsample).
# ----------------------------------------------------------------------------
def upsample_nearest(x, out_h, out_w):
    # nn.Upsample(mode='nearest'): src = floor(dst * in / out).
    B, C, H, W = x.shape
    if out_h % H == 0 and out_w % W == 0:        # broadcast-repeat (no gathers)
        fh, fw = out_h // H, out_w // W
        x6 = jnp.broadcast_to(x[:, :, :, None, :, None], (B, C, H, fh, W, fw))
        return x6.reshape(B, C, out_h, out_w)
    hi = (jnp.arange(out_h) * H // out_h).astype(jnp.int32)
    wi = (jnp.arange(out_w) * W // out_w).astype(jnp.int32)
    return x[:, :, hi][:, :, :, wi]


def gcea_block_forward(content, style, blk):
    """GCEA_Block (pooling='att', fusion=('channel_add',)).

    NOTE: the torch module's channel_add_conv / channel_mul_conv parameters are
    never applied in its forward pass (the raw context is added), so they are
    intentionally omitted here.
    """
    B, C, H, W = content.shape
    HW = H * W
    ctx = spatial_context(style.reshape(B, C, HW),
                          blk["conv_mask_w"], blk["conv_mask_b"])     # (B, C, 1)
    # torch: (content + context).view(B, HW, C) -- a raw reshape of the NCHW
    # buffer.  content.reshape(B*HW, C) is that view for free (contiguous).
    content_rows = content.reshape(B * HW, C)
    if HW % C == 0:
        # Each view-row lies inside a single channel -> the channel_add term is
        # a per-row constant ctx[b, r // (HW//C)]; add it inside the EA kernel
        # so the full (B, HW, C) intermediate never touches HBM.
        g = HW // C
        add_col = jnp.repeat(ctx[:, :, 0], g, axis=1).reshape(B * HW, 1)
        y_rows = content_rows
    else:
        # TODO(synk): rare C∤HW case falls back to an XLA-fused broadcast add
        # (materializes y once in HBM).
        y_rows = (content.reshape(B, C, HW) + ctx).reshape(B * HW, C)
        add_col = jnp.zeros((B * HW, 1), jnp.float32)
    out = ea_attention(y_rows, add_col, blk["mk_wt"], blk["mv_wt"])   # (B*HW, C)
    # torch: out.view(B, C, H, W) -> raw reshape of the same contiguous buffer.
    return out.reshape(B, C, H, W)


def gcea_forward(c41, s41, c51, s51, params):
    B, C, H, W = c41.shape
    out4 = gcea_block_forward(c41, s41, params["b4"])
    out5 = gcea_block_forward(c51, s51, params["b5"])
    # TODO(synk): the upsample+add+pad glue could be folded into merge_conv3x3
    # for one fewer HBM round trip; kept in XLA (tiny tensors) for robustness.
    x = out4 + upsample_nearest(out5, H, W)
    return merge_conv3x3(x, params["merge_w"], params["merge_b"])


# ----------------------------------------------------------------------------
# Deterministic parameter init (shapes from the torch module __init__).
# ----------------------------------------------------------------------------
def init_block_params(key, C):
    k1, k2, k3, k4 = jax.random.split(key, 4)
    return dict(
        # nn.Conv2d(C, 1, 1): weight (1, C, 1, 1) stored as a (C, 1) column; bias (1,).
        conv_mask_w=0.1 * jax.random.normal(k1, (C, 1), jnp.float32),
        conv_mask_b=0.1 * jax.random.normal(k2, (1, 1), jnp.float32),
        # nn.Linear(C, 64, bias=False): weight (64, C) stored transposed (C, 64).
        mk_wt=0.1 * jax.random.normal(k3, (C, 64), jnp.float32),
        # nn.Linear(64, C, bias=False): weight (C, 64) stored transposed (64, C).
        mv_wt=0.1 * jax.random.normal(k4, (64, C), jnp.float32),
    )


if __name__ == "__main__":
    C = 16  # in_planes
    key = jax.random.PRNGKey(0)
    ks = jax.random.split(key, 8)

    content4_1 = jax.random.normal(ks[0], (2, C, 16, 16), jnp.float32)
    style4_1 = jax.random.normal(ks[1], (2, C, 16, 16), jnp.float32)
    content5_1 = jax.random.normal(ks[2], (2, C, 8, 8), jnp.float32)
    style5_1 = jax.random.normal(ks[3], (2, C, 8, 8), jnp.float32)

    params = dict(
        b4=init_block_params(ks[4], C),
        b5=init_block_params(ks[5], C),
        # nn.Conv2d(C, C, (3,3)): weight (C, C, 3, 3), bias (C,)
        merge_w=0.05 * jax.random.normal(ks[6], (C, C, 3, 3), jnp.float32),
        merge_b=0.05 * jax.random.normal(ks[7], (C,), jnp.float32),
    )

    fwd = jax.jit(functools.partial(gcea_forward, params=params))
    out = jax.block_until_ready(fwd(content4_1, style4_1, content5_1, style5_1))
    assert out.shape == (2, C, 16, 16), out.shape
    assert bool(jnp.all(jnp.isfinite(out)))
    print("KERNEL_OK")
</pallas_src>

<mosaic_0001>
module attributes {stable_mosaic.version = 11 : i64} {
  func.func @_spatial_context_kernel(%arg0: i32, %arg1: memref<1x16x256xf32, #tpu.memory_space<vmem>>, %arg2: memref<16x1xf32, #tpu.memory_space<vmem>>, %arg3: memref<1x1xf32, #tpu.memory_space<vmem>>, %arg4: memref<1x16x1xf32, #tpu.memory_space<vmem>>) attributes {dimension_semantics = [#tpu.dimension_semantics<parallel>], iteration_bounds = array<i64: 2>, scalar_prefetch = 0 : i64, scratch_operands = 0 : i64, tpu.core_type = #tpu.core_type<tc>, window_params = [{transform_indices = @transform_0, window_bounds = array<i64: 1, 16, 256>}, {pipeline_mode = #tpu.pipeline_mode<synchronous>, transform_indices = @transform_1, window_bounds = array<i64: 16, 1>}, {pipeline_mode = #tpu.pipeline_mode<synchronous>, transform_indices = @transform_2, window_bounds = array<i64: 1, 1>}, {transform_indices = @transform_3, window_bounds = array<i64: 1, 16, 1>}]} {
    %c0 = arith.constant 0 : index
    %c0_0 = arith.constant 0 : index
    %c0_1 = arith.constant 0 : index
    %0 = vector.load %arg1[%c0, %c0_0, %c0_1] : memref<1x16x256xf32, #tpu.memory_space<vmem>>, vector<1x16x256xf32>
    %1 = vector.shape_cast %0 : vector<1x16x256xf32> to vector<16x256xf32>
    %cst = arith.constant dense<0.000000e+00> : vector<16xf32>
    %2 = vector.multi_reduction <add>, %1, %cst [1] : vector<16x256xf32> to vector<16xf32>
    %3 = vector.shape_cast %2 : vector<16xf32> to vector<16x1xf32>
    %cst_2 = arith.constant 2.560000e+02 : f32
    %4 = vector.broadcast %cst_2 : f32 to vector<16x1xf32>
    %5 = arith.divf %3, %4 : vector<16x1xf32>
    %6 = arith.mulf %1, %1 : vector<16x256xf32>
    %cst_3 = arith.constant dense<0.000000e+00> : vector<16xf32>
    %7 = vector.multi_reduction <add>, %6, %cst_3 [1] : vector<16x256xf32> to vector<16xf32>
    %8 = vector.shape_cast %7 : vector<16xf32> to vector<16x1xf32>
    %cst_4 = arith.constant 2.560000e+02 : f32
    %9 = vector.broadcast %cst_4 : f32 to vector<16x1xf32>
    %10 = arith.divf %8, %9 : vector<16x1xf32>
    %11 = arith.mulf %5, %5 : vector<16x1xf32>
    %12 = arith.subf %10, %11 : vector<16x1xf32>
    %cst_5 = arith.constant 1.00392163 : f32
    %13 = vector.broadcast %cst_5 : f32 to vector<16x1xf32>
    %14 = arith.mulf %12, %13 : vector<16x1xf32>
    %c0_6 = arith.constant 0 : index
    %c0_7 = arith.constant 0 : index
    %15 = vector.load %arg2[%c0_6, %c0_7] : memref<16x1xf32, #tpu.memory_space<vmem>>, vector<16x1xf32>
    %cst_8 = arith.constant 9.99999974E-6 : f32
    %16 = vector.broadcast %cst_8 : f32 to vector<16x1xf32>
    %17 = arith.addf %14, %16 : vector<16x1xf32>
    %18 = math.rsqrt %17 : vector<16x1xf32>
    %19 = arith.mulf %15, %18 : vector<16x1xf32>
    %c0_9 = arith.constant 0 : index
    %c0_10 = arith.constant 0 : index
    %20 = vector.load %arg3[%c0_9, %c0_10] : memref<1x1xf32, #tpu.memory_space<vmem>>, vector<1x1xf32>
    %21 = arith.mulf %19, %5 : vector<16x1xf32>
    %cst_11 = arith.constant dense<0.000000e+00> : vector<1xf32>
    %22 = vector.multi_reduction <add>, %21, %cst_11 [0] : vector<16x1xf32> to vector<1xf32>
    %23 = vector.shape_cast %22 : vector<1xf32> to vector<1x1xf32>
    %24 = arith.subf %20, %23 : vector<1x1xf32>
    %25 = vector.broadcast %19 : vector<16x1xf32> to vector<16x256xf32>
    %26 = arith.mulf %1, %25 : vector<16x256xf32>
    %cst_12 = arith.constant dense<0.000000e+00> : vector<256xf32>
    %27 = vector.multi_reduction <add>, %26, %cst_12 [0] : vector<16x256xf32> to vector<256xf32>
    %28 = vector.shape_cast %27 : vector<256xf32> to vector<1x256xf32>
    %29 = vector.broadcast %24 : vector<1x1xf32> to vector<1x256xf32>
    %30 = arith.addf %28, %29 : vector<1x256xf32>
    %cst_13 = arith.constant dense<0xFF800000> : vector<1xf32>
    %31 = vector.multi_reduction <maximumf>, %30, %cst_13 [1] : vector<1x256xf32> to vector<1xf32>
    %32 = vector.shape_cast %31 : vector<1xf32> to vector<1x1xf32>
    %33 = vector.broadcast %32 : vector<1x1xf32> to vector<1x256xf32>
    %34 = arith.subf %30, %33 : vector<1x256xf32>
    %35 = math.exp %34 : vector<1x256xf32>
    %cst_14 = arith.constant dense<0.000000e+00> : vector<1xf32>
    %36 = vector.multi_reduction <add>, %35, %cst_14 [1] : vector<1x256xf32> to vector<1xf32>
    %37 = vector.shape_cast %36 : vector<1xf32> to vector<1x1xf32>
    %38 = tpu.reciprocal %37 : vector<1x1xf32> -> vector<1x1xf32>
    %39 = vector.broadcast %38 : vector<1x1xf32> to vector<1x256xf32>
    %40 = arith.mulf %35, %39 : vector<1x256xf32>
    %41 = vector.broadcast %40 : vector<1x256xf32> to vector<16x256xf32>
    %42 = arith.mulf %1, %41 : vector<16x256xf32>
    %cst_15 = arith.constant dense<0.000000e+00> : vector<16xf32>
    %43 = vector.multi_reduction <add>, %42, %cst_15 [1] : vector<16x256xf32> to vector<16xf32>
    %44 = vector.shape_cast %43 : vector<16xf32> to vector<16x1xf32>
    %c0_16 = arith.constant 0 : index
    %c0_17 = arith.constant 0 : index
    %c0_18 = arith.constant 0 : index
    %45 = vector.load %arg4[%c0_16, %c0_17, %c0_18] : memref<1x16x1xf32, #tpu.memory_space<vmem>>, vector<1x16x1xf32>
    %46 = vector.shape_cast %45 : vector<1x16x1xf32> to vector<16x1xf32>
    %47 = vector.shape_cast %44 : vector<16x1xf32> to vector<1x16x1xf32>
    tpu.vector_store %arg4[%c0_16, %c0_17, %c0_18], %47 {strides = array<i32>} : memref<1x16x1xf32, #tpu.memory_space<vmem>>, vector<1x16x1xf32>,
    return
  }
  func.func @transform_0(%arg0: i32) -> (i32, i32, i32) {
    %c0_i32 = arith.constant 0 : i32
    %c0_i32_0 = arith.constant 0 : i32
    %c0_i32_1 = arith.constant 0 : i32
    return %arg0, %c0_i32, %c0_i32_0 : i32, i32, i32
  }
  func.func @transform_1(%arg0: i32) -> (i32, i32) {
    %c0_i32 = arith.constant 0 : i32
    %c0_i32_0 = arith.constant 0 : i32
    %c0_i32_1 = arith.constant 0 : i32
    return %c0_i32, %c0_i32_0 : i32, i32
  }
  func.func @transform_2(%arg0: i32) -> (i32, i32) {
    %c0_i32 = arith.constant 0 : i32
    %c0_i32_0 = arith.constant 0 : i32
    %c0_i32_1 = arith.constant 0 : i32
    return %c0_i32, %c0_i32_0 : i32, i32
  }
  func.func @transform_3(%arg0: i32) -> (i32, i32, i32) {
    %c0_i32 = arith.constant 0 : i32
    %c0_i32_0 = arith.constant 0 : i32
    %c0_i32_1 = arith.constant 0 : i32
    return %arg0, %c0_i32, %c0_i32_0 : i32, i32, i32
  }
}

module attributes {stable_mosaic.version = 11 : i64} {
  func.func @_ea_kernel(%arg0: i32, %arg1: memref<256x16xf32, #tpu.memory_space<vmem>>, %arg2: memref<256x1xf32, #tpu.memory_space<vmem>>, %arg3: memref<16x64xf32, #tpu.memory_space<vmem>>, %arg4: memref<64x16xf32, #tpu.memory_space<vmem>>, %arg5: memref<256x16xf32, #tpu.memory_space<vmem>>) attributes {dimension_semantics = [#tpu.dimension_semantics<parallel>], iteration_bounds = array<i64: 2>, scalar_prefetch = 0 : i64, scratch_operands = 0 : i64, tpu.core_type = #tpu.core_type<tc>, window_params = [{transform_indices = @transform_0, window_bounds = array<i64: 256, 16>}, {transform_indices = @transform_1, window_bounds = array<i64: 256, 1>}, {pipeline_mode = #tpu.pipeline_mode<synchronous>, transform_indices = @transform_2, window_bounds = array<i64: 16, 64>}, {pipeline_mode = #tpu.pipeline_mode<synchronous>, transform_indices = @transform_3, window_bounds = array<i64: 64, 16>}, {transform_indices = @transform_4, window_bounds = array<i64: 256, 16>}]} {
    %c0 = arith.constant 0 : index
    %c0_0 = arith.constant 0 : index
    %0 = vector.load %arg1[%c0, %c0_0] : memref<256x16xf32, #tpu.memory_space<vmem>>, vector<256x16xf32>
    %c0_1 = arith.constant 0 : index
    %c0_2 = arith.constant 0 : index
    %1 = vector.load %arg2[%c0_1, %c0_2] : memref<256x1xf32, #tpu.memory_space<vmem>>, vector<256x1xf32>
    %2 = vector.broadcast %1 : vector<256x1xf32> to vector<256x16xf32>
    %3 = arith.addf %0, %2 : vector<256x16xf32>
    %c0_3 = arith.constant 0 : index
    %c0_4 = arith.constant 0 : index
    %4 = vector.load %arg3[%c0_3, %c0_4] : memref<16x64xf32, #tpu.memory_space<vmem>>, vector<16x64xf32>
    %cst = arith.constant dense<0.000000e+00> : vector<256x64xf32>
    %5 = tpu.matmul %3, %4, %cst {dimension_numbers = #tpu.dot_dimension_numbers<[1], [0], [0], [1], [0, 0, 1, 1], [], []>} : vector<256x16xf32>, vector<16x64xf32>, vector<256x64xf32> -> vector<256x64xf32>
    %cst_5 = arith.constant dense<0xFF800000> : vector<256xf32>
    %6 = vector.multi_reduction <maximumf>, %5, %cst_5 [1] : vector<256x64xf32> to vector<256xf32>
    %7 = vector.shape_cast %6 : vector<256xf32> to vector<256x1xf32>
    %8 = vector.broadcast %7 : vector<256x1xf32> to vector<256x64xf32>
    %9 = arith.subf %5, %8 : vector<256x64xf32>
    %10 = math.exp %9 : vector<256x64xf32>
    %cst_6 = arith.constant dense<0.000000e+00> : vector<256xf32>
    %11 = vector.multi_reduction <add>, %10, %cst_6 [1] : vector<256x64xf32> to vector<256xf32>
    %12 = vector.shape_cast %11 : vector<256xf32> to vector<256x1xf32>
    %13 = tpu.reciprocal %12 : vector<256x1xf32> -> vector<256x1xf32>
    %14 = vector.broadcast %13 : vector<256x1xf32> to vector<256x64xf32>
    %15 = arith.mulf %10, %14 : vector<256x64xf32>
    %c0_7 = arith.constant 0 : index
    %c0_8 = arith.constant 0 : index
    %16 = vector.load %arg4[%c0_7, %c0_8] : memref<64x16xf32, #tpu.memory_space<vmem>>, vector<64x16xf32>
    %cst_9 = arith.constant dense<0.000000e+00> : vector<256x16xf32>
    %17 = tpu.matmul %15, %16, %cst_9 {dimension_numbers = #tpu.dot_dimension_numbers<[1], [0], [0], [1], [0, 0, 1, 1], [], []>} : vector<256x64xf32>, vector<64x16xf32>, vector<256x16xf32> -> vector<256x16xf32>
    %c0_10 = arith.constant 0 : index
    %c0_11 = arith.constant 0 : index
    %18 = vector.load %arg5[%c0_10, %c0_11] : memref<256x16xf32, #tpu.memory_space<vmem>>, vector<256x16xf32>
    tpu.vector_store %arg5[%c0_10, %c0_11], %17 {strides = array<i32>} : memref<256x16xf32, #tpu.memory_space<vmem>>, vector<256x16xf32>,
    return
  }
  func.func @transform_0(%arg0: i32) -> (i32, i32) {
    %c0_i32 = arith.constant 0 : i32
    %c0_i32_0 = arith.constant 0 : i32
    return %arg0, %c0_i32 : i32, i32
  }
  func.func @transform_1(%arg0: i32) -> (i32, i32) {
    %c0_i32 = arith.constant 0 : i32
    %c0_i32_0 = arith.constant 0 : i32
    return %arg0, %c0_i32 : i32, i32
  }
  func.func @transform_2(%arg0: i32) -> (i32, i32) {
    %c0_i32 = arith.constant 0 : i32
    %c0_i32_0 = arith.constant 0 : i32
    %c0_i32_1 = arith.constant 0 : i32
    return %c0_i32, %c0_i32_0 : i32, i32
  }
  func.func @transform_3(%arg0: i32) -> (i32, i32) {
    %c0_i32 = arith.constant 0 : i32
    %c0_i32_0 = arith.constant 0 : i32
    %c0_i32_1 = arith.constant 0 : i32
    return %c0_i32, %c0_i32_0 : i32, i32
  }
  func.func @transform_4(%arg0: i32) -> (i32, i32) {
    %c0_i32 = arith.constant 0 : i32
    %c0_i32_0 = arith.constant 0 : i32
    return %arg0, %c0_i32 : i32, i32
  }
}

module attributes {stable_mosaic.version = 11 : i64} {
  func.func @_spatial_context_kernel(%arg0: i32, %arg1: memref<1x16x64xf32, #tpu.memory_space<vmem>>, %arg2: memref<16x1xf32, #tpu.memory_space<vmem>>, %arg3: memref<1x1xf32, #tpu.memory_space<vmem>>, %arg4: memref<1x16x1xf32, #tpu.memory_space<vmem>>) attributes {dimension_semantics = [#tpu.dimension_semantics<parallel>], iteration_bounds = array<i64: 2>, scalar_prefetch = 0 : i64, scratch_operands = 0 : i64, tpu.core_type = #tpu.core_type<tc>, window_params = [{transform_indices = @transform_0, window_bounds = array<i64: 1, 16, 64>}, {pipeline_mode = #tpu.pipeline_mode<synchronous>, transform_indices = @transform_1, window_bounds = array<i64: 16, 1>}, {pipeline_mode = #tpu.pipeline_mode<synchronous>, transform_indices = @transform_2, window_bounds = array<i64: 1, 1>}, {transform_indices = @transform_3, window_bounds = array<i64: 1, 16, 1>}]} {
    %c0 = arith.constant 0 : index
    %c0_0 = arith.constant 0 : index
    %c0_1 = arith.constant 0 : index
    %0 = vector.load %arg1[%c0, %c0_0, %c0_1] : memref<1x16x64xf32, #tpu.memory_space<vmem>>, vector<1x16x64xf32>
    %1 = vector.shape_cast %0 : vector<1x16x64xf32> to vector<16x64xf32>
    %cst = arith.constant dense<0.000000e+00> : vector<16xf32>
    %2 = vector.multi_reduction <add>, %1, %cst [1] : vector<16x64xf32> to vector<16xf32>
    %3 = vector.shape_cast %2 : vector<16xf32> to vector<16x1xf32>
    %cst_2 = arith.constant 6.400000e+01 : f32
    %4 = vector.broadcast %cst_2 : f32 to vector<16x1xf32>
    %5 = arith.divf %3, %4 : vector<16x1xf32>
    %6 = arith.mulf %1, %1 : vector<16x64xf32>
    %cst_3 = arith.constant dense<0.000000e+00> : vector<16xf32>
    %7 = vector.multi_reduction <add>, %6, %cst_3 [1] : vector<16x64xf32> to vector<16xf32>
    %8 = vector.shape_cast %7 : vector<16xf32> to vector<16x1xf32>
    %cst_4 = arith.constant 6.400000e+01 : f32
    %9 = vector.broadcast %cst_4 : f32 to vector<16x1xf32>
    %10 = arith.divf %8, %9 : vector<16x1xf32>
    %11 = arith.mulf %5, %5 : vector<16x1xf32>
    %12 = arith.subf %10, %11 : vector<16x1xf32>
    %cst_5 = arith.constant 1.01587307 : f32
    %13 = vector.broadcast %cst_5 : f32 to vector<16x1xf32>
    %14 = arith.mulf %12, %13 : vector<16x1xf32>
    %c0_6 = arith.constant 0 : index
    %c0_7 = arith.constant 0 : index
    %15 = vector.load %arg2[%c0_6, %c0_7] : memref<16x1xf32, #tpu.memory_space<vmem>>, vector<16x1xf32>
    %cst_8 = arith.constant 9.99999974E-6 : f32
    %16 = vector.broadcast %cst_8 : f32 to vector<16x1xf32>
    %17 = arith.addf %14, %16 : vector<16x1xf32>
    %18 = math.rsqrt %17 : vector<16x1xf32>
    %19 = arith.mulf %15, %18 : vector<16x1xf32>
    %c0_9 = arith.constant 0 : index
    %c0_10 = arith.constant 0 : index
    %20 = vector.load %arg3[%c0_9, %c0_10] : memref<1x1xf32, #tpu.memory_space<vmem>>, vector<1x1xf32>
    %21 = arith.mulf %19, %5 : vector<16x1xf32>
    %cst_11 = arith.constant dense<0.000000e+00> : vector<1xf32>
    %22 = vector.multi_reduction <add>, %21, %cst_11 [0] : vector<16x1xf32> to vector<1xf32>
    %23 = vector.shape_cast %22 : vector<1xf32> to vector<1x1xf32>
    %24 = arith.subf %20, %23 : vector<1x1xf32>
    %25 = vector.broadcast %19 : vector<16x1xf32> to vector<16x64xf32>
    %26 = arith.mulf %1, %25 : vector<16x64xf32>
    %cst_12 = arith.constant dense<0.000000e+00> : vector<64xf32>
    %27 = vector.multi_reduction <add>, %26, %cst_12 [0] : vector<16x64xf32> to vector<64xf32>
    %28 = vector.shape_cast %27 : vector<64xf32> to vector<1x64xf32>
    %29 = vector.broadcast %24 : vector<1x1xf32> to vector<1x64xf32>
    %30 = arith.addf %28, %29 : vector<1x64xf32>
    %cst_13 = arith.constant dense<0xFF800000> : vector<1xf32>
    %31 = vector.multi_reduction <maximumf>, %30, %cst_13 [1] : vector<1x64xf32> to vector<1xf32>
    %32 = vector.shape_cast %31 : vector<1xf32> to vector<1x1xf32>
    %33 = vector.broadcast %32 : vector<1x1xf32> to vector<1x64xf32>
    %34 = arith.subf %30, %33 : vector<1x64xf32>
    %35 = math.exp %34 : vector<1x64xf32>
    %cst_14 = arith.constant dense<0.000000e+00> : vector<1xf32>
    %36 = vector.multi_reduction <add>, %35, %cst_14 [1] : vector<1x64xf32> to vector<1xf32>
    %37 = vector.shape_cast %36 : vector<1xf32> to vector<1x1xf32>
    %38 = tpu.reciprocal %37 : vector<1x1xf32> -> vector<1x1xf32>
    %39 = vector.broadcast %38 : vector<1x1xf32> to vector<1x64xf32>
    %40 = arith.mulf %35, %39 : vector<1x64xf32>
    %41 = vector.broadcast %40 : vector<1x64xf32> to vector<16x64xf32>
    %42 = arith.mulf %1, %41 : vector<16x64xf32>
    %cst_15 = arith.constant dense<0.000000e+00> : vector<16xf32>
    %43 = vector.multi_reduction <add>, %42, %cst_15 [1] : vector<16x64xf32> to vector<16xf32>
    %44 = vector.shape_cast %43 : vector<16xf32> to vector<16x1xf32>
    %c0_16 = arith.constant 0 : index
    %c0_17 = arith.constant 0 : index
    %c0_18 = arith.constant 0 : index
    %45 = vector.load %arg4[%c0_16, %c0_17, %c0_18] : memref<1x16x1xf32, #tpu.memory_space<vmem>>, vector<1x16x1xf32>
    %46 = vector.shape_cast %45 : vector<1x16x1xf32> to vector<16x1xf32>
    %47 = vector.shape_cast %44 : vector<16x1xf32> to vector<1x16x1xf32>
    tpu.vector_store %arg4[%c0_16, %c0_17, %c0_18], %47 {strides = array<i32>} : memref<1x16x1xf32, #tpu.memory_space<vmem>>, vector<1x16x1xf32>,
    return
  }
  func.func @transform_0(%arg0: i32) -> (i32, i32, i32) {
    %c0_i32 = arith.constant 0 : i32
    %c0_i32_0 = arith.constant 0 : i32
    %c0_i32_1 = arith.constant 0 : i32
    return %arg0, %c0_i32, %c0_i32_0 : i32, i32, i32
  }
  func.func @transform_1(%arg0: i32) -> (i32, i32) {
    %c0_i32 = arith.constant 0 : i32
    %c0_i32_0 = arith.constant 0 : i32
    %c0_i32_1 = arith.constant 0 : i32
    return %c0_i32, %c0_i32_0 : i32, i32
  }
  func.func @transform_2(%arg0: i32) -> (i32, i32) {
    %c0_i32 = arith.constant 0 : i32
    %c0_i32_0 = arith.constant 0 : i32
    %c0_i32_1 = arith.constant 0 : i32
    return %c0_i32, %c0_i32_0 : i32, i32
  }
  func.func @transform_3(%arg0: i32) -> (i32, i32, i32) {
    %c0_i32 = arith.constant 0 : i32
    %c0_i32_0 = arith.constant 0 : i32
    %c0_i32_1 = arith.constant 0 : i32
    return %arg0, %c0_i32, %c0_i32_0 : i32, i32, i32
  }
}

module attributes {stable_mosaic.version = 11 : i64} {
  func.func @_ea_kernel(%arg0: i32, %arg1: memref<64x16xf32, #tpu.memory_space<vmem>>, %arg2: memref<64x1xf32, #tpu.memory_space<vmem>>, %arg3: memref<16x64xf32, #tpu.memory_space<vmem>>, %arg4: memref<64x16xf32, #tpu.memory_space<vmem>>, %arg5: memref<64x16xf32, #tpu.memory_space<vmem>>) attributes {dimension_semantics = [#tpu.dimension_semantics<parallel>], iteration_bounds = array<i64: 2>, scalar_prefetch = 0 : i64, scratch_operands = 0 : i64, tpu.core_type = #tpu.core_type<tc>, window_params = [{transform_indices = @transform_0, window_bounds = array<i64: 64, 16>}, {transform_indices = @transform_1, window_bounds = array<i64: 64, 1>}, {pipeline_mode = #tpu.pipeline_mode<synchronous>, transform_indices = @transform_2, window_bounds = array<i64: 16, 64>}, {pipeline_mode = #tpu.pipeline_mode<synchronous>, transform_indices = @transform_3, window_bounds = array<i64: 64, 16>}, {transform_indices = @transform_4, window_bounds = array<i64: 64, 16>}]} {
    %c0 = arith.constant 0 : index
    %c0_0 = arith.constant 0 : index
    %0 = vector.load %arg1[%c0, %c0_0] : memref<64x16xf32, #tpu.memory_space<vmem>>, vector<64x16xf32>
    %c0_1 = arith.constant 0 : index
    %c0_2 = arith.constant 0 : index
    %1 = vector.load %arg2[%c0_1, %c0_2] : memref<64x1xf32, #tpu.memory_space<vmem>>, vector<64x1xf32>
    %2 = vector.broadcast %1 : vector<64x1xf32> to vector<64x16xf32>
    %3 = arith.addf %0, %2 : vector<64x16xf32>
    %c0_3 = arith.constant 0 : index
    %c0_4 = arith.constant 0 : index
    %4 = vector.load %arg3[%c0_3, %c0_4] : memref<16x64xf32, #tpu.memory_space<vmem>>, vector<16x64xf32>
    %cst = arith.constant dense<0.000000e+00> : vector<64x64xf32>
    %5 = tpu.matmul %3, %4, %cst {dimension_numbers = #tpu.dot_dimension_numbers<[1], [0], [0], [1], [0, 0, 1, 1], [], []>} : vector<64x16xf32>, vector<16x64xf32>, vector<64x64xf32> -> vector<64x64xf32>
    %cst_5 = arith.constant dense<0xFF800000> : vector<64xf32>
    %6 = vector.multi_reduction <maximumf>, %5, %cst_5 [1] : vector<64x64xf32> to vector<64xf32>
    %7 = vector.shape_cast %6 : vector<64xf32> to vector<64x1xf32>
    %8 = vector.broadcast %7 : vector<64x1xf32> to vector<64x64xf32>
    %9 = arith.subf %5, %8 : vector<64x64xf32>
    %10 = math.exp %9 : vector<64x64xf32>
    %cst_6 = arith.constant dense<0.000000e+00> : vector<64xf32>
    %11 = vector.multi_reduction <add>, %10, %cst_6 [1] : vector<64x64xf32> to vector<64xf32>
    %12 = vector.shape_cast %11 : vector<64xf32> to vector<64x1xf32>
    %13 = tpu.reciprocal %12 : vector<64x1xf32> -> vector<64x1xf32>
    %14 = vector.broadcast %13 : vector<64x1xf32> to vector<64x64xf32>
    %15 = arith.mulf %10, %14 : vector<64x64xf32>
    %c0_7 = arith.constant 0 : index
    %c0_8 = arith.constant 0 : index
    %16 = vector.load %arg4[%c0_7, %c0_8] : memref<64x16xf32, #tpu.memory_space<vmem>>, vector<64x16xf32>
    %cst_9 = arith.constant dense<0.000000e+00> : vector<64x16xf32>
    %17 = tpu.matmul %15, %16, %cst_9 {dimension_numbers = #tpu.dot_dimension_numbers<[1], [0], [0], [1], [0, 0, 1, 1], [], []>} : vector<64x64xf32>, vector<64x16xf32>, vector<64x16xf32> -> vector<64x16xf32>
    %c0_10 = arith.constant 0 : index
    %c0_11 = arith.constant 0 : index
    %18 = vector.load %arg5[%c0_10, %c0_11] : memref<64x16xf32, #tpu.memory_space<vmem>>, vector<64x16xf32>
    tpu.vector_store %arg5[%c0_10, %c0_11], %17 {strides = array<i32>} : memref<64x16xf32, #tpu.memory_space<vmem>>, vector<64x16xf32>,
    return
  }
  func.func @transform_0(%arg0: i32) -> (i32, i32) {
    %c0_i32 = arith.constant 0 : i32
    %c0_i32_0 = arith.constant 0 : i32
    return %arg0, %c0_i32 : i32, i32
  }
  func.func @transform_1(%arg0: i32) -> (i32, i32) {
    %c0_i32 = arith.constant 0 : i32
    %c0_i32_0 = arith.constant 0 : i32
    return %arg0, %c0_i32 : i32, i32
  }
  func.func @transform_2(%arg0: i32) -> (i32, i32) {
    %c0_i32 = arith.constant 0 : i32
    %c0_i32_0 = arith.constant 0 : i32
    %c0_i32_1 = arith.constant 0 : i32
    return %c0_i32, %c0_i32_0 : i32, i32
  }
  func.func @transform_3(%arg0: i32) -> (i32, i32) {
    %c0_i32 = arith.constant 0 : i32
    %c0_i32_0 = arith.constant 0 : i32
    %c0_i32_1 = arith.constant 0 : i32
    return %c0_i32, %c0_i32_0 : i32, i32
  }
  func.func @transform_4(%arg0: i32) -> (i32, i32) {
    %c0_i32 = arith.constant 0 : i32
    %c0_i32_0 = arith.constant 0 : i32
    return %arg0, %c0_i32 : i32, i32
  }
}

module attributes {stable_mosaic.version = 11 : i64} {
  func.func @kernel(%arg0: i32, %arg1: memref<1x16x326xf32, #tpu.memory_space<vmem>>, %arg2: memref<16x144xf32, #tpu.memory_space<vmem>>, %arg3: memref<16x1xf32, #tpu.memory_space<vmem>>, %arg4: memref<1x16x256xf32, #tpu.memory_space<vmem>>) attributes {dimension_semantics = [#tpu.dimension_semantics<parallel>], iteration_bounds = array<i64: 2>, scalar_prefetch = 0 : i64, scratch_operands = 0 : i64, tpu.core_type = #tpu.core_type<tc>, window_params = [{transform_indices = @transform_0, window_bounds = array<i64: 1, 16, 326>}, {pipeline_mode = #tpu.pipeline_mode<synchronous>, transform_indices = @transform_1, window_bounds = array<i64: 16, 144>}, {pipeline_mode = #tpu.pipeline_mode<synchronous>, transform_indices = @transform_2, window_bounds = array<i64: 16, 1>}, {transform_indices = @transform_3, window_bounds = array<i64: 1, 16, 256>}]} {
    %c0 = arith.constant 0 : index
    %c0_0 = arith.constant 0 : index
    %c0_1 = arith.constant 0 : index
    %0 = vector.load %arg1[%c0, %c0_0, %c0_1] : memref<1x16x326xf32, #tpu.memory_space<vmem>>, vector<1x16x288xf32>
    %1 = vector.shape_cast %0 : vector<1x16x288xf32> to vector<16x288xf32>
    %c0_2 = arith.constant 0 : index
    %c0_3 = arith.constant 0 : index
    %c1 = arith.constant 1 : index
    %2 = vector.load %arg1[%c0_2, %c0_3, %c1] : memref<1x16x326xf32, #tpu.memory_space<vmem>>, vector<1x16x288xf32>
    %3 = vector.shape_cast %2 : vector<1x16x288xf32> to vector<16x288xf32>
    %c0_4 = arith.constant 0 : index
    %c0_5 = arith.constant 0 : index
    %c2 = arith.constant 2 : index
    %4 = vector.load %arg1[%c0_4, %c0_5, %c2] : memref<1x16x326xf32, #tpu.memory_space<vmem>>, vector<1x16x288xf32>
    %5 = vector.shape_cast %4 : vector<1x16x288xf32> to vector<16x288xf32>
    %c0_6 = arith.constant 0 : index
    %c0_7 = arith.constant 0 : index
    %c18 = arith.constant 18 : index
    %6 = vector.load %arg1[%c0_6, %c0_7, %c18] : memref<1x16x326xf32, #tpu.memory_space<vmem>>, vector<1x16x288xf32>
    %7 = vector.shape_cast %6 : vector<1x16x288xf32> to vector<16x288xf32>
    %c0_8 = arith.constant 0 : index
    %c0_9 = arith.constant 0 : index
    %c19 = arith.constant 19 : index
    %8 = vector.load %arg1[%c0_8, %c0_9, %c19] : memref<1x16x326xf32, #tpu.memory_space<vmem>>, vector<1x16x288xf32>
    %9 = vector.shape_cast %8 : vector<1x16x288xf32> to vector<16x288xf32>
    %c0_10 = arith.constant 0 : index
    %c0_11 = arith.constant 0 : index
    %c20 = arith.constant 20 : index
    %10 = vector.load %arg1[%c0_10, %c0_11, %c20] : memref<1x16x326xf32, #tpu.memory_space<vmem>>, vector<1x16x288xf32>
    %11 = vector.shape_cast %10 : vector<1x16x288xf32> to vector<16x288xf32>
    %c0_12 = arith.constant 0 : index
    %c0_13 = arith.constant 0 : index
    %c36 = arith.constant 36 : index
    %12 = vector.load %arg1[%c0_12, %c0_13, %c36] : memref<1x16x326xf32, #tpu.memory_space<vmem>>, vector<1x16x288xf32>
    %13 = vector.shape_cast %12 : vector<1x16x288xf32> to vector<16x288xf32>
    %c0_14 = arith.constant 0 : index
    %c0_15 = arith.constant 0 : index
    %c37 = arith.constant 37 : index
    %14 = vector.load %arg1[%c0_14, %c0_15, %c37] : memref<1x16x326xf32, #tpu.memory_space<vmem>>, vector<1x16x288xf32>
    %15 = vector.shape_cast %14 : vector<1x16x288xf32> to vector<16x288xf32>
    %c0_16 = arith.constant 0 : index
    %c0_17 = arith.constant 0 : index
    %c38 = arith.constant 38 : index
    %16 = vector.load %arg1[%c0_16, %c0_17, %c38] : memref<1x16x326xf32, #tpu.memory_space<vmem>>, vector<1x16x288xf32>
    %17 = vector.shape_cast %16 : vector<1x16x288xf32> to vector<16x288xf32>
    %18 = tpu.concatenate %1, %3, %5, %7, %9, %11, %13, %15, %17 in 0 : vector<16x288xf32>, vector<16x288xf32>, vector<16x288xf32>, vector<16x288xf32>, vector<16x288xf32>, vector<16x288xf32>, vector<16x288xf32>, vector<16x288xf32>, vector<16x288xf32> -> vector<144x288xf32>
    %c0_18 = arith.constant 0 : index
    %c0_19 = arith.constant 0 : index
    %19 = vector.load %arg2[%c0_18, %c0_19] : memref<16x144xf32, #tpu.memory_space<vmem>>, vector<16x144xf32>
    %cst = arith.constant dense<0.000000e+00> : vector<16x288xf32>
    %20 = tpu.matmul %19, %18, %cst {dimension_numbers = #tpu.dot_dimension_numbers<[1], [0], [0], [1], [0, 0, 1, 1], [], []>} : vector<16x144xf32>, vector<144x288xf32>, vector<16x288xf32> -> vector<16x288xf32>
    %c0_20 = arith.constant 0 : index
    %c0_21 = arith.constant 0 : index
    %21 = vector.load %arg3[%c0_20, %c0_21] : memref<16x1xf32, #tpu.memory_space<vmem>>, vector<16x1xf32>
    %22 = vector.broadcast %21 : vector<16x1xf32> to vector<16x288xf32>
    %23 = arith.addf %20, %22 : vector<16x288xf32>
    %24 = vector.extract_strided_slice %23 {offsets = [0, 0], sizes = [16, 16], strides = [1, 1]} : vector<16x288xf32> to vector<16x16xf32>
    %c0_22 = arith.constant 0 : index
    %c0_23 = arith.constant 0 : index
    %c0_24 = arith.constant 0 : index
    %25 = vector.load %arg4[%c0_22, %c0_23, %c0_24] : memref<1x16x256xf32, #tpu.memory_space<vmem>>, vector<1x16x16xf32>
    %26 = vector.shape_cast %25 : vector<1x16x16xf32> to vector<16x16xf32>
    %27 = vector.shape_cast %24 : vector<16x16xf32> to vector<1x16x16xf32>
    tpu.vector_store %arg4[%c0_22, %c0_23, %c0_24], %27 {strides = array<i32>} : memref<1x16x256xf32, #tpu.memory_space<vmem>>, vector<1x16x16xf32>,
    %28 = vector.extract_strided_slice %23 {offsets = [0, 18], sizes = [16, 16], strides = [1, 1]} : vector<16x288xf32> to vector<16x16xf32>
    %c0_25 = arith.constant 0 : index
    %c0_26 = arith.constant 0 : index
    %c16 = arith.constant 16 : index
    %29 = vector.load %arg4[%c0_25, %c0_26, %c16] : memref<1x16x256xf32, #tpu.memory_space<vmem>>, vector<1x16x16xf32>
    %30 = vector.shape_cast %29 : vector<1x16x16xf32> to vector<16x16xf32>
    %31 = vector.shape_cast %28 : vector<16x16xf32> to vector<1x16x16xf32>
    tpu.vector_store %arg4[%c0_25, %c0_26, %c16], %31 {strides = array<i32>} : memref<1x16x256xf32, #tpu.memory_space<vmem>>, vector<1x16x16xf32>,
    %32 = vector.extract_strided_slice %23 {offsets = [0, 36], sizes = [16, 16], strides = [1, 1]} : vector<16x288xf32> to vector<16x16xf32>
    %c0_27 = arith.constant 0 : index
    %c0_28 = arith.constant 0 : index
    %c32 = arith.constant 32 : index
    %33 = vector.load %arg4[%c0_27, %c0_28, %c32] : memref<1x16x256xf32, #tpu.memory_space<vmem>>, vector<1x16x16xf32>
    %34 = vector.shape_cast %33 : vector<1x16x16xf32> to vector<16x16xf32>
    %35 = vector.shape_cast %32 : vector<16x16xf32> to vector<1x16x16xf32>
    tpu.vector_store %arg4[%c0_27, %c0_28, %c32], %35 {strides = array<i32>} : memref<1x16x256xf32, #tpu.memory_space<vmem>>, vector<1x16x16xf32>,
    %36 = vector.extract_strided_slice %23 {offsets = [0, 54], sizes = [16, 16], strides = [1, 1]} : vector<16x288xf32> to vector<16x16xf32>
    %c0_29 = arith.constant 0 : index
    %c0_30 = arith.constant 0 : index
    %c48 = arith.constant 48 : index
    %37 = vector.load %arg4[%c0_29, %c0_30, %c48] : memref<1x16x256xf32, #tpu.memory_space<vmem>>, vector<1x16x16xf32>
    %38 = vector.shape_cast %37 : vector<1x16x16xf32> to vector<16x16xf32>
    %39 = vector.shape_cast %36 : vector<16x16xf32> to vector<1x16x16xf32>
    tpu.vector_store %arg4[%c0_29, %c0_30, %c48], %39 {strides = array<i32>} : memref<1x16x256xf32, #tpu.memory_space<vmem>>, vector<1x16x16xf32>,
    %40 = vector.extract_strided_slice %23 {offsets = [0, 72], sizes = [16, 16], strides = [1, 1]} : vector<16x288xf32> to vector<16x16xf32>
    %c0_31 = arith.constant 0 : index
    %c0_32 = arith.constant 0 : index
    %c64 = arith.constant 64 : index
    %41 = vector.load %arg4[%c0_31, %c0_32, %c64] : memref<1x16x256xf32, #tpu.memory_space<vmem>>, vector<1x16x16xf32>
    %42 = vector.shape_cast %41 : vector<1x16x16xf32> to vector<16x16xf32>
    %43 = vector.shape_cast %40 : vector<16x16xf32> to vector<1x16x16xf32>
    tpu.vector_store %arg4[%c0_31, %c0_32, %c64], %43 {strides = array<i32>} : memref<1x16x256xf32, #tpu.memory_space<vmem>>, vector<1x16x16xf32>,
    %44 = vector.extract_strided_slice %23 {offsets = [0, 90], sizes = [16, 16], strides = [1, 1]} : vector<16x288xf32> to vector<16x16xf32>
    %c0_33 = arith.constant 0 : index
    %c0_34 = arith.constant 0 : index
    %c80 = arith.constant 80 : index
    %45 = vector.load %arg4[%c0_33, %c0_34, %c80] : memref<1x16x256xf32, #tpu.memory_space<vmem>>, vector<1x16x16xf32>
    %46 = vector.shape_cast %45 : vector<1x16x16xf32> to vector<16x16xf32>
    %47 = vector.shape_cast %44 : vector<16x16xf32> to vector<1x16x16xf32>
    tpu.vector_store %arg4[%c0_33, %c0_34, %c80], %47 {strides = array<i32>} : memref<1x16x256xf32, #tpu.memory_space<vmem>>, vector<1x16x16xf32>,
    %48 = vector.extract_strided_slice %23 {offsets = [0, 108], sizes = [16, 16], strides = [1, 1]} : vector<16x288xf32> to vector<16x16xf32>
    %c0_35 = arith.constant 0 : index
    %c0_36 = arith.constant 0 : index
    %c96 = arith.constant 96 : index
    %49 = vector.load %arg4[%c0_35, %c0_36, %c96] : memref<1x16x256xf32, #tpu.memory_space<vmem>>, vector<1x16x16xf32>
    %50 = vector.shape_cast %49 : vector<1x16x16xf32> to vector<16x16xf32>
    %51 = vector.shape_cast %48 : vector<16x16xf32> to vector<1x16x16xf32>
    tpu.vector_store %arg4[%c0_35, %c0_36, %c96], %51 {strides = array<i32>} : memref<1x16x256xf32, #tpu.memory_space<vmem>>, vector<1x16x16xf32>,
    %52 = vector.extract_strided_slice %23 {offsets = [0, 126], sizes = [16, 16], strides = [1, 1]} : vector<16x288xf32> to vector<16x16xf32>
    %c0_37 = arith.constant 0 : index
    %c0_38 = arith.constant 0 : index
    %c112 = arith.constant 112 : index
    %53 = vector.load %arg4[%c0_37, %c0_38, %c112] : memref<1x16x256xf32, #tpu.memory_space<vmem>>, vector<1x16x16xf32>
    %54 = vector.shape_cast %53 : vector<1x16x16xf32> to vector<16x16xf32>
    %55 = vector.shape_cast %52 : vector<16x16xf32> to vector<1x16x16xf32>
    tpu.vector_store %arg4[%c0_37, %c0_38, %c112], %55 {strides = array<i32>} : memref<1x16x256xf32, #tpu.memory_space<vmem>>, vector<1x16x16xf32>,
    %56 = vector.extract_strided_slice %23 {offsets = [0, 144], sizes = [16, 16], strides = [1, 1]} : vector<16x288xf32> to vector<16x16xf32>
    %c0_39 = arith.constant 0 : index
    %c0_40 = arith.constant 0 : index
    %c128 = arith.constant 128 : index
    %57 = vector.load %arg4[%c0_39, %c0_40, %c128] : memref<1x16x256xf32, #tpu.memory_space<vmem>>, vector<1x16x16xf32>
    %58 = vector.shape_cast %57 : vector<1x16x16xf32> to vector<16x16xf32>
    %59 = vector.shape_cast %56 : vector<16x16xf32> to vector<1x16x16xf32>
    tpu.vector_store %arg4[%c0_39, %c0_40, %c128], %59 {strides = array<i32>} : memref<1x16x256xf32, #tpu.memory_space<vmem>>, vector<1x16x16xf32>,
    %60 = vector.extract_strided_slice %23 {offsets = [0, 162], sizes = [16, 16], strides = [1, 1]} : vector<16x288xf32> to vector<16x16xf32>
    %c0_41 = arith.constant 0 : index
    %c0_42 = arith.constant 0 : index
    %c144 = arith.constant 144 : index
    %61 = vector.load %arg4[%c0_41, %c0_42, %c144] : memref<1x16x256xf32, #tpu.memory_space<vmem>>, vector<1x16x16xf32>
    %62 = vector.shape_cast %61 : vector<1x16x16xf32> to vector<16x16xf32>
    %63 = vector.shape_cast %60 : vector<16x16xf32> to vector<1x16x16xf32>
    tpu.vector_store %arg4[%c0_41, %c0_42, %c144], %63 {strides = array<i32>} : memref<1x16x256xf32, #tpu.memory_space<vmem>>, vector<1x16x16xf32>,
    %64 = vector.extract_strided_slice %23 {offsets = [0, 180], sizes = [16, 16], strides = [1, 1]} : vector<16x288xf32> to vector<16x16xf32>
    %c0_43 = arith.constant 0 : index
    %c0_44 = arith.constant 0 : index
    %c160 = arith.constant 160 : index
    %65 = vector.load %arg4[%c0_43, %c0_44, %c160] : memref<1x16x256xf32, #tpu.memory_space<vmem>>, vector<1x16x16xf32>
    %66 = vector.shape_cast %65 : vector<1x16x16xf32> to vector<16x16xf32>
    %67 = vector.shape_cast %64 : vector<16x16xf32> to vector<1x16x16xf32>
    tpu.vector_store %arg4[%c0_43, %c0_44, %c160], %67 {strides = array<i32>} : memref<1x16x256xf32, #tpu.memory_space<vmem>>, vector<1x16x16xf32>,
    %68 = vector.extract_strided_slice %23 {offsets = [0, 198], sizes = [16, 16], strides = [1, 1]} : vector<16x288xf32> to vector<16x16xf32>
    %c0_45 = arith.constant 0 : index
    %c0_46 = arith.constant 0 : index
    %c176 = arith.constant 176 : index
    %69 = vector.load %arg4[%c0_45, %c0_46, %c176] : memref<1x16x256xf32, #tpu.memory_space<vmem>>, vector<1x16x16xf32>
    %70 = vector.shape_cast %69 : vector<1x16x16xf32> to vector<16x16xf32>
    %71 = vector.shape_cast %68 : vector<16x16xf32> to vector<1x16x16xf32>
    tpu.vector_store %arg4[%c0_45, %c0_46, %c176], %71 {strides = array<i32>} : memref<1x16x256xf32, #tpu.memory_space<vmem>>, vector<1x16x16xf32>,
    %72 = vector.extract_strided_slice %23 {offsets = [0, 216], sizes = [16, 16], strides = [1, 1]} : vector<16x288xf32> to vector<16x16xf32>
    %c0_47 = arith.constant 0 : index
    %c0_48 = arith.constant 0 : index
    %c192 = arith.constant 192 : index
    %73 = vector.load %arg4[%c0_47, %c0_48, %c192] : memref<1x16x256xf32, #tpu.memory_space<vmem>>, vector<1x16x16xf32>
    %74 = vector.shape_cast %73 : vector<1x16x16xf32> to vector<16x16xf32>
    %75 = vector.shape_cast %72 : vector<16x16xf32> to vector<1x16x16xf32>
    tpu.vector_store %arg4[%c0_47, %c0_48, %c192], %75 {strides = array<i32>} : memref<1x16x256xf32, #tpu.memory_space<vmem>>, vector<1x16x16xf32>,
    %76 = vector.extract_strided_slice %23 {offsets = [0, 234], sizes = [16, 16], strides = [1, 1]} : vector<16x288xf32> to vector<16x16xf32>
    %c0_49 = arith.constant 0 : index
    %c0_50 = arith.constant 0 : index
    %c208 = arith.constant 208 : index
    %77 = vector.load %arg4[%c0_49, %c0_50, %c208] : memref<1x16x256xf32, #tpu.memory_space<vmem>>, vector<1x16x16xf32>
    %78 = vector.shape_cast %77 : vector<1x16x16xf32> to vector<16x16xf32>
    %79 = vector.shape_cast %76 : vector<16x16xf32> to vector<1x16x16xf32>
    tpu.vector_store %arg4[%c0_49, %c0_50, %c208], %79 {strides = array<i32>} : memref<1x16x256xf32, #tpu.memory_space<vmem>>, vector<1x16x16xf32>,
    %80 = vector.extract_strided_slice %23 {offsets = [0, 252], sizes = [16, 16], strides = [1, 1]} : vector<16x288xf32> to vector<16x16xf32>
    %c0_51 = arith.constant 0 : index
    %c0_52 = arith.constant 0 : index
    %c224 = arith.constant 224 : index
    %81 = vector.load %arg4[%c0_51, %c0_52, %c224] : memref<1x16x256xf32, #tpu.memory_space<vmem>>, vector<1x16x16xf32>
    %82 = vector.shape_cast %81 : vector<1x16x16xf32> to vector<16x16xf32>
    %83 = vector.shape_cast %80 : vector<16x16xf32> to vector<1x16x16xf32>
    tpu.vector_store %arg4[%c0_51, %c0_52, %c224], %83 {strides = array<i32>} : memref<1x16x256xf32, #tpu.memory_space<vmem>>, vector<1x16x16xf32>,
    %84 = vector.extract_strided_slice %23 {offsets = [0, 270], sizes = [16, 16], strides = [1, 1]} : vector<16x288xf32> to vector<16x16xf32>
    %c0_53 = arith.constant 0 : index
    %c0_54 = arith.constant 0 : index
    %c240 = arith.constant 240 : index
    %85 = vector.load %arg4[%c0_53, %c0_54, %c240] : memref<1x16x256xf32, #tpu.memory_space<vmem>>, vector<1x16x16xf32>
    %86 = vector.shape_cast %85 : vector<1x16x16xf32> to vector<16x16xf32>
    %87 = vector.shape_cast %84 : vector<16x16xf32> to vector<1x16x16xf32>
    tpu.vector_store %arg4[%c0_53, %c0_54, %c240], %87 {strides = array<i32>} : memref<1x16x256xf32, #tpu.memory_space<vmem>>, vector<1x16x16xf32>,
    return
  }
  func.func @transform_0(%arg0: i32) -> (i32, i32, i32) {
    %c0_i32 = arith.constant 0 : i32
    %c0_i32_0 = arith.constant 0 : i32
    %c0_i32_1 = arith.constant 0 : i32
    return %arg0, %c0_i32, %c0_i32_0 : i32, i32, i32
  }
  func.func @transform_1(%arg0: i32) -> (i32, i32) {
    %c0_i32 = arith.constant 0 : i32
    %c0_i32_0 = arith.constant 0 : i32
    %c0_i32_1 = arith.constant 0 : i32
    return %c0_i32, %c0_i32_0 : i32, i32
  }
  func.func @transform_2(%arg0: i32) -> (i32, i32) {
    %c0_i32 = arith.constant 0 : i32
    %c0_i32_0 = arith.constant 0 : i32
    %c0_i32_1 = arith.constant 0 : i32
    return %c0_i32, %c0_i32_0 : i32, i32
  }
  func.func @transform_3(%arg0: i32) -> (i32, i32, i32) {
    %c0_i32 = arith.constant 0 : i32
    %c0_i32_0 = arith.constant 0 : i32
    %c0_i32_1 = arith.constant 0 : i32
    return %arg0, %c0_i32, %c0_i32_0 : i32, i32, i32
  }
}

</mosaic_0001>

<llo_original>
// kernel: gcea_forward.5
$region0: #{gcea_forward.5}
  #allocation0 [shape = 'u32[]', space=smem, size = 0x4, offset = 0x4, fixed_abs, tag = 'smem constant byte address 0x4 - core index']
  #allocation1 [shape = 'u32[144,128]{1,0:T(1,128)}', space=vmem, size = 0x12000, scoped, tag = 'internal scratch']
  #allocation2 [shape = 'f32[1,1]{1,0:T(1,128)S(1)}', space=vmem, size = 0x200, scoped, tag = 'scoped memory for gcea_forward.5']
  %s0 = inlined_call_operand.vmem [shape: f32[2,16,256], index: 0, kind: input, shape index: {}]
  %s1 = inlined_call_operand.vmem [shape: f32[16,1], index: 1, kind: input, shape index: {}]
  %s2 = inlined_call_operand.<no memory space> [shape: f32[1,1], index: 2, kind: input, shape index: {}]
  %s3 = inlined_call_operand.vmem [shape: f32[2,16,1], index: 3, kind: output, shape index: {}]
  %s4 = sld [smem:[#allocation0]]
  $region45: #{gcea_forward.5} parent=0
    _
  %s6 = ssub.s32 1, %s4
  %s7 = scalar_select 0, %s6, %s4
  %v8 = vstv %s2
  %9 = vst [vmem:[#allocation2] sm:$0x1] %v8
  loop: start=0, step=1, limit=4
  $region2: #{gcea_forward.5} parent=0 // loop_pre_header
    _
  $region3: #{gcea_forward.5} parent=0 // loop_header
    %s11 = sphi 0, %s15
    %p12 = scmp.ge.s32.totalorder %s11, 4
    %s21 = sphi 0, %s23
    %s24 = sphi 0, %s21
    %s25 = sphi 0, %s24
    %s41 = sphi 0, %s25
    %s45 = sphi 0, %s45
    %s47 = sphi 0, %s45
    %s48 = sphi 0, %s47
    %s62 = sphi 0, %s48
    %s66 = sphi 0, %s66
    %s68 = sphi 0, %s66
    %s69 = sphi 0, %s68
    %s83 = sphi 0, %s69
    %s89 = sphi 0, %s91
    %s92 = sphi 0, %s89
    %s93 = sphi 0, %s92
    %s109 = sphi 0, %s93
  $region4: #{gcea_forward.5} parent=0 // loop_header_branch
    %14 = sbr.rel (%p12) target = $region8
  $region5: #{gcea_forward.5} parent=0 // loop_body
    %s16 = ssub.s32 %s11, 1
    %s17 = ssub.s32 %s11, 2
    %s18 = sadd.s32 %s11, 1
    %s19 = ssub.s32 %s11, %s18
    %p20 = scmp.eq.s32.totalorder %s19, 0
    %s22 = sadd.s32 %s21, 1
    %s23 = scalar_select %p20, %s21, %s22
    %p26 = pneg %p20
    %p27 = scmp.eq.s32.totalorder %s11, 1
    %p28 = por %p26, %p27
    %p29 = scmp.ne.s32.totalorder %s21, %s24
    %p30 = scmp.eq.s32.totalorder %s11, 0
    %p31 = por %p29, %p30
    %p32 = scmp.ne.s32.totalorder %s21, %s24
    %p33 = scmp.eq.s32.totalorder %s16, 1
    %p34 = por %p32, %p33
    %p35 = scmp.ne.s32.totalorder %s24, %s25
    %p36 = scmp.eq.s32.totalorder %s16, 0
    %p37 = por %p35, %p36
    %p38 = scmp.ne.s32.totalorder %s24, %s25
    %p39 = scmp.eq.s32.totalorder %s17, 1
    %p40 = por %p38, %p39
    %p42 = scmp.ne.s32.totalorder %s25, %s41
    %p43 = scmp.eq.s32.totalorder %s17, 0
    %p44 = por %p42, %p43
    %s46 = sadd.s32 %s45, 1
    %p49 = scmp.eq.s32.totalorder %s11, 1
    %p50 = scmp.ne.s32.totalorder %s45, %s47
    %p51 = scmp.eq.s32.totalorder %s11, 0
    %p52 = por %p50, %p51
    %p53 = scmp.ne.s32.totalorder %s45, %s47
    %p54 = scmp.eq.s32.totalorder %s16, 1
    %p55 = por %p53, %p54
    %p56 = scmp.ne.s32.totalorder %s47, %s48
    %p57 = scmp.eq.s32.totalorder %s16, 0
    %p58 = por %p56, %p57
    %p59 = scmp.ne.s32.totalorder %s47, %s48
    %p60 = scmp.eq.s32.totalorder %s17, 1
    %p61 = por %p59, %p60
    %p63 = scmp.ne.s32.totalorder %s48, %s62
    %p64 = scmp.eq.s32.totalorder %s17, 0
    %p65 = por %p63, %p64
    %s67 = sadd.s32 %s66, 1
    %p70 = scmp.eq.s32.totalorder %s11, 1
    %p71 = scmp.ne.s32.totalorder %s66, %s68
    %p72 = scmp.eq.s32.totalorder %s11, 0
    %p73 = por %p71, %p72
    %p74 = scmp.ne.s32.totalorder %s66, %s68
    %p75 = scmp.eq.s32.totalorder %s16, 1
    %p76 = por %p74, %p75
    %p77 = scmp.ne.s32.totalorder %s68, %s69
    %p78 = scmp.eq.s32.totalorder %s16, 0
    %p79 = por %p77, %p78
    %p80 = scmp.ne.s32.totalorder %s68, %s69
    %p81 = scmp.eq.s32.totalorder %s17, 1
    %p82 = por %p80, %p81
    %p84 = scmp.ne.s32.totalorder %s69, %s83
    %p85 = scmp.eq.s32.totalorder %s17, 0
    %p86 = por %p84, %p85
    %s87 = ssub.s32 %s11, %s18
    %p88 = scmp.eq.s32.totalorder %s87, 0
    %s90 = sadd.s32 %s89, 1
    %s91 = scalar_select %p88, %s89, %s90
    %p94 = pneg %p88
    %p95 = scmp.eq.s32.totalorder %s11, 1
    %p96 = por %p94, %p95
    %p97 = scmp.ne.s32.totalorder %s89, %s92
    %p98 = scmp.eq.s32.totalorder %s11, 0
    %p99 = por %p97, %p98
    %p100 = scmp.ne.s32.totalorder %s89, %s92
    %p101 = scmp.eq.s32.totalorder %s16, 1
    %p102 = por %p100, %p101
    %p103 = scmp.ne.s32.totalorder %s92, %s93
    %p104 = scmp.eq.s32.totalorder %s16, 0
    %p105 = por %p103, %p104
    %p106 = scmp.ne.s32.totalorder %s92, %s93
    %p107 = scmp.eq.s32.totalorder %s17, 1
    %p108 = por %p106, %p107
    %p110 = scmp.ne.s32.totalorder %s93, %s109
    %p111 = scmp.eq.s32.totalorder %s17, 0
    %p112 = por %p110, %p111
    %p113 = scmp.le.s32.totalorder 1, %s11
    %p114 = scmp.lt.s32.totalorder %s11, 3
    %p115 = pnand %p113, %p114
    %p116 = pneg %p115
    // Predicated region
    $region9: #{gcea_forward.5} parent=5 // pred_check
      _
    $region10: #{gcea_forward.5} parent=5 // pred_check_branch
      %118 = sbr.rel (%p115) target = $region12
    $region11: #{gcea_forward.5} parent=5 // pred_region
      %s119 = ssub.s32 %s11, 1
      // Predicated region
      $region13: #{gcea_forward.5} parent=11 // pred_check
        %p120 = pneg %p58
      $region14: #{gcea_forward.5} parent=11 // pred_check_branch
        %122 = sbr.rel (%p120) target = $region16
      $region15: #{gcea_forward.5} parent=11 // pred_region
        _
      $region16: #{gcea_forward.5} parent=11 // pred_fallthru
        _
      // Predicated region
      $region17: #{gcea_forward.5} parent=11 // pred_check
        %p123 = pneg %p79
      $region18: #{gcea_forward.5} parent=11 // pred_check_branch
        %125 = sbr.rel (%p123) target = $region20
      $region19: #{gcea_forward.5} parent=11 // pred_region
        _
      $region20: #{gcea_forward.5} parent=11 // pred_fallthru
        _
    $region12: #{gcea_forward.5} parent=5 // pred_fallthru
      _
    %p126 = scmp.lt.s32.totalorder %s11, 2
    // Predicated region
    $region21: #{gcea_forward.5} parent=5 // pred_check
      %p127 = pneg %p126
    $region22: #{gcea_forward.5} parent=5 // pred_check_branch
      %129 = sbr.rel (%p127) target = $region24
    $region23: #{gcea_forward.5} parent=5 // pred_region
      // Predicated region
      $region25: #{gcea_forward.5} parent=23 // pred_check
        %p130 = pneg %p31
      $region26: #{gcea_forward.5} parent=23 // pred_check_branch
        %132 = sbr.rel (%p130) target = $region28
      $region27: #{gcea_forward.5} parent=23 // pred_region
        %p133 = scmp.lt.s32.totalorder %s11, 1
        %s134 = scalar_select %p133, %s11, 1
        %s135 = smul.addr %s134, 4
        %s136 = smul.addr %s135, 8
        %s137 = scalar_lea.vmem %s0, %s136
      $region28: #{gcea_forward.5} parent=23 // pred_fallthru
        _
    $region24: #{gcea_forward.5} parent=5 // pred_fallthru
      _
    %p138 = scmp.le.s32.totalorder 1, %s11
    %p139 = scmp.lt.s32.totalorder %s11, 3
    %p140 = pnand %p138, %p139
    %p141 = pneg %p140
    // Predicated region
    $region29: #{gcea_forward.5} parent=5 // pred_check
      _
    $region30: #{gcea_forward.5} parent=5 // pred_check_branch
      %143 = sbr.rel (%p140) target = $region32
    $region31: #{gcea_forward.5} parent=5 // pred_region
      %s144 = ssub.s32 %s11, 1
      %p145 = scmp.lt.s32.totalorder %s16, 1
      %s146 = scalar_select %p145, %s16, 1
      %s147 = smul.addr %s146, 4
      %s148 = smul.addr %s147, 8
      %s149 = scalar_lea.vmem %s0, %s148
      %p150 = pneg %p37
      %p151 = pneg %p34
      %p152 = pneg %p58
      %p153 = pneg %p55
      %p154 = pneg %p79
      %p155 = pneg %p76
      %p156 = pneg %p105
      %p157 = pneg %p102
      %p158 = scmp.lt.s32.totalorder %s16, 1
      %s159 = scalar_select %p158, %s16, 1
      %s160 = smul.addr %s159, 2
      %s161 = smul.addr %s160, 8
      %s162 = scalar_lea.vmem %s3, %s161
      %p163 = scmp.lt.s32.totalorder %s16, 1
      %s164 = scalar_select %p163, %s16, 1
      %s165 = smul.addr %s164, 4
      %s166 = smul.addr %s165, 8
      %s167 = scalar_lea.vmem %s0, %s166
      %p168 = scmp.lt.s32.totalorder %s16, 1
      %s169 = scalar_select %p168, %s16, 1
      %s170 = smul.addr %s169, 2
      %s171 = smul.addr %s170, 8
      %s172 = scalar_lea.vmem %s3, %s171
      %v173 = vld [vmem:[%s167] sm:$0xff]
      %v174 = vld [vmem:[%s167 + $0x8] sm:$0xff]
      %v175 = vld [vmem:[%s167 + $0x10] sm:$0xff]
      %v176 = vld [vmem:[%s167 + $0x18] sm:$0xff]
      %v177 = vadd.f32 %v173, %v174
      %178 = vadd.xlane.f32.xlu0 %v177
      %v179 = vpop.xlane.xlu0 %178
      %v180 = vadd.f32 %v175, %v176
      %181 = vadd.xlane.f32.xlu0 %v180
      %v182 = vpop.xlane.xlu0 %181
      %v183 = vrcp.pop 256.0
      %v184 = vmul.f32 %v179, %v183
      %v185 = vmul.f32 %v182, %v183
      %v186 = vmul.f32 %v173, %v173
      %v187 = vmul.f32 %v174, %v174
      %v188 = vmul.f32 %v175, %v175
      %v189 = vmul.f32 %v176, %v176
      %v190 = vadd.f32 %v186, %v187
      %191 = vadd.xlane.f32.xlu0 %v190
      %v192 = vpop.xlane.xlu0 %191
      %v193 = vadd.f32 %v188, %v189
      %194 = vadd.xlane.f32.xlu0 %v193
      %v195 = vpop.xlane.xlu0 %194
      %v196 = vmul.f32 %v192, %v183
      %v197 = vmul.f32 %v195, %v183
      %v198 = vmul.f32 %v184, %v184
      %v199 = vmul.f32 %v185, %v185
      %v200 = vsub.f32 %v196, %v198
      %v201 = vsub.f32 %v197, %v199
      %v202 = vmul.f32 %v200, 1.0039216
      %v203 = vmul.f32 %v201, 1.0039216
      %v204 = vld [vmem:[%s1] sm:$0xff]
      %v205 = vld [vmem:[%s1 + $0x8] sm:$0xff]
      %v206 = vadd.f32 %v202, 1e-05
      %v207 = vadd.f32 %v203, 1e-05
      %v208 = vrsqrt.pop %v206
      %v209 = vrsqrt.pop %v207
      %v210 = vmul.f32 %v204, %v208
      %v211 = vmul.f32 %v205, %v209
      %v212 = vld [vmem:[#allocation2] sm:$0x1]
      %v213 = vmul.f32 %v210, %v184
      %v214 = vmul.f32 %v211, %v185
      %vm215 = vcmask 7168
      %v216 = vsel %vm215, %v213, 0.0
      %v217 = vsel %vm215, %v214, 0.0
      %v218 = vadd.f32 %v216, %v217
      %v219 = vrot.slane %v218, 4
      %v220 = vadd.f32 %v218, %v219
      %v221 = vrot.slane %v220, 2
      %v222 = vadd.f32 %v220, %v221
      %v223 = vrot.slane %v222, 1
      %v224 = vadd.f32 %v222, %v223
      %v225 = vsub.f32 %v212, %v224
      %227 = vset.pattern.permute.xlu0 0
      %228 = vperm.xlu0 %227, %v210
      %v229 = vpop.permute.xlu0 %228
      %232 = vset.pattern.permute.xlu0 0
      %233 = vperm.xlu0 %232, %v211
      %v234 = vpop.permute.xlu0 %233
      %v236 = vmul.f32 %v173, %v229
      %v237 = vmul.f32 %v174, %v229
      %v238 = vmul.f32 %v175, %v234
      %v239 = vmul.f32 %v176, %v234
      %v240 = vadd.f32 %v236, %v238
      %v241 = vrot.slane %v240, 4
      %v242 = vadd.f32 %v240, %v241
      %v243 = vrot.slane %v242, 2
      %v244 = vadd.f32 %v242, %v243
      %v245 = vrot.slane %v244, 1
      %v246 = vadd.f32 %v244, %v245
      %v247 = vadd.f32 %v237, %v239
      %v248 = vrot.slane %v247, 4
      %v249 = vadd.f32 %v247, %v248
      %v250 = vrot.slane %v249, 2
      %v251 = vadd.f32 %v249, %v250
      %v252 = vrot.slane %v251, 1
      %v253 = vadd.f32 %v251, %v252
      %255 = vset.pattern.permute.xlu0 0
      %256 = vperm.xlu0 %255, %v225
      %v257 = vpop.permute.xlu0 %256
      %v259 = vlaneseq
      %v260 = vshrl.u32 %v259, 7
      %v261 = vsub.s32 0, %v260
      %v262 = vrot.slane %v257, %v261
      %v263 = vadd.f32 %v246, %v262
      %v264 = vadd.f32 %v253, %v262
      %v265 = vmax.f32 %v263, %v264
      %266 = vmax.xlane.f32.xlu0 %v265
      %v267 = vpop.xlane.xlu0 %266
      %v268 = vsub.f32 %v263, %v267
      %v269 = vsub.f32 %v264, %v267
      %v270 = vmul.f32 %v268, 1.442695
      %v271 = vpow.pop %v270
      %v272 = vmul.f32 %v269, 1.442695
      %v273 = vpow.pop %v272
      %v274 = vadd.f32 %v271, %v273
      %275 = vadd.xlane.f32.xlu0 %v274
      %v276 = vpop.xlane.xlu0 %275
      %v277 = vrcp.pop %v276
      %v278 = vmul.f32 %v271, %v277
      %v279 = vmul.f32 %v273, %v277
      %v280 = vmul.f32 %v173, %v278
      %v281 = vmul.f32 %v174, %v279
      %v282 = vmul.f32 %v175, %v278
      %v283 = vmul.f32 %v176, %v279
      %v284 = vadd.f32 %v280, %v281
      %285 = vadd.xlane.f32.xlu0 %v284
      %v286 = vpop.xlane.xlu0 %285
      %v287 = vadd.f32 %v282, %v283
      %288 = vadd.xlane.f32.xlu0 %v287
      %v289 = vpop.xlane.xlu0 %288
      %290 = vst.msk [vmem:[%s172] sm:$0xff] %vm215, %v286
      %291 = vst.msk [vmem:[%s172 + $0x8] sm:$0xff] %vm215, %v289
      %p292 = scmp.lt.s32.totalorder %s16, 1
      %s293 = scalar_select %p292, %s16, 1
      %s294 = smul.addr %s293, 2
      %s295 = smul.addr %s294, 8
      %s296 = scalar_lea.vmem %s3, %s295
      // Predicated region
      $region33: #{gcea_forward.5} parent=31 // pred_check
        %p297 = pneg %p102
      $region34: #{gcea_forward.5} parent=31 // pred_check_branch
        %299 = sbr.rel (%p297) target = $region36
      $region35: #{gcea_forward.5} parent=31 // pred_region
        _
      $region36: #{gcea_forward.5} parent=31 // pred_fallthru
        _
    $region32: #{gcea_forward.5} parent=5 // pred_fallthru
      _
    %p300 = scmp.le.s32.totalorder 2, %s11
    // Predicated region
    $region37: #{gcea_forward.5} parent=5 // pred_check
      %p301 = pneg %p300
    $region38: #{gcea_forward.5} parent=5 // pred_check_branch
      %303 = sbr.rel (%p301) target = $region40
    $region39: #{gcea_forward.5} parent=5 // pred_region
      %s304 = ssub.s32 %s11, 2
      // Predicated region
      $region41: #{gcea_forward.5} parent=39 // pred_check
        %p305 = pneg %p108
      $region42: #{gcea_forward.5} parent=39 // pred_check_branch
        %307 = sbr.rel (%p305) target = $region44
      $region43: #{gcea_forward.5} parent=39 // pred_region
        %p308 = scmp.lt.s32.totalorder %s17, 1
        %s309 = scalar_select %p308, %s17, 1
        %s310 = smul.addr %s309, 2
        %s311 = smul.addr %s310, 8
        %s312 = scalar_lea.vmem %s3, %s311
      $region44: #{gcea_forward.5} parent=39 // pred_fallthru
        _
    $region40: #{gcea_forward.5} parent=5 // pred_fallthru
      _
  $region6: #{gcea_forward.5} parent=0 // loop_footer
    %s15 = sadd.s32 1, %s11
  $region7: #{gcea_forward.5} parent=0 // loop_footer_branch
    %10 = sbr.rel target = $region3
  $region8: #{gcea_forward.5} parent=0 // loop_exit
    _

// kernel: gcea_forward.6
$region0: #{gcea_forward.6}
  #allocation0 [shape = 'u32[]', space=smem, size = 0x4, offset = 0x4, fixed_abs, tag = 'smem constant byte address 0x4 - core index']
  #allocation1 [shape = 'u32[144,128]{1,0:T(1,128)}', space=vmem, size = 0x12000, scoped, tag = 'internal scratch']
  %s0 = inlined_call_operand.vmem [shape: f32[512,16], index: 0, kind: input, shape index: {}]
  %s1 = inlined_call_operand.vmem [shape: f32[512,1], index: 1, kind: input, shape index: {}]
  %s2 = inlined_call_operand.vmem [shape: f32[16,64], index: 2, kind: input, shape index: {}]
  %s3 = inlined_call_operand.vmem [shape: f32[64,16], index: 3, kind: input, shape index: {}]
  %s4 = inlined_call_operand.vmem [shape: f32[512,16], index: 4, kind: output, shape index: {}]
  %s5 = sld [smem:[#allocation0]]
  $region49: #{gcea_forward.6} parent=0
    _
  %s7 = ssub.s32 1, %s5
  %s8 = scalar_select 0, %s7, %s5
  loop: start=0, step=1, limit=4
  $region2: #{gcea_forward.6} parent=0 // loop_pre_header
    _
  $region3: #{gcea_forward.6} parent=0 // loop_header
    %s10 = sphi 0, %s14
    %p11 = scmp.ge.s32.totalorder %s10, 4
    %s20 = sphi 0, %s22
    %s23 = sphi 0, %s20
    %s24 = sphi 0, %s23
    %s40 = sphi 0, %s24
    %s46 = sphi 0, %s48
    %s49 = sphi 0, %s46
    %s50 = sphi 0, %s49
    %s66 = sphi 0, %s50
    %s70 = sphi 0, %s70
    %s72 = sphi 0, %s70
    %s73 = sphi 0, %s72
    %s87 = sphi 0, %s73
    %s91 = sphi 0, %s91
    %s93 = sphi 0, %s91
    %s94 = sphi 0, %s93
    %s108 = sphi 0, %s94
    %s114 = sphi 0, %s116
    %s117 = sphi 0, %s114
    %s118 = sphi 0, %s117
    %s134 = sphi 0, %s118
  $region4: #{gcea_forward.6} parent=0 // loop_header_branch
    %13 = sbr.rel (%p11) target = $region8
  $region5: #{gcea_forward.6} parent=0 // loop_body
    %s15 = ssub.s32 %s10, 1
    %s16 = ssub.s32 %s10, 2
    %s17 = sadd.s32 %s10, 1
    %s18 = ssub.s32 %s10, %s17
    %p19 = scmp.eq.s32.totalorder %s18, 0
    %s21 = sadd.s32 %s20, 1
    %s22 = scalar_select %p19, %s20, %s21
    %p25 = pneg %p19
    %p26 = scmp.eq.s32.totalorder %s10, 1
    %p27 = por %p25, %p26
    %p28 = scmp.ne.s32.totalorder %s20, %s23
    %p29 = scmp.eq.s32.totalorder %s10, 0
    %p30 = por %p28, %p29
    %p31 = scmp.ne.s32.totalorder %s20, %s23
    %p32 = scmp.eq.s32.totalorder %s15, 1
    %p33 = por %p31, %p32
    %p34 = scmp.ne.s32.totalorder %s23, %s24
    %p35 = scmp.eq.s32.totalorder %s15, 0
    %p36 = por %p34, %p35
    %p37 = scmp.ne.s32.totalorder %s23, %s24
    %p38 = scmp.eq.s32.totalorder %s16, 1
    %p39 = por %p37, %p38
    %p41 = scmp.ne.s32.totalorder %s24, %s40
    %p42 = scmp.eq.s32.totalorder %s16, 0
    %p43 = por %p41, %p42
    %s44 = ssub.s32 %s10, %s17
    %p45 = scmp.eq.s32.totalorder %s44, 0
    %s47 = sadd.s32 %s46, 1
    %s48 = scalar_select %p45, %s46, %s47
    %p51 = pneg %p45
    %p52 = scmp.eq.s32.totalorder %s10, 1
    %p53 = por %p51, %p52
    %p54 = scmp.ne.s32.totalorder %s46, %s49
    %p55 = scmp.eq.s32.totalorder %s10, 0
    %p56 = por %p54, %p55
    %p57 = scmp.ne.s32.totalorder %s46, %s49
    %p58 = scmp.eq.s32.totalorder %s15, 1
    %p59 = por %p57, %p58
    %p60 = scmp.ne.s32.totalorder %s49, %s50
    %p61 = scmp.eq.s32.totalorder %s15, 0
    %p62 = por %p60, %p61
    %p63 = scmp.ne.s32.totalorder %s49, %s50
    %p64 = scmp.eq.s32.totalorder %s16, 1
    %p65 = por %p63, %p64
    %p67 = scmp.ne.s32.totalorder %s50, %s66
    %p68 = scmp.eq.s32.totalorder %s16, 0
    %p69 = por %p67, %p68
    %s71 = sadd.s32 %s70, 1
    %p74 = scmp.eq.s32.totalorder %s10, 1
    %p75 = scmp.ne.s32.totalorder %s70, %s72
    %p76 = scmp.eq.s32.totalorder %s10, 0
    %p77 = por %p75, %p76
    %p78 = scmp.ne.s32.totalorder %s70, %s72
    %p79 = scmp.eq.s32.totalorder %s15, 1
    %p80 = por %p78, %p79
    %p81 = scmp.ne.s32.totalorder %s72, %s73
    %p82 = scmp.eq.s32.totalorder %s15, 0
    %p83 = por %p81, %p82
    %p84 = scmp.ne.s32.totalorder %s72, %s73
    %p85 = scmp.eq.s32.totalorder %s16, 1
    %p86 = por %p84, %p85
    %p88 = scmp.ne.s32.totalorder %s73, %s87
    %p89 = scmp.eq.s32.totalorder %s16, 0
    %p90 = por %p88, %p89
    %s92 = sadd.s32 %s91, 1
    %p95 = scmp.eq.s32.totalorder %s10, 1
    %p96 = scmp.ne.s32.totalorder %s91, %s93
    %p97 = scmp.eq.s32.totalorder %s10, 0
    %p98 = por %p96, %p97
    %p99 = scmp.ne.s32.totalorder %s91, %s93
    %p100 = scmp.eq.s32.totalorder %s15, 1
    %p101 = por %p99, %p100
    %p102 = scmp.ne.s32.totalorder %s93, %s94
    %p103 = scmp.eq.s32.totalorder %s15, 0
    %p104 = por %p102, %p103
    %p105 = scmp.ne.s32.totalorder %s93, %s94
    %p106 = scmp.eq.s32.totalorder %s16, 1
    %p107 = por %p105, %p106
    %p109 = scmp.ne.s32.totalorder %s94, %s108
    %p110 = scmp.eq.s32.totalorder %s16, 0
    %p111 = por %p109, %p110
    %s112 = ssub.s32 %s10, %s17
    %p113 = scmp.eq.s32.totalorder %s112, 0
    %s115 = sadd.s32 %s114, 1
    %s116 = scalar_select %p113, %s114, %s115
    %p119 = pneg %p113
    %p120 = scmp.eq.s32.totalorder %s10, 1
    %p121 = por %p119, %p120
    %p122 = scmp.ne.s32.totalorder %s114, %s117
    %p123 = scmp.eq.s32.totalorder %s10, 0
    %p124 = por %p122, %p123
    %p125 = scmp.ne.s32.totalorder %s114, %s117
    %p126 = scmp.eq.s32.totalorder %s15, 1
    %p127 = por %p125, %p126
    %p128 = scmp.ne.s32.totalorder %s117, %s118
    %p129 = scmp.eq.s32.totalorder %s15, 0
    %p130 = por %p128, %p129
    %p131 = scmp.ne.s32.totalorder %s117, %s118
    %p132 = scmp.eq.s32.totalorder %s16, 1
    %p133 = por %p131, %p132
    %p135 = scmp.ne.s32.totalorder %s118, %s134
    %p136 = scmp.eq.s32.totalorder %s16, 0
    %p137 = por %p135, %p136
    %p138 = scmp.le.s32.totalorder 1, %s10
    %p139 = scmp.lt.s32.totalorder %s10, 3
    %p140 = pnand %p138, %p139
    %p141 = pneg %p140
    // Predicated region
    $region9: #{gcea_forward.6} parent=5 // pred_check
      _
    $region10: #{gcea_forward.6} parent=5 // pred_check_branch
      %143 = sbr.rel (%p140) target = $region12
    $region11: #{gcea_forward.6} parent=5 // pred_region
      %s144 = ssub.s32 %s10, 1
      // Predicated region
      $region13: #{gcea_forward.6} parent=11 // pred_check
        %p145 = pneg %p83
      $region14: #{gcea_forward.6} parent=11 // pred_check_branch
        %147 = sbr.rel (%p145) target = $region16
      $region15: #{gcea_forward.6} parent=11 // pred_region
        _
      $region16: #{gcea_forward.6} parent=11 // pred_fallthru
        _
      // Predicated region
      $region17: #{gcea_forward.6} parent=11 // pred_check
        %p148 = pneg %p104
      $region18: #{gcea_forward.6} parent=11 // pred_check_branch
        %150 = sbr.rel (%p148) target = $region20
      $region19: #{gcea_forward.6} parent=11 // pred_region
        _
      $region20: #{gcea_forward.6} parent=11 // pred_fallthru
        _
    $region12: #{gcea_forward.6} parent=5 // pred_fallthru
      _
    %p151 = scmp.lt.s32.totalorder %s10, 2
    // Predicated region
    $region21: #{gcea_forward.6} parent=5 // pred_check
      %p152 = pneg %p151
    $region22: #{gcea_forward.6} parent=5 // pred_check_branch
      %154 = sbr.rel (%p152) target = $region24
    $region23: #{gcea_forward.6} parent=5 // pred_region
      // Predicated region
      $region25: #{gcea_forward.6} parent=23 // pred_check
        %p155 = pneg %p30
      $region26: #{gcea_forward.6} parent=23 // pred_check_branch
        %157 = sbr.rel (%p155) target = $region28
      $region27: #{gcea_forward.6} parent=23 // pred_region
        %s158 = smul.u32 32, %s10
        %p159 = scmp.lt.s32.totalorder %s158, 63
        %s160 = scalar_select %p159, %s158, 63
        %s161 = smul.addr %s160, 8
        %s162 = scalar_lea.vmem %s0, %s161
        %s163 = smul.u32 32, %s10
      $region28: #{gcea_forward.6} parent=23 // pred_fallthru
        _
      // Predicated region
      $region29: #{gcea_forward.6} parent=23 // pred_check
        %p164 = pneg %p56
      $region30: #{gcea_forward.6} parent=23 // pred_check_branch
        %166 = sbr.rel (%p164) target = $region32
      $region31: #{gcea_forward.6} parent=23 // pred_region
        %s167 = smul.u32 32, %s10
        %p168 = scmp.lt.s32.totalorder %s167, 63
        %s169 = scalar_select %p168, %s167, 63
        %s170 = smul.addr %s169, 8
        %s171 = scalar_lea.vmem %s1, %s170
        %s172 = smul.u32 32, %s10
      $region32: #{gcea_forward.6} parent=23 // pred_fallthru
        _
    $region24: #{gcea_forward.6} parent=5 // pred_fallthru
      _
    %p173 = scmp.le.s32.totalorder 1, %s10
    %p174 = scmp.lt.s32.totalorder %s10, 3
    %p175 = pnand %p173, %p174
    %p176 = pneg %p175
    // Predicated region
    $region33: #{gcea_forward.6} parent=5 // pred_check
      _
    $region34: #{gcea_forward.6} parent=5 // pred_check_branch
      %178 = sbr.rel (%p175) target = $region36
    $region35: #{gcea_forward.6} parent=5 // pred_region
      %s179 = ssub.s32 %s10, 1
      %s180 = smul.u32 32, %s15
      %p181 = scmp.lt.s32.totalorder %s180, 63
      %s182 = scalar_select %p181, %s180, 63
      %s183 = smul.addr %s182, 8
      %s184 = scalar_lea.vmem %s0, %s183
      %p185 = pneg %p36
      %p186 = pneg %p33
      %s187 = smul.u32 32, %s15
      %p188 = scmp.lt.s32.totalorder %s187, 63
      %s189 = scalar_select %p188, %s187, 63
      %s190 = smul.addr %s189, 8
      %s191 = scalar_lea.vmem %s1, %s190
      %p192 = pneg %p62
      %p193 = pneg %p59
      %p194 = pneg %p83
      %p195 = pneg %p80
      %p196 = pneg %p104
      %p197 = pneg %p101
      %p198 = pneg %p130
      %p199 = pneg %p127
      %s200 = smul.u32 32, %s15
      %p201 = scmp.lt.s32.totalorder %s200, 63
      %s202 = scalar_select %p201, %s200, 63
      %s203 = smul.addr %s202, 8
      %s204 = scalar_lea.vmem %s4, %s203
      %s205 = smul.u32 32, %s15
      %p206 = scmp.lt.s32.totalorder %s205, 63
      %s207 = scalar_select %p206, %s205, 63
      %s208 = smul.addr %s207, 8
      %s209 = scalar_lea.vmem %s0, %s208
      %s210 = smul.u32 32, %s15
      %s211 = smul.u32 32, %s15
      %p212 = scmp.lt.s32.totalorder %s211, 63
      %s213 = scalar_select %p212, %s211, 63
      %s214 = smul.addr %s213, 8
      %s215 = scalar_lea.vmem %s1, %s214
      %s216 = smul.u32 32, %s15
      %s217 = smul.u32 32, %s15
      %p218 = scmp.lt.s32.totalorder %s217, 63
      %s219 = scalar_select %p218, %s217, 63
      %s220 = smul.addr %s219, 8
      %s221 = scalar_lea.vmem %s4, %s220
      %s222 = smul.u32 32, %s15
      %v223 = vld [vmem:[%s209] sm:$0xff]
      %v224 = vld [vmem:[%s209 + $0x8] sm:$0xff]
      %v225 = vld [vmem:[%s209 + $0x10] sm:$0xff]
      %v226 = vld [vmem:[%s209 + $0x18] sm:$0xff]
      %v227 = vld [vmem:[%s209 + $0x20] sm:$0xff]
      %v228 = vld [vmem:[%s209 + $0x28] sm:$0xff]
      %v229 = vld [vmem:[%s209 + $0x30] sm:$0xff]
      %v230 = vld [vmem:[%s209 + $0x38] sm:$0xff]
      %v231 = vld [vmem:[%s209 + $0x40] sm:$0xff]
      %v232 = vld [vmem:[%s209 + $0x48] sm:$0xff]
      %v233 = vld [vmem:[%s209 + $0x50] sm:$0xff]
      %v234 = vld [vmem:[%s209 + $0x58] sm:$0xff]
      %v235 = vld [vmem:[%s209 + $0x60] sm:$0xff]
      %v236 = vld [vmem:[%s209 + $0x68] sm:$0xff]
      %v237 = vld [vmem:[%s209 + $0x70] sm:$0xff]
      %v238 = vld [vmem:[%s209 + $0x78] sm:$0xff]
      %v239 = vld [vmem:[%s209 + $0x80] sm:$0xff]
      %v240 = vld [vmem:[%s209 + $0x88] sm:$0xff]
      %v241 = vld [vmem:[%s209 + $0x90] sm:$0xff]
      %v242 = vld [vmem:[%s209 + $0x98] sm:$0xff]
      %v243 = vld [vmem:[%s209 + $0xa0] sm:$0xff]
      %v244 = vld [vmem:[%s209 + $0xa8] sm:$0xff]
      %v245 = vld [vmem:[%s209 + $0xb0] sm:$0xff]
      %v246 = vld [vmem:[%s209 + $0xb8] sm:$0xff]
      %v247 = vld [vmem:[%s209 + $0xc0] sm:$0xff]
      %v248 = vld [vmem:[%s209 + $0xc8] sm:$0xff]
      %v249 = vld [vmem:[%s209 + $0xd0] sm:$0xff]
      %v250 = vld [vmem:[%s209 + $0xd8] sm:$0xff]
      %v251 = vld [vmem:[%s209 + $0xe0] sm:$0xff]
      %v252 = vld [vmem:[%s209 + $0xe8] sm:$0xff]
      %v253 = vld [vmem:[%s209 + $0xf0] sm:$0xff]
      %v254 = vld [vmem:[%s209 + $0xf8] sm:$0xff]
      %v255 = vld [vmem:[%s215] sm:$0xff]
      %v256 = vld [vmem:[%s215 + $0x8] sm:$0xff]
      %v257 = vld [vmem:[%s215 + $0x10] sm:$0xff]
      %v258 = vld [vmem:[%s215 + $0x18] sm:$0xff]
      %v259 = vld [vmem:[%s215 + $0x20] sm:$0xff]
      %v260 = vld [vmem:[%s215 + $0x28] sm:$0xff]
      %v261 = vld [vmem:[%s215 + $0x30] sm:$0xff]
      %v262 = vld [vmem:[%s215 + $0x38] sm:$0xff]
      %v263 = vld [vmem:[%s215 + $0x40] sm:$0xff]
      %v264 = vld [vmem:[%s215 + $0x48] sm:$0xff]
      %v265 = vld [vmem:[%s215 + $0x50] sm:$0xff]
      %v266 = vld [vmem:[%s215 + $0x58] sm:$0xff]
      %v267 = vld [vmem:[%s215 + $0x60] sm:$0xff]
      %v268 = vld [vmem:[%s215 + $0x68] sm:$0xff]
      %v269 = vld [vmem:[%s215 + $0x70] sm:$0xff]
      %v270 = vld [vmem:[%s215 + $0x78] sm:$0xff]
      %v271 = vld [vmem:[%s215 + $0x80] sm:$0xff]
      %v272 = vld [vmem:[%s215 + $0x88] sm:$0xff]
      %v273 = vld [vmem:[%s215 + $0x90] sm:$0xff]
      %v274 = vld [vmem:[%s215 + $0x98] sm:$0xff]
      %v275 = vld [vmem:[%s215 + $0xa0] sm:$0xff]
      %v276 = vld [vmem:[%s215 + $0xa8] sm:$0xff]
      %v277 = vld [vmem:[%s215 + $0xb0] sm:$0xff]
      %v278 = vld [vmem:[%s215 + $0xb8] sm:$0xff]
      %v279 = vld [vmem:[%s215 + $0xc0] sm:$0xff]
      %v280 = vld [vmem:[%s215 + $0xc8] sm:$0xff]
      %v281 = vld [vmem:[%s215 + $0xd0] sm:$0xff]
      %v282 = vld [vmem:[%s215 + $0xd8] sm:$0xff]
      %v283 = vld [vmem:[%s215 + $0xe0] sm:$0xff]
      %v284 = vld [vmem:[%s215 + $0xe8] sm:$0xff]
      %v285 = vld [vmem:[%s215 + $0xf0] sm:$0xff]
      %v286 = vld [vmem:[%s215 + $0xf8] sm:$0xff]
      %288 = vset.pattern.permute.xlu0 0
      %289 = vperm.xlu0 %288, %v255
      %v290 = vpop.permute.xlu0 %289
      %293 = vset.pattern.permute.xlu0 0
      %294 = vperm.xlu0 %293, %v256
      %v295 = vpop.permute.xlu0 %294
      %298 = vset.pattern.permute.xlu0 0
      %299 = vperm.xlu0 %298, %v257
      %v300 = vpop.permute.xlu0 %299
      %303 = vset.pattern.permute.xlu0 0
      %304 = vperm.xlu0 %303, %v258
      %v305 = vpop.permute.xlu0 %304
      %308 = vset.pattern.permute.xlu0 0
      %309 = vperm.xlu0 %308, %v259
      %v310 = vpop.permute.xlu0 %309
      %313 = vset.pattern.permute.xlu0 0
      %314 = vperm.xlu0 %313, %v260
      %v315 = vpop.permute.xlu0 %314
      %318 = vset.pattern.permute.xlu0 0
      %319 = vperm.xlu0 %318, %v261
      %v320 = vpop.permute.xlu0 %319
      %323 = vset.pattern.permute.xlu0 0
      %324 = vperm.xlu0 %323, %v262
      %v325 = vpop.permute.xlu0 %324
      %328 = vset.pattern.permute.xlu0 0
      %329 = vperm.xlu0 %328, %v263
      %v330 = vpop.permute.xlu0 %329
      %333 = vset.pattern.permute.xlu0 0
      %334 = vperm.xlu0 %333, %v264
      %v335 = vpop.permute.xlu0 %334
      %338 = vset.pattern.permute.xlu0 0
      %339 = vperm.xlu0 %338, %v265
      %v340 = vpop.permute.xlu0 %339
      %343 = vset.pattern.permute.xlu0 0
      %344 = vperm.xlu0 %343, %v266
      %v345 = vpop.permute.xlu0 %344
      %348 = vset.pattern.permute.xlu0 0
      %349 = vperm.xlu0 %348, %v267
      %v350 = vpop.permute.xlu0 %349
      %353 = vset.pattern.permute.xlu0 0
      %354 = vperm.xlu0 %353, %v268
      %v355 = vpop.permute.xlu0 %354
      %358 = vset.pattern.permute.xlu0 0
      %359 = vperm.xlu0 %358, %v269
      %v360 = vpop.permute.xlu0 %359
      %363 = vset.pattern.permute.xlu0 0
      %364 = vperm.xlu0 %363, %v270
      %v365 = vpop.permute.xlu0 %364
      %368 = vset.pattern.permute.xlu0 0
      %369 = vperm.xlu0 %368, %v271
      %v370 = vpop.permute.xlu0 %369
      %373 = vset.pattern.permute.xlu0 0
      %374 = vperm.xlu0 %373, %v272
      %v375 = vpop.permute.xlu0 %374
      %378 = vset.pattern.permute.xlu0 0
      %379 = vperm.xlu0 %378, %v273
      %v380 = vpop.permute.xlu0 %379
      %383 = vset.pattern.permute.xlu0 0
      %384 = vperm.xlu0 %383, %v274
      %v385 = vpop.permute.xlu0 %384
      %388 = vset.pattern.permute.xlu0 0
      %389 = vperm.xlu0 %388, %v275
      %v390 = vpop.permute.xlu0 %389
      %393 = vset.pattern.permute.xlu0 0
      %394 = vperm.xlu0 %393, %v276
      %v395 = vpop.permute.xlu0 %394
      %398 = vset.pattern.permute.xlu0 0
      %399 = vperm.xlu0 %398, %v277
      %v400 = vpop.permute.xlu0 %399
      %403 = vset.pattern.permute.xlu0 0
      %404 = vperm.xlu0 %403, %v278
      %v405 = vpop.permute.xlu0 %404
      %408 = vset.pattern.permute.xlu0 0
      %409 = vperm.xlu0 %408, %v279
      %v410 = vpop.permute.xlu0 %409
      %413 = vset.pattern.permute.xlu0 0
      %414 = vperm.xlu0 %413, %v280
      %v415 = vpop.permute.xlu0 %414
      %418 = vset.pattern.permute.xlu0 0
      %419 = vperm.xlu0 %418, %v281
      %v420 = vpop.permute.xlu0 %419
      %423 = vset.pattern.permute.xlu0 0
      %424 = vperm.xlu0 %423, %v282
      %v425 = vpop.permute.xlu0 %424
      %428 = vset.pattern.permute.xlu0 0
      %429 = vperm.xlu0 %428, %v283
      %v430 = vpop.permute.xlu0 %429
      %433 = vset.pattern.permute.xlu0 0
      %434 = vperm.xlu0 %433, %v284
      %v435 = vpop.permute.xlu0 %434
      %438 = vset.pattern.permute.xlu0 0
      %439 = vperm.xlu0 %438, %v285
      %v440 = vpop.permute.xlu0 %439
      %443 = vset.pattern.permute.xlu0 0
      %444 = vperm.xlu0 %443, %v286
      %v445 = vpop.permute.xlu0 %444
      %v447 = vadd.f32 %v223, %v290
      %v448 = vadd.f32 %v224, %v295
      %v449 = vadd.f32 %v225, %v300
      %v450 = vadd.f32 %v226, %v305
      %v451 = vadd.f32 %v227, %v310
      %v452 = vadd.f32 %v228, %v315
      %v453 = vadd.f32 %v229, %v320
      %v454 = vadd.f32 %v230, %v325
      %v455 = vadd.f32 %v231, %v330
      %v456 = vadd.f32 %v232, %v335
      %v457 = vadd.f32 %v233, %v340
      %v458 = vadd.f32 %v234, %v345
      %v459 = vadd.f32 %v235, %v350
      %v460 = vadd.f32 %v236, %v355
      %v461 = vadd.f32 %v237, %v360
      %v462 = vadd.f32 %v238, %v365
      %v463 = vadd.f32 %v239, %v370
      %v464 = vadd.f32 %v240, %v375
      %v465 = vadd.f32 %v241, %v380
      %v466 = vadd.f32 %v242, %v385
      %v467 = vadd.f32 %v243, %v390
      %v468 = vadd.f32 %v244, %v395
      %v469 = vadd.f32 %v245, %v400
      %v470 = vadd.f32 %v246, %v405
      %v471 = vadd.f32 %v247, %v410
      %v472 = vadd.f32 %v248, %v415
      %v473 = vadd.f32 %v249, %v420
      %v474 = vadd.f32 %v250, %v425
      %v475 = vadd.f32 %v251, %v430
      %v476 = vadd.f32 %v252, %v435
      %v477 = vadd.f32 %v253, %v440
      %v478 = vadd.f32 %v254, %v445
      %v479 = vld [vmem:[%s2] sm:$0xff]
      %v480 = vld [vmem:[%s2 + $0x8] sm:$0xff]
      %vm481 = vcmask 130048
      %v483 = vsel %vm481, %v447, 0
      %v486 = vsel %vm481, %v448, 0
      %v489 = vsel %vm481, %v449, 0
      %v492 = vsel %vm481, %v450, 0
      %v495 = vsel %vm481, %v451, 0
      %v498 = vsel %vm481, %v452, 0
      %v501 = vsel %vm481, %v453, 0
      %v504 = vsel %vm481, %v454, 0
      %v507 = vsel %vm481, %v455, 0
      %v510 = vsel %vm481, %v456, 0
      %v513 = vsel %vm481, %v457, 0
      %v516 = vsel %vm481, %v458, 0
      %v519 = vsel %vm481, %v459, 0
      %v522 = vsel %vm481, %v460, 0
      %v525 = vsel %vm481, %v461, 0
      %v528 = vsel %vm481, %v462, 0
      %v531 = vsel %vm481, %v463, 0
      %v534 = vsel %vm481, %v464, 0
      %v537 = vsel %vm481, %v465, 0
      %v540 = vsel %vm481, %v466, 0
      %v543 = vsel %vm481, %v467, 0
      %v546 = vsel %vm481, %v468, 0
      %v549 = vsel %vm481, %v469, 0
      %v552 = vsel %vm481, %v470, 0
      %v555 = vsel %vm481, %v471, 0
      %v558 = vsel %vm481, %v472, 0
      %v561 = vsel %vm481, %v473, 0
      %v564 = vsel %vm481, %v474, 0
      %v567 = vsel %vm481, %v475, 0
      %v570 = vsel %vm481, %v476, 0
      %v573 = vsel %vm481, %v477, 0
      %v576 = vsel %vm481, %v478, 0
      %578 = vmatprep.subr.mxu0 0.0
      %579 = vmatpush1.msra.mxu0 0.0
      %580 = vmatprep.subr.mxu0 0.0
      %581 = vmatpush1.msra.mxu0 0.0
      %582 = vmatprep.subr.mxu0 0.0
      %583 = vmatpush1.msra.mxu0 0.0
      %584 = vmatprep.subr.mxu0 0.0
      %585 = vmatpush1.msra.mxu0 0.0
      %586 = vmatprep.subr.mxu0 0.0
      %587 = vmatpush1.msra.mxu0 0.0
      %588 = vmatprep.subr.mxu0 0.0
      %589 = vmatpush1.msra.mxu0 0.0
      %590 = vmatprep.subr.mxu0 0.0
      %591 = vmatpush1.msra.mxu0 0.0
      %592 = vmatprep.subr.mxu0 0.0
      %593 = vmatpush1.msra.mxu0 0.0
      %594 = vmatprep.subr.mxu0 0.0
      %595 = vmatpush1.msra.mxu0 0.0
      %596 = vmatprep.subr.mxu0 0.0
      %597 = vmatpush1.msra.mxu0 0.0
      %598 = vmatprep.subr.mxu0 0.0
      %599 = vmatpush1.msra.mxu0 0.0
      %600 = vmatprep.subr.mxu0 0.0
      %601 = vmatpush1.msra.mxu0 0.0
      %602 = vmatprep.subr.mxu0 0.0
      %603 = vmatpush1.msra.mxu0 0.0
      %604 = vmatprep.subr.mxu0 0.0
      %605 = vmatpush1.msra.mxu0 0.0
      %606 = vmatprep.subr.mxu0 0.0
      %607 = vmatpush1.msra.mxu0 %v480
      %608 = vmatprep.subr.mxu0 0.0
      %609 = vmatpush1.msra.mxu0 %v479
      %610 = vmatprep.subr.mxu0 0.0
      %611 = vmatpush2.msra.mxu0 0.0
      %612 = vmatprep.subr.mxu0 0.0
      %613 = vmatpush2.msra.mxu0 0.0
      %614 = vmatprep.subr.mxu0 0.0
      %615 = vmatpush2.msra.mxu0 0.0
      %616 = vmatprep.subr.mxu0 0.0
      %617 = vmatpush2.msra.mxu0 0.0
      %618 = vmatprep.subr.mxu0 0.0
      %619 = vmatpush2.msra.mxu0 0.0
      %620 = vmatprep.subr.mxu0 0.0
      %621 = vmatpush2.msra.mxu0 0.0
      %622 = vmatprep.subr.mxu0 0.0
      %623 = vmatpush2.msra.mxu0 0.0
      %624 = vmatprep.subr.mxu0 0.0
      %625 = vmatpush2.msra.mxu0 0.0
      %626 = vmatprep.subr.mxu0 0.0
      %627 = vmatpush2.msra.mxu0 0.0
      %628 = vmatprep.subr.mxu0 0.0
      %629 = vmatpush2.msra.mxu0 0.0
      %630 = vmatprep.subr.mxu0 0.0
      %631 = vmatpush2.msra.mxu0 0.0
      %632 = vmatprep.subr.mxu0 0.0
      %633 = vmatpush2.msra.mxu0 0.0
      %634 = vmatprep.subr.mxu0 0.0
      %635 = vmatpush2.msra.mxu0 0.0
      %636 = vmatprep.subr.mxu0 0.0
      %637 = vmatpush2.msra.mxu0 0.0
      %638 = vmatprep.subr.mxu0 0.0
      %639 = vmatpush2.msra.mxu0 0.0
      %640 = vmatprep.subr.mxu0 0.0
      %641 = vmatpush2.msra.mxu0 0.0
      %642 = vmatprep.mubr.f32.mxu0 0.0
      %643 = vmatmul.mubr.f32.gmra.mxu0 %v483
      %v644 = vpop.f32.mrf.mxu0
      %v645 = vadd.f32 0.0, %v644
      %v646 = vpop.f32.mrf.mxu0
      %647 = vmatprep.mubr.f32.mxu0 0.0
      %648 = vmatmul.mubr.f32.gmra.mxu0 %v486
      %v649 = vpop.f32.mrf.mxu0
      %v650 = vadd.f32 0.0, %v649
      %v651 = vpop.f32.mrf.mxu0
      %652 = vmatprep.mubr.f32.mxu0 0.0
      %653 = vmatmul.mubr.f32.gmra.mxu0 %v489
      %v654 = vpop.f32.mrf.mxu0
      %v655 = vadd.f32 0.0, %v654
      %v656 = vpop.f32.mrf.mxu0
      %657 = vmatprep.mubr.f32.mxu0 0.0
      %658 = vmatmul.mubr.f32.gmra.mxu0 %v492
      %v659 = vpop.f32.mrf.mxu0
      %v660 = vadd.f32 0.0, %v659
      %v661 = vpop.f32.mrf.mxu0
      %662 = vmatprep.mubr.f32.mxu0 0.0
      %663 = vmatmul.mubr.f32.gmra.mxu0 %v495
      %v664 = vpop.f32.mrf.mxu0
      %v665 = vadd.f32 0.0, %v664
      %v666 = vpop.f32.mrf.mxu0
      %667 = vmatprep.mubr.f32.mxu0 0.0
      %668 = vmatmul.mubr.f32.gmra.mxu0 %v498
      %v669 = vpop.f32.mrf.mxu0
      %v670 = vadd.f32 0.0, %v669
      %v671 = vpop.f32.mrf.mxu0
      %672 = vmatprep.mubr.f32.mxu0 0.0
      %673 = vmatmul.mubr.f32.gmra.mxu0 %v501
      %v674 = vpop.f32.mrf.mxu0
      %v675 = vadd.f32 0.0, %v674
      %v676 = vpop.f32.mrf.mxu0
      %677 = vmatprep.mubr.f32.mxu0 0.0
      %678 = vmatmul.mubr.f32.gmra.mxu0 %v504
      %v679 = vpop.f32.mrf.mxu0
      %v680 = vadd.f32 0.0, %v679
      %v681 = vpop.f32.mrf.mxu0
      %682 = vmatprep.mubr.f32.mxu0 0.0
      %683 = vmatmul.mubr.f32.gmra.mxu0 %v507
      %v684 = vpop.f32.mrf.mxu0
      %v685 = vadd.f32 0.0, %v684
      %v686 = vpop.f32.mrf.mxu0
      %687 = vmatprep.mubr.f32.mxu0 0.0
      %688 = vmatmul.mubr.f32.gmra.mxu0 %v510
      %v689 = vpop.f32.mrf.mxu0
      %v690 = vadd.f32 0.0, %v689
      %v691 = vpop.f32.mrf.mxu0
      %692 = vmatprep.mubr.f32.mxu0 0.0
      %693 = vmatmul.mubr.f32.gmra.mxu0 %v513
      %v694 = vpop.f32.mrf.mxu0
      %v695 = vadd.f32 0.0, %v694
      %v696 = vpop.f32.mrf.mxu0
      %697 = vmatprep.mubr.f32.mxu0 0.0
      %698 = vmatmul.mubr.f32.gmra.mxu0 %v516
      %v699 = vpop.f32.mrf.mxu0
      %v700 = vadd.f32 0.0, %v699
      %v701 = vpop.f32.mrf.mxu0
      %702 = vmatprep.mubr.f32.mxu0 0.0
      %703 = vmatmul.mubr.f32.gmra.mxu0 %v519
      %v704 = vpop.f32.mrf.mxu0
      %v705 = vadd.f32 0.0, %v704
      %v706 = vpop.f32.mrf.mxu0
      %707 = vmatprep.mubr.f32.mxu0 0.0
      %708 = vmatmul.mubr.f32.gmra.mxu0 %v522
      %v709 = vpop.f32.mrf.mxu0
      %v710 = vadd.f32 0.0, %v709
      %v711 = vpop.f32.mrf.mxu0
      %712 = vmatprep.mubr.f32.mxu0 0.0
      %713 = vmatmul.mubr.f32.gmra.mxu0 %v525
      %v714 = vpop.f32.mrf.mxu0
      %v715 = vadd.f32 0.0, %v714
      %v716 = vpop.f32.mrf.mxu0
      %717 = vmatprep.mubr.f32.mxu0 0.0
      %718 = vmatmul.mubr.f32.gmra.mxu0 %v528
      %v719 = vpop.f32.mrf.mxu0
      %v720 = vadd.f32 0.0, %v719
      %v721 = vpop.f32.mrf.mxu0
      %722 = vmatprep.mubr.f32.mxu0 0.0
      %723 = vmatmul.mubr.f32.gmra.mxu0 %v531
      %v724 = vpop.f32.mrf.mxu0
      %v725 = vadd.f32 0.0, %v724
      %v726 = vpop.f32.mrf.mxu0
      %727 = vmatprep.mubr.f32.mxu0 0.0
      %728 = vmatmul.mubr.f32.gmra.mxu0 %v534
      %v729 = vpop.f32.mrf.mxu0
      %v730 = vadd.f32 0.0, %v729
      %v731 = vpop.f32.mrf.mxu0
      %732 = vmatprep.mubr.f32.mxu0 0.0
      %733 = vmatmul.mubr.f32.gmra.mxu0 %v537
      %v734 = vpop.f32.mrf.mxu0
      %v735 = vadd.f32 0.0, %v734
      %v736 = vpop.f32.mrf.mxu0
      %737 = vmatprep.mubr.f32.mxu0 0.0
      %738 = vmatmul.mubr.f32.gmra.mxu0 %v540
      %v739 = vpop.f32.mrf.mxu0
      %v740 = vadd.f32 0.0, %v739
      %v741 = vpop.f32.mrf.mxu0
      %742 = vmatprep.mubr.f32.mxu0 0.0
      %743 = vmatmul.mubr.f32.gmra.mxu0 %v543
      %v744 = vpop.f32.mrf.mxu0
      %v745 = vadd.f32 0.0, %v744
      %v746 = vpop.f32.mrf.mxu0
      %747 = vmatprep.mubr.f32.mxu0 0.0
      %748 = vmatmul.mubr.f32.gmra.mxu0 %v546
      %v749 = vpop.f32.mrf.mxu0
      %v750 = vadd.f32 0.0, %v749
      %v751 = vpop.f32.mrf.mxu0
      %752 = vmatprep.mubr.f32.mxu0 0.0
      %753 = vmatmul.mubr.f32.gmra.mxu0 %v549
      %v754 = vpop.f32.mrf.mxu0
      %v755 = vadd.f32 0.0, %v754
      %v756 = vpop.f32.mrf.mxu0
      %757 = vmatprep.mubr.f32.mxu0 0.0
      %758 = vmatmul.mubr.f32.gmra.mxu0 %v552
      %v759 = vpop.f32.mrf.mxu0
      %v760 = vadd.f32 0.0, %v759
      %v761 = vpop.f32.mrf.mxu0
      %762 = vmatprep.mubr.f32.mxu0 0.0
      %763 = vmatmul.mubr.f32.gmra.mxu0 %v555
      %v764 = vpop.f32.mrf.mxu0
      %v765 = vadd.f32 0.0, %v764
      %v766 = vpop.f32.mrf.mxu0
      %767 = vmatprep.mubr.f32.mxu0 0.0
      %768 = vmatmul.mubr.f32.gmra.mxu0 %v558
      %v769 = vpop.f32.mrf.mxu0
      %v770 = vadd.f32 0.0, %v769
      %v771 = vpop.f32.mrf.mxu0
      %772 = vmatprep.mubr.f32.mxu0 0.0
      %773 = vmatmul.mubr.f32.gmra.mxu0 %v561
      %v774 = vpop.f32.mrf.mxu0
      %v775 = vadd.f32 0.0, %v774
      %v776 = vpop.f32.mrf.mxu0
      %777 = vmatprep.mubr.f32.mxu0 0.0
      %778 = vmatmul.mubr.f32.gmra.mxu0 %v564
      %v779 = vpop.f32.mrf.mxu0
      %v780 = vadd.f32 0.0, %v779
      %v781 = vpop.f32.mrf.mxu0
      %782 = vmatprep.mubr.f32.mxu0 0.0
      %783 = vmatmul.mubr.f32.gmra.mxu0 %v567
      %v784 = vpop.f32.mrf.mxu0
      %v785 = vadd.f32 0.0, %v784
      %v786 = vpop.f32.mrf.mxu0
      %787 = vmatprep.mubr.f32.mxu0 0.0
      %788 = vmatmul.mubr.f32.gmra.mxu0 %v570
      %v789 = vpop.f32.mrf.mxu0
      %v790 = vadd.f32 0.0, %v789
      %v791 = vpop.f32.mrf.mxu0
      %792 = vmatprep.mubr.f32.mxu0 0.0
      %793 = vmatmul.mubr.f32.gmra.mxu0 %v573
      %v794 = vpop.f32.mrf.mxu0
      %v795 = vadd.f32 0.0, %v794
      %v796 = vpop.f32.mrf.mxu0
      %797 = vmatprep.mubr.f32.mxu0 0.0
      %798 = vmatmul.mubr.f32.gmra.mxu0 %v576
      %v799 = vpop.f32.mrf.mxu0
      %v800 = vadd.f32 0.0, %v799
      %v801 = vpop.f32.mrf.mxu0
      %802 = vdwg.mxu0
      %vm803 = vcmask 523264
      %v804 = vsel %vm803, %v645, -inf
      %805 = vmax.xlane.f32.xlu0 %v804
      %v806 = vpop.xlane.xlu0 %805
      %v807 = vsel %vm803, %v650, -inf
      %808 = vmax.xlane.f32.xlu0 %v807
      %v809 = vpop.xlane.xlu0 %808
      %v810 = vsel %vm803, %v655, -inf
      %811 = vmax.xlane.f32.xlu0 %v810
      %v812 = vpop.xlane.xlu0 %811
      %v813 = vsel %vm803, %v660, -inf
      %814 = vmax.xlane.f32.xlu0 %v813
      %v815 = vpop.xlane.xlu0 %814
      %v816 = vsel %vm803, %v665, -inf
      %817 = vmax.xlane.f32.xlu0 %v816
      %v818 = vpop.xlane.xlu0 %817
      %v819 = vsel %vm803, %v670, -inf
      %820 = vmax.xlane.f32.xlu0 %v819
      %v821 = vpop.xlane.xlu0 %820
      %v822 = vsel %vm803, %v675, -inf
      %823 = vmax.xlane.f32.xlu0 %v822
      %v824 = vpop.xlane.xlu0 %823
      %v825 = vsel %vm803, %v680, -inf
      %826 = vmax.xlane.f32.xlu0 %v825
      %v827 = vpop.xlane.xlu0 %826
      %v828 = vsel %vm803, %v685, -inf
      %829 = vmax.xlane.f32.xlu0 %v828
      %v830 = vpop.xlane.xlu0 %829
      %v831 = vsel %vm803, %v690, -inf
      %832 = vmax.xlane.f32.xlu0 %v831
      %v833 = vpop.xlane.xlu0 %832
      %v834 = vsel %vm803, %v695, -inf
      %835 = vmax.xlane.f32.xlu0 %v834
      %v836 = vpop.xlane.xlu0 %835
      %v837 = vsel %vm803, %v700, -inf
      %838 = vmax.xlane.f32.xlu0 %v837
      %v839 = vpop.xlane.xlu0 %838
      %v840 = vsel %vm803, %v705, -inf
      %841 = vmax.xlane.f32.xlu0 %v840
      %v842 = vpop.xlane.xlu0 %841
      %v843 = vsel %vm803, %v710, -inf
      %844 = vmax.xlane.f32.xlu0 %v843
      %v845 = vpop.xlane.xlu0 %844
      %v846 = vsel %vm803, %v715, -inf
      %847 = vmax.xlane.f32.xlu0 %v846
      %v848 = vpop.xlane.xlu0 %847
      %v849 = vsel %vm803, %v720, -inf
      %850 = vmax.xlane.f32.xlu0 %v849
      %v851 = vpop.xlane.xlu0 %850
      %v852 = vsel %vm803, %v725, -inf
      %853 = vmax.xlane.f32.xlu0 %v852
      %v854 = vpop.xlane.xlu0 %853
      %v855 = vsel %vm803, %v730, -inf
      %856 = vmax.xlane.f32.xlu0 %v855
      %v857 = vpop.xlane.xlu0 %856
      %v858 = vsel %vm803, %v735, -inf
      %859 = vmax.xlane.f32.xlu0 %v858
      %v860 = vpop.xlane.xlu0 %859
      %v861 = vsel %vm803, %v740, -inf
      %862 = vmax.xlane.f32.xlu0 %v861
      %v863 = vpop.xlane.xlu0 %862
      %v864 = vsel %vm803, %v745, -inf
      %865 = vmax.xlane.f32.xlu0 %v864
      %v866 = vpop.xlane.xlu0 %865
      %v867 = vsel %vm803, %v750, -inf
      %868 = vmax.xlane.f32.xlu0 %v867
      %v869 = vpop.xlane.xlu0 %868
      %v870 = vsel %vm803, %v755, -inf
      %871 = vmax.xlane.f32.xlu0 %v870
      %v872 = vpop.xlane.xlu0 %871
      %v873 = vsel %vm803, %v760, -inf
      %874 = vmax.xlane.f32.xlu0 %v873
      %v875 = vpop.xlane.xlu0 %874
      %v876 = vsel %vm803, %v765, -inf
      %877 = vmax.xlane.f32.xlu0 %v876
      %v878 = vpop.xlane.xlu0 %877
      %v879 = vsel %vm803, %v770, -inf
      %880 = vmax.xlane.f32.xlu0 %v879
      %v881 = vpop.xlane.xlu0 %880
      %v882 = vsel %vm803, %v775, -inf
      %883 = vmax.xlane.f32.xlu0 %v882
      %v884 = vpop.xlane.xlu0 %883
      %v885 = vsel %vm803, %v780, -inf
      %886 = vmax.xlane.f32.xlu0 %v885
      %v887 = vpop.xlane.xlu0 %886
      %v888 = vsel %vm803, %v785, -inf
      %889 = vmax.xlane.f32.xlu0 %v888
      %v890 = vpop.xlane.xlu0 %889
      %v891 = vsel %vm803, %v790, -inf
      %892 = vmax.xlane.f32.xlu0 %v891
      %v893 = vpop.xlane.xlu0 %892
      %v894 = vsel %vm803, %v795, -inf
      %895 = vmax.xlane.f32.xlu0 %v894
      %v896 = vpop.xlane.xlu0 %895
      %v897 = vsel %vm803, %v800, -inf
      %898 = vmax.xlane.f32.xlu0 %v897
      %v899 = vpop.xlane.xlu0 %898
      %v900 = vsub.f32 %v645, %v806
      %v901 = vsub.f32 %v650, %v809
      %v902 = vsub.f32 %v655, %v812
      %v903 = vsub.f32 %v660, %v815
      %v904 = vsub.f32 %v665, %v818
      %v905 = vsub.f32 %v670, %v821
      %v906 = vsub.f32 %v675, %v824
      %v907 = vsub.f32 %v680, %v827
      %v908 = vsub.f32 %v685, %v830
      %v909 = vsub.f32 %v690, %v833
      %v910 = vsub.f32 %v695, %v836
      %v911 = vsub.f32 %v700, %v839
      %v912 = vsub.f32 %v705, %v842
      %v913 = vsub.f32 %v710, %v845
      %v914 = vsub.f32 %v715, %v848
      %v915 = vsub.f32 %v720, %v851
      %v916 = vsub.f32 %v725, %v854
      %v917 = vsub.f32 %v730, %v857
      %v918 = vsub.f32 %v735, %v860
      %v919 = vsub.f32 %v740, %v863
      %v920 = vsub.f32 %v745, %v866
      %v921 = vsub.f32 %v750, %v869
      %v922 = vsub.f32 %v755, %v872
      %v923 = vsub.f32 %v760, %v875
      %v924 = vsub.f32 %v765, %v878
      %v925 = vsub.f32 %v770, %v881
      %v926 = vsub.f32 %v775, %v884
      %v927 = vsub.f32 %v780, %v887
      %v928 = vsub.f32 %v785, %v890
      %v929 = vsub.f32 %v790, %v893
      %v930 = vsub.f32 %v795, %v896
      %v931 = vsub.f32 %v800, %v899
      %v932 = vmul.f32 %v900, 1.442695
      %v933 = vpow.pop %v932
      %v934 = vmul.f32 %v901, 1.442695
      %v935 = vpow.pop %v934
      %v936 = vmul.f32 %v902, 1.442695
      %v937 = vpow.pop %v936
      %v938 = vmul.f32 %v903, 1.442695
      %v939 = vpow.pop %v938
      %v940 = vmul.f32 %v904, 1.442695
      %v941 = vpow.pop %v940
      %v942 = vmul.f32 %v905, 1.442695
      %v943 = vpow.pop %v942
      %v944 = vmul.f32 %v906, 1.442695
      %v945 = vpow.pop %v944
      %v946 = vmul.f32 %v907, 1.442695
      %v947 = vpow.pop %v946
      %v948 = vmul.f32 %v908, 1.442695
      %v949 = vpow.pop %v948
      %v950 = vmul.f32 %v909, 1.442695
      %v951 = vpow.pop %v950
      %v952 = vmul.f32 %v910, 1.442695
      %v953 = vpow.pop %v952
      %v954 = vmul.f32 %v911, 1.442695
      %v955 = vpow.pop %v954
      %v956 = vmul.f32 %v912, 1.442695
      %v957 = vpow.pop %v956
      %v958 = vmul.f32 %v913, 1.442695
      %v959 = vpow.pop %v958
      %v960 = vmul.f32 %v914, 1.442695
      %v961 = vpow.pop %v960
      %v962 = vmul.f32 %v915, 1.442695
      %v963 = vpow.pop %v962
      %v964 = vmul.f32 %v916, 1.442695
      %v965 = vpow.pop %v964
      %v966 = vmul.f32 %v917, 1.442695
      %v967 = vpow.pop %v966
      %v968 = vmul.f32 %v918, 1.442695
      %v969 = vpow.pop %v968
      %v970 = vmul.f32 %v919, 1.442695
      %v971 = vpow.pop %v970
      %v972 = vmul.f32 %v920, 1.442695
      %v973 = vpow.pop %v972
      %v974 = vmul.f32 %v921, 1.442695
      %v975 = vpow.pop %v974
      %v976 = vmul.f32 %v922, 1.442695
      %v977 = vpow.pop %v976
      %v978 = vmul.f32 %v923, 1.442695
      %v979 = vpow.pop %v978
      %v980 = vmul.f32 %v924, 1.442695
      %v981 = vpow.pop %v980
      %v982 = vmul.f32 %v925, 1.442695
      %v983 = vpow.pop %v982
      %v984 = vmul.f32 %v926, 1.442695
      %v985 = vpow.pop %v984
      %v986 = vmul.f32 %v927, 1.442695
      %v987 = vpow.pop %v986
      %v988 = vmul.f32 %v928, 1.442695
      %v989 = vpow.pop %v988
      %v990 = vmul.f32 %v929, 1.442695
      %v991 = vpow.pop %v990
      %v992 = vmul.f32 %v930, 1.442695
      %v993 = vpow.pop %v992
      %v994 = vmul.f32 %v931, 1.442695
      %v995 = vpow.pop %v994
      %v996 = vsel %vm803, %v933, 0.0
      %997 = vadd.xlane.f32.xlu0 %v996
      %v998 = vpop.xlane.xlu0 %997
      %v999 = vsel %vm803, %v935, 0.0
      %1000 = vadd.xlane.f32.xlu0 %v999
      %v1001 = vpop.xlane.xlu0 %1000
      %v1002 = vsel %vm803, %v937, 0.0
      %1003 = vadd.xlane.f32.xlu0 %v1002
      %v1004 = vpop.xlane.xlu0 %1003
      %v1005 = vsel %vm803, %v939, 0.0
      %1006 = vadd.xlane.f32.xlu0 %v1005
      %v1007 = vpop.xlane.xlu0 %1006
      %v1008 = vsel %vm803, %v941, 0.0
      %1009 = vadd.xlane.f32.xlu0 %v1008
      %v1010 = vpop.xlane.xlu0 %1009
      %v1011 = vsel %vm803, %v943, 0.0
      %1012 = vadd.xlane.f32.xlu0 %v1011
      %v1013 = vpop.xlane.xlu0 %1012
      %v1014 = vsel %vm803, %v945, 0.0
      %1015 = vadd.xlane.f32.xlu0 %v1014
      %v1016 = vpop.xlane.xlu0 %1015
      %v1017 = vsel %vm803, %v947, 0.0
      %1018 = vadd.xlane.f32.xlu0 %v1017
      %v1019 = vpop.xlane.xlu0 %1018
      %v1020 = vsel %vm803, %v949, 0.0
      %1021 = vadd.xlane.f32.xlu0 %v1020
      %v1022 = vpop.xlane.xlu0 %1021
      %v1023 = vsel %vm803, %v951, 0.0
      %1024 = vadd.xlane.f32.xlu0 %v1023
      %v1025 = vpop.xlane.xlu0 %1024
      %v1026 = vsel %vm803, %v953, 0.0
      %1027 = vadd.xlane.f32.xlu0 %v1026
      %v1028 = vpop.xlane.xlu0 %1027
      %v1029 = vsel %vm803, %v955, 0.0
      %1030 = vadd.xlane.f32.xlu0 %v1029
      %v1031 = vpop.xlane.xlu0 %1030
      %v1032 = vsel %vm803, %v957, 0.0
      %1033 = vadd.xlane.f32.xlu0 %v1032
      %v1034 = vpop.xlane.xlu0 %1033
      %v1035 = vsel %vm803, %v959, 0.0
      %1036 = vadd.xlane.f32.xlu0 %v1035
      %v1037 = vpop.xlane.xlu0 %1036
      %v1038 = vsel %vm803, %v961, 0.0
      %1039 = vadd.xlane.f32.xlu0 %v1038
      %v1040 = vpop.xlane.xlu0 %1039
      %v1041 = vsel %vm803, %v963, 0.0
      %1042 = vadd.xlane.f32.xlu0 %v1041
      %v1043 = vpop.xlane.xlu0 %1042
      %v1044 = vsel %vm803, %v965, 0.0
      %1045 = vadd.xlane.f32.xlu0 %v1044
      %v1046 = vpop.xlane.xlu0 %1045
      %v1047 = vsel %vm803, %v967, 0.0
      %1048 = vadd.xlane.f32.xlu0 %v1047
      %v1049 = vpop.xlane.xlu0 %1048
      %v1050 = vsel %vm803, %v969, 0.0
      %1051 = vadd.xlane.f32.xlu0 %v1050
      %v1052 = vpop.xlane.xlu0 %1051
      %v1053 = vsel %vm803, %v971, 0.0
      %1054 = vadd.xlane.f32.xlu0 %v1053
      %v1055 = vpop.xlane.xlu0 %1054
      %v1056 = vsel %vm803, %v973, 0.0
      %1057 = vadd.xlane.f32.xlu0 %v1056
      %v1058 = vpop.xlane.xlu0 %1057
      %v1059 = vsel %vm803, %v975, 0.0
      %1060 = vadd.xlane.f32.xlu0 %v1059
      %v1061 = vpop.xlane.xlu0 %1060
      %v1062 = vsel %vm803, %v977, 0.0
      %1063 = vadd.xlane.f32.xlu0 %v1062
      %v1064 = vpop.xlane.xlu0 %1063
      %v1065 = vsel %vm803, %v979, 0.0
      %1066 = vadd.xlane.f32.xlu0 %v1065
      %v1067 = vpop.xlane.xlu0 %1066
      %v1068 = vsel %vm803, %v981, 0.0
      %1069 = vadd.xlane.f32.xlu0 %v1068
      %v1070 = vpop.xlane.xlu0 %1069
      %v1071 = vsel %vm803, %v983, 0.0
      %1072 = vadd.xlane.f32.xlu0 %v1071
      %v1073 = vpop.xlane.xlu0 %1072
      %v1074 = vsel %vm803, %v985, 0.0
      %1075 = vadd.xlane.f32.xlu0 %v1074
      %v1076 = vpop.xlane.xlu0 %1075
      %v1077 = vsel %vm803, %v987, 0.0
      %1078 = vadd.xlane.f32.xlu0 %v1077
      %v1079 = vpop.xlane.xlu0 %1078
      %v1080 = vsel %vm803, %v989, 0.0
      %1081 = vadd.xlane.f32.xlu0 %v1080
      %v1082 = vpop.xlane.xlu0 %1081
      %v1083 = vsel %vm803, %v991, 0.0
      %1084 = vadd.xlane.f32.xlu0 %v1083
      %v1085 = vpop.xlane.xlu0 %1084
      %v1086 = vsel %vm803, %v993, 0.0
      %1087 = vadd.xlane.f32.xlu0 %v1086
      %v1088 = vpop.xlane.xlu0 %1087
      %v1089 = vsel %vm803, %v995, 0.0
      %1090 = vadd.xlane.f32.xlu0 %v1089
      %v1091 = vpop.xlane.xlu0 %1090
      %v1092 = vrcp.pop %v998
      %v1093 = vrcp.pop %v1001
      %v1094 = vrcp.pop %v1004
      %v1095 = vrcp.pop %v1007
      %v1096 = vrcp.pop %v1010
      %v1097 = vrcp.pop %v1013
      %v1098 = vrcp.pop %v1016
      %v1099 = vrcp.pop %v1019
      %v1100 = vrcp.pop %v1022
      %v1101 = vrcp.pop %v1025
      %v1102 = vrcp.pop %v1028
      %v1103 = vrcp.pop %v1031
      %v1104 = vrcp.pop %v1034
      %v1105 = vrcp.pop %v1037
      %v1106 = vrcp.pop %v1040
      %v1107 = vrcp.pop %v1043
      %v1108 = vrcp.pop %v1046
      %v1109 = vrcp.pop %v1049
      %v1110 = vrcp.pop %v1052
      %v1111 = vrcp.pop %v1055
      %v1112 = vrcp.pop %v1058
      %v1113 = vrcp.pop %v1061
      %v1114 = vrcp.pop %v1064
      %v1115 = vrcp.pop %v1067
      %v1116 = vrcp.pop %v1070
      %v1117 = vrcp.pop %v1073
      %v1118 = vrcp.pop %v1076
      %v1119 = vrcp.pop %v1079
      %v1120 = vrcp.pop %v1082
      %v1121 = vrcp.pop %v1085
      %v1122 = vrcp.pop %v1088
      %v1123 = vrcp.pop %v1091
      %v1124 = vmul.f32 %v933, %v1092
      %v1125 = vmul.f32 %v935, %v1093
      %v1126 = vmul.f32 %v937, %v1094
      %v1127 = vmul.f32 %v939, %v1095
      %v1128 = vmul.f32 %v941, %v1096
      %v1129 = vmul.f32 %v943, %v1097
      %v1130 = vmul.f32 %v945, %v1098
      %v1131 = vmul.f32 %v947, %v1099
      %v1132 = vmul.f32 %v949, %v1100
      %v1133 = vmul.f32 %v951, %v1101
      %v1134 = vmul.f32 %v953, %v1102
      %v1135 = vmul.f32 %v955, %v1103
      %v1136 = vmul.f32 %v957, %v1104
      %v1137 = vmul.f32 %v959, %v1105
      %v1138 = vmul.f32 %v961, %v1106
      %v1139 = vmul.f32 %v963, %v1107
      %v1140 = vmul.f32 %v965, %v1108
      %v1141 = vmul.f32 %v967, %v1109
      %v1142 = vmul.f32 %v969, %v1110
      %v1143 = vmul.f32 %v971, %v1111
      %v1144 = vmul.f32 %v973, %v1112
      %v1145 = vmul.f32 %v975, %v1113
      %v1146 = vmul.f32 %v977, %v1114
      %v1147 = vmul.f32 %v979, %v1115
      %v1148 = vmul.f32 %v981, %v1116
      %v1149 = vmul.f32 %v983, %v1117
      %v1150 = vmul.f32 %v985, %v1118
      %v1151 = vmul.f32 %v987, %v1119
      %v1152 = vmul.f32 %v989, %v1120
      %v1153 = vmul.f32 %v991, %v1121
      %v1154 = vmul.f32 %v993, %v1122
      %v1155 = vmul.f32 %v995, %v1123
      %v1156 = vld [vmem:[%s3] sm:$0xff]
      %v1157 = vld [vmem:[%s3 + $0x8] sm:$0xff]
      %v1158 = vld [vmem:[%s3 + $0x10] sm:$0xff]
      %v1159 = vld [vmem:[%s3 + $0x18] sm:$0xff]
      %v1160 = vld [vmem:[%s3 + $0x20] sm:$0xff]
      %v1161 = vld [vmem:[%s3 + $0x28] sm:$0xff]
      %v1162 = vld [vmem:[%s3 + $0x30] sm:$0xff]
      %v1163 = vld [vmem:[%s3 + $0x38] sm:$0xff]
      %v1165 = vsel %vm803, %v1124, 0
      %v1168 = vsel %vm803, %v1125, 0
      %v1171 = vsel %vm803, %v1126, 0
      %v1174 = vsel %vm803, %v1127, 0
      %v1177 = vsel %vm803, %v1128, 0
      %v1180 = vsel %vm803, %v1129, 0
      %v1183 = vsel %vm803, %v1130, 0
      %v1186 = vsel %vm803, %v1131, 0
      %v1189 = vsel %vm803, %v1132, 0
      %v1192 = vsel %vm803, %v1133, 0
      %v1195 = vsel %vm803, %v1134, 0
      %v1198 = vsel %vm803, %v1135, 0
      %v1201 = vsel %vm803, %v1136, 0
      %v1204 = vsel %vm803, %v1137, 0
      %v1207 = vsel %vm803, %v1138, 0
      %v1210 = vsel %vm803, %v1139, 0
      %v1213 = vsel %vm803, %v1140, 0
      %v1216 = vsel %vm803, %v1141, 0
      %v1219 = vsel %vm803, %v1142, 0
      %v1222 = vsel %vm803, %v1143, 0
      %v1225 = vsel %vm803, %v1144, 0
      %v1228 = vsel %vm803, %v1145, 0
      %v1231 = vsel %vm803, %v1146, 0
      %v1234 = vsel %vm803, %v1147, 0
      %v1237 = vsel %vm803, %v1148, 0
      %v1240 = vsel %vm803, %v1149, 0
      %v1243 = vsel %vm803, %v1150, 0
      %v1246 = vsel %vm803, %v1151, 0
      %v1249 = vsel %vm803, %v1152, 0
      %v1252 = vsel %vm803, %v1153, 0
      %v1255 = vsel %vm803, %v1154, 0
      %v1258 = vsel %vm803, %v1155, 0
      %1260 = vmatprep.subr.mxu0 0.0
      %1261 = vmatpush1.msra.mxu0 0.0
      %1262 = vmatprep.subr.mxu0 0.0
      %1263 = vmatpush1.msra.mxu0 0.0
      %1264 = vmatprep.subr.mxu0 0.0
      %1265 = vmatpush1.msra.mxu0 0.0
      %1266 = vmatprep.subr.mxu0 0.0
      %1267 = vmatpush1.msra.mxu0 0.0
      %1268 = vmatprep.subr.mxu0 0.0
      %1269 = vmatpush1.msra.mxu0 0.0
      %1270 = vmatprep.subr.mxu0 0.0
      %1271 = vmatpush1.msra.mxu0 0.0
      %1272 = vmatprep.subr.mxu0 0.0
      %1273 = vmatpush1.msra.mxu0 0.0
      %1274 = vmatprep.subr.mxu0 0.0
      %1275 = vmatpush1.msra.mxu0 0.0
      %1276 = vmatprep.subr.mxu0 0.0
      %1277 = vmatpush1.msra.mxu0 %v1163
      %1278 = vmatprep.subr.mxu0 0.0
      %1279 = vmatpush1.msra.mxu0 %v1162
      %1280 = vmatprep.subr.mxu0 0.0
      %1281 = vmatpush1.msra.mxu0 %v1161
      %1282 = vmatprep.subr.mxu0 0.0
      %1283 = vmatpush1.msra.mxu0 %v1160
      %1284 = vmatprep.subr.mxu0 0.0
      %1285 = vmatpush1.msra.mxu0 %v1159
      %1286 = vmatprep.subr.mxu0 0.0
      %1287 = vmatpush1.msra.mxu0 %v1158
      %1288 = vmatprep.subr.mxu0 0.0
      %1289 = vmatpush1.msra.mxu0 %v1157
      %1290 = vmatprep.subr.mxu0 0.0
      %1291 = vmatpush1.msra.mxu0 %v1156
      %1292 = vmatprep.subr.mxu0 0.0
      %1293 = vmatpush2.msra.mxu0 0.0
      %1294 = vmatprep.subr.mxu0 0.0
      %1295 = vmatpush2.msra.mxu0 0.0
      %1296 = vmatprep.subr.mxu0 0.0
      %1297 = vmatpush2.msra.mxu0 0.0
      %1298 = vmatprep.subr.mxu0 0.0
      %1299 = vmatpush2.msra.mxu0 0.0
      %1300 = vmatprep.subr.mxu0 0.0
      %1301 = vmatpush2.msra.mxu0 0.0
      %1302 = vmatprep.subr.mxu0 0.0
      %1303 = vmatpush2.msra.mxu0 0.0
      %1304 = vmatprep.subr.mxu0 0.0
      %1305 = vmatpush2.msra.mxu0 0.0
      %1306 = vmatprep.subr.mxu0 0.0
      %1307 = vmatpush2.msra.mxu0 0.0
      %1308 = vmatprep.subr.mxu0 0.0
      %1309 = vmatpush2.msra.mxu0 0.0
      %1310 = vmatprep.subr.mxu0 0.0
      %1311 = vmatpush2.msra.mxu0 0.0
      %1312 = vmatprep.subr.mxu0 0.0
      %1313 = vmatpush2.msra.mxu0 0.0
      %1314 = vmatprep.subr.mxu0 0.0
      %1315 = vmatpush2.msra.mxu0 0.0
      %1316 = vmatprep.subr.mxu0 0.0
      %1317 = vmatpush2.msra.mxu0 0.0
      %1318 = vmatprep.subr.mxu0 0.0
      %1319 = vmatpush2.msra.mxu0 0.0
      %1320 = vmatprep.subr.mxu0 0.0
      %1321 = vmatpush2.msra.mxu0 0.0
      %1322 = vmatprep.subr.mxu0 0.0
      %1323 = vmatpush2.msra.mxu0 0.0
      %1324 = vmatprep.mubr.f32.mxu0 0.0
      %1325 = vmatmul.mubr.f32.gmra.mxu0 %v1165
      %v1326 = vpop.f32.mrf.mxu0
      %v1327 = vadd.f32 0.0, %v1326
      %v1328 = vpop.f32.mrf.mxu0
      %1329 = vmatprep.mubr.f32.mxu0 0.0
      %1330 = vmatmul.mubr.f32.gmra.mxu0 %v1168
      %v1331 = vpop.f32.mrf.mxu0
      %v1332 = vadd.f32 0.0, %v1331
      %v1333 = vpop.f32.mrf.mxu0
      %1334 = vmatprep.mubr.f32.mxu0 0.0
      %1335 = vmatmul.mubr.f32.gmra.mxu0 %v1171
      %v1336 = vpop.f32.mrf.mxu0
      %v1337 = vadd.f32 0.0, %v1336
      %v1338 = vpop.f32.mrf.mxu0
      %1339 = vmatprep.mubr.f32.mxu0 0.0
      %1340 = vmatmul.mubr.f32.gmra.mxu0 %v1174
      %v1341 = vpop.f32.mrf.mxu0
      %v1342 = vadd.f32 0.0, %v1341
      %v1343 = vpop.f32.mrf.mxu0
      %1344 = vmatprep.mubr.f32.mxu0 0.0
      %1345 = vmatmul.mubr.f32.gmra.mxu0 %v1177
      %v1346 = vpop.f32.mrf.mxu0
      %v1347 = vadd.f32 0.0, %v1346
      %v1348 = vpop.f32.mrf.mxu0
      %1349 = vmatprep.mubr.f32.mxu0 0.0
      %1350 = vmatmul.mubr.f32.gmra.mxu0 %v1180
      %v1351 = vpop.f32.mrf.mxu0
      %v1352 = vadd.f32 0.0, %v1351
      %v1353 = vpop.f32.mrf.mxu0
      %1354 = vmatprep.mubr.f32.mxu0 0.0
      %1355 = vmatmul.mubr.f32.gmra.mxu0 %v1183
      %v1356 = vpop.f32.mrf.mxu0
      %v1357 = vadd.f32 0.0, %v1356
      %v1358 = vpop.f32.mrf.mxu0
      %1359 = vmatprep.mubr.f32.mxu0 0.0
      %1360 = vmatmul.mubr.f32.gmra.mxu0 %v1186
      %v1361 = vpop.f32.mrf.mxu0
      %v1362 = vadd.f32 0.0, %v1361
      %v1363 = vpop.f32.mrf.mxu0
      %1364 = vmatprep.mubr.f32.mxu0 0.0
      %1365 = vmatmul.mubr.f32.gmra.mxu0 %v1189
      %v1366 = vpop.f32.mrf.mxu0
      %v1367 = vadd.f32 0.0, %v1366
      %v1368 = vpop.f32.mrf.mxu0
      %1369 = vmatprep.mubr.f32.mxu0 0.0
      %1370 = vmatmul.mubr.f32.gmra.mxu0 %v1192
      %v1371 = vpop.f32.mrf.mxu0
      %v1372 = vadd.f32 0.0, %v1371
      %v1373 = vpop.f32.mrf.mxu0
      %1374 = vmatprep.mubr.f32.mxu0 0.0
      %1375 = vmatmul.mubr.f32.gmra.mxu0 %v1195
      %v1376 = vpop.f32.mrf.mxu0
      %v1377 = vadd.f32 0.0, %v1376
      %v1378 = vpop.f32.mrf.mxu0
      %1379 = vmatprep.mubr.f32.mxu0 0.0
      %1380 = vmatmul.mubr.f32.gmra.mxu0 %v1198
      %v1381 = vpop.f32.mrf.mxu0
      %v1382 = vadd.f32 0.0, %v1381
      %v1383 = vpop.f32.mrf.mxu0
      %1384 = vmatprep.mubr.f32.mxu0 0.0
      %1385 = vmatmul.mubr.f32.gmra.mxu0 %v1201
      %v1386 = vpop.f32.mrf.mxu0
      %v1387 = vadd.f32 0.0, %v1386
      %v1388 = vpop.f32.mrf.mxu0
      %1389 = vmatprep.mubr.f32.mxu0 0.0
      %1390 = vmatmul.mubr.f32.gmra.mxu0 %v1204
      %v1391 = vpop.f32.mrf.mxu0
      %v1392 = vadd.f32 0.0, %v1391
      %v1393 = vpop.f32.mrf.mxu0
      %1394 = vmatprep.mubr.f32.mxu0 0.0
      %1395 = vmatmul.mubr.f32.gmra.mxu0 %v1207
      %v1396 = vpop.f32.mrf.mxu0
      %v1397 = vadd.f32 0.0, %v1396
      %v1398 = vpop.f32.mrf.mxu0
      %1399 = vmatprep.mubr.f32.mxu0 0.0
      %1400 = vmatmul.mubr.f32.gmra.mxu0 %v1210
      %v1401 = vpop.f32.mrf.mxu0
      %v1402 = vadd.f32 0.0, %v1401
      %v1403 = vpop.f32.mrf.mxu0
      %1404 = vmatprep.mubr.f32.mxu0 0.0
      %1405 = vmatmul.mubr.f32.gmra.mxu0 %v1213
      %v1406 = vpop.f32.mrf.mxu0
      %v1407 = vadd.f32 0.0, %v1406
      %v1408 = vpop.f32.mrf.mxu0
      %1409 = vmatprep.mubr.f32.mxu0 0.0
      %1410 = vmatmul.mubr.f32.gmra.mxu0 %v1216
      %v1411 = vpop.f32.mrf.mxu0
      %v1412 = vadd.f32 0.0, %v1411
      %v1413 = vpop.f32.mrf.mxu0
      %1414 = vmatprep.mubr.f32.mxu0 0.0
      %1415 = vmatmul.mubr.f32.gmra.mxu0 %v1219
      %v1416 = vpop.f32.mrf.mxu0
      %v1417 = vadd.f32 0.0, %v1416
      %v1418 = vpop.f32.mrf.mxu0
      %1419 = vmatprep.mubr.f32.mxu0 0.0
      %1420 = vmatmul.mubr.f32.gmra.mxu0 %v1222
      %v1421 = vpop.f32.mrf.mxu0
      %v1422 = vadd.f32 0.0, %v1421
      %v1423 = vpop.f32.mrf.mxu0
      %1424 = vmatprep.mubr.f32.mxu0 0.0
      %1425 = vmatmul.mubr.f32.gmra.mxu0 %v1225
      %v1426 = vpop.f32.mrf.mxu0
      %v1427 = vadd.f32 0.0, %v1426
      %v1428 = vpop.f32.mrf.mxu0
      %1429 = vmatprep.mubr.f32.mxu0 0.0
      %1430 = vmatmul.mubr.f32.gmra.mxu0 %v1228
      %v1431 = vpop.f32.mrf.mxu0
      %v1432 = vadd.f32 0.0, %v1431
      %v1433 = vpop.f32.mrf.mxu0
      %1434 = vmatprep.mubr.f32.mxu0 0.0
      %1435 = vmatmul.mubr.f32.gmra.mxu0 %v1231
      %v1436 = vpop.f32.mrf.mxu0
      %v1437 = vadd.f32 0.0, %v1436
      %v1438 = vpop.f32.mrf.mxu0
      %1439 = vmatprep.mubr.f32.mxu0 0.0
      %1440 = vmatmul.mubr.f32.gmra.mxu0 %v1234
      %v1441 = vpop.f32.mrf.mxu0
      %v1442 = vadd.f32 0.0, %v1441
      %v1443 = vpop.f32.mrf.mxu0
      %1444 = vmatprep.mubr.f32.mxu0 0.0
      %1445 = vmatmul.mubr.f32.gmra.mxu0 %v1237
      %v1446 = vpop.f32.mrf.mxu0
      %v1447 = vadd.f32 0.0, %v1446
      %v1448 = vpop.f32.mrf.mxu0
      %1449 = vmatprep.mubr.f32.mxu0 0.0
      %1450 = vmatmul.mubr.f32.gmra.mxu0 %v1240
      %v1451 = vpop.f32.mrf.mxu0
      %v1452 = vadd.f32 0.0, %v1451
      %v1453 = vpop.f32.mrf.mxu0
      %1454 = vmatprep.mubr.f32.mxu0 0.0
      %1455 = vmatmul.mubr.f32.gmra.mxu0 %v1243
      %v1456 = vpop.f32.mrf.mxu0
      %v1457 = vadd.f32 0.0, %v1456
      %v1458 = vpop.f32.mrf.mxu0
      %1459 = vmatprep.mubr.f32.mxu0 0.0
      %1460 = vmatmul.mubr.f32.gmra.mxu0 %v1246
      %v1461 = vpop.f32.mrf.mxu0
      %v1462 = vadd.f32 0.0, %v1461
      %v1463 = vpop.f32.mrf.mxu0
      %1464 = vmatprep.mubr.f32.mxu0 0.0
      %1465 = vmatmul.mubr.f32.gmra.mxu0 %v1249
      %v1466 = vpop.f32.mrf.mxu0
      %v1467 = vadd.f32 0.0, %v1466
      %v1468 = vpop.f32.mrf.mxu0
      %1469 = vmatprep.mubr.f32.mxu0 0.0
      %1470 = vmatmul.mubr.f32.gmra.mxu0 %v1252
      %v1471 = vpop.f32.mrf.mxu0
      %v1472 = vadd.f32 0.0, %v1471
      %v1473 = vpop.f32.mrf.mxu0
      %1474 = vmatprep.mubr.f32.mxu0 0.0
      %1475 = vmatmul.mubr.f32.gmra.mxu0 %v1255
      %v1476 = vpop.f32.mrf.mxu0
      %v1477 = vadd.f32 0.0, %v1476
      %v1478 = vpop.f32.mrf.mxu0
      %1479 = vmatprep.mubr.f32.mxu0 0.0
      %1480 = vmatmul.mubr.f32.gmra.mxu0 %v1258
      %v1481 = vpop.f32.mrf.mxu0
      %v1482 = vadd.f32 0.0, %v1481
      %v1483 = vpop.f32.mrf.mxu0
      %1484 = vdwg.mxu0
      %1485 = vst.msk [vmem:[%s221] sm:$0xff] %vm481, %v1327
      %1486 = vst.msk [vmem:[%s221 + $0x8] sm:$0xff] %vm481, %v1332
      %1487 = vst.msk [vmem:[%s221 + $0x10] sm:$0xff] %vm481, %v1337
      %1488 = vst.msk [vmem:[%s221 + $0x18] sm:$0xff] %vm481, %v1342
      %1489 = vst.msk [vmem:[%s221 + $0x20] sm:$0xff] %vm481, %v1347
      %1490 = vst.msk [vmem:[%s221 + $0x28] sm:$0xff] %vm481, %v1352
      %1491 = vst.msk [vmem:[%s221 + $0x30] sm:$0xff] %vm481, %v1357
      %1492 = vst.msk [vmem:[%s221 + $0x38] sm:$0xff] %vm481, %v1362
      %1493 = vst.msk [vmem:[%s221 + $0x40] sm:$0xff] %vm481, %v1367
      %1494 = vst.msk [vmem:[%s221 + $0x48] sm:$0xff] %vm481, %v1372
      %1495 = vst.msk [vmem:[%s221 + $0x50] sm:$0xff] %vm481, %v1377
      %1496 = vst.msk [vmem:[%s221 + $0x58] sm:$0xff] %vm481, %v1382
      %1497 = vst.msk [vmem:[%s221 + $0x60] sm:$0xff] %vm481, %v1387
      %1498 = vst.msk [vmem:[%s221 + $0x68] sm:$0xff] %vm481, %v1392
      %1499 = vst.msk [vmem:[%s221 + $0x70] sm:$0xff] %vm481, %v1397
      %1500 = vst.msk [vmem:[%s221 + $0x78] sm:$0xff] %vm481, %v1402
      %1501 = vst.msk [vmem:[%s221 + $0x80] sm:$0xff] %vm481, %v1407
      %1502 = vst.msk [vmem:[%s221 + $0x88] sm:$0xff] %vm481, %v1412
      %1503 = vst.msk [vmem:[%s221 + $0x90] sm:$0xff] %vm481, %v1417
      %1504 = vst.msk [vmem:[%s221 + $0x98] sm:$0xff] %vm481, %v1422
      %1505 = vst.msk [vmem:[%s221 + $0xa0] sm:$0xff] %vm481, %v1427
      %1506 = vst.msk [vmem:[%s221 + $0xa8] sm:$0xff] %vm481, %v1432
      %1507 = vst.msk [vmem:[%s221 + $0xb0] sm:$0xff] %vm481, %v1437
      %1508 = vst.msk [vmem:[%s221 + $0xb8] sm:$0xff] %vm481, %v1442
      %1509 = vst.msk [vmem:[%s221 + $0xc0] sm:$0xff] %vm481, %v1447
      %1510 = vst.msk [vmem:[%s221 + $0xc8] sm:$0xff] %vm481, %v1452
      %1511 = vst.msk [vmem:[%s221 + $0xd0] sm:$0xff] %vm481, %v1457
      %1512 = vst.msk [vmem:[%s221 + $0xd8] sm:$0xff] %vm481, %v1462
      %1513 = vst.msk [vmem:[%s221 + $0xe0] sm:$0xff] %vm481, %v1467
      %1514 = vst.msk [vmem:[%s221 + $0xe8] sm:$0xff] %vm481, %v1472
      %1515 = vst.msk [vmem:[%s221 + $0xf0] sm:$0xff] %vm481, %v1477
      %1516 = vst.msk [vmem:[%s221 + $0xf8] sm:$0xff] %vm481, %v1482
      %s1517 = smul.u32 32, %s15
      %p1518 = scmp.lt.s32.totalorder %s1517, 63
      %s1519 = scalar_select %p1518, %s1517, 63
      %s1520 = smul.addr %s1519, 8
      %s1521 = scalar_lea.vmem %s4, %s1520
      // Predicated region
      $region37: #{gcea_forward.6} parent=35 // pred_check
        %p1522 = pneg %p127
      $region38: #{gcea_forward.6} parent=35 // pred_check_branch
        %1524 = sbr.rel (%p1522) target = $region40
      $region39: #{gcea_forward.6} parent=35 // pred_region
        %s1525 = smul.u32 32, %s15
      $region40: #{gcea_forward.6} parent=35 // pred_fallthru
        _
    $region36: #{gcea_forward.6} parent=5 // pred_fallthru
      _
    %p1526 = scmp.le.s32.totalorder 2, %s10
    // Predicated region
    $region41: #{gcea_forward.6} parent=5 // pred_check
      %p1527 = pneg %p1526
    $region42: #{gcea_forward.6} parent=5 // pred_check_branch
      %1529 = sbr.rel (%p1527) target = $region44
    $region43: #{gcea_forward.6} parent=5 // pred_region
      %s1530 = ssub.s32 %s10, 2
      // Predicated region
      $region45: #{gcea_forward.6} parent=43 // pred_check
        %p1531 = pneg %p133
      $region46: #{gcea_forward.6} parent=43 // pred_check_branch
        %1533 = sbr.rel (%p1531) target = $region48
      $region47: #{gcea_forward.6} parent=43 // pred_region
        %s1534 = smul.u32 32, %s16
        %p1535 = scmp.lt.s32.totalorder %s1534, 63
        %s1536 = scalar_select %p1535, %s1534, 63
        %s1537 = smul.addr %s1536, 8
        %s1538 = scalar_lea.vmem %s4, %s1537
      $region48: #{gcea_forward.6} parent=43 // pred_fallthru
        _
    $region44: #{gcea_forward.6} parent=5 // pred_fallthru
      _
  $region6: #{gcea_forward.6} parent=0 // loop_footer
    %s14 = sadd.s32 1, %s10
  $region7: #{gcea_forward.6} parent=0 // loop_footer_branch
    %9 = sbr.rel target = $region3
  $region8: #{gcea_forward.6} parent=0 // loop_exit
    _

// kernel: gcea_forward.7
$region0: #{gcea_forward.7}
  #allocation0 [shape = 'u32[]', space=smem, size = 0x4, offset = 0x4, fixed_abs, tag = 'smem constant byte address 0x4 - core index']
  #allocation1 [shape = 'u32[144,128]{1,0:T(1,128)}', space=vmem, size = 0x12000, scoped, tag = 'internal scratch']
  #allocation2 [shape = 'f32[1,1]{1,0:T(1,128)S(1)}', space=vmem, size = 0x200, scoped, tag = 'scoped memory for gcea_forward.7']
  %s0 = inlined_call_operand.vmem [shape: f32[2,16,64], index: 0, kind: input, shape index: {}]
  %s1 = inlined_call_operand.vmem [shape: f32[16,1], index: 1, kind: input, shape index: {}]
  %s2 = inlined_call_operand.<no memory space> [shape: f32[1,1], index: 2, kind: input, shape index: {}]
  %s3 = inlined_call_operand.vmem [shape: f32[2,16,1], index: 3, kind: output, shape index: {}]
  %s4 = sld [smem:[#allocation0]]
  $region45: #{gcea_forward.7} parent=0
    _
  %s6 = ssub.s32 1, %s4
  %s7 = scalar_select 0, %s6, %s4
  %v8 = vstv %s2
  %9 = vst [vmem:[#allocation2] sm:$0x1] %v8
  loop: start=0, step=1, limit=4
  $region2: #{gcea_forward.7} parent=0 // loop_pre_header
    _
  $region3: #{gcea_forward.7} parent=0 // loop_header
    %s11 = sphi 0, %s15
    %p12 = scmp.ge.s32.totalorder %s11, 4
    %s21 = sphi 0, %s23
    %s24 = sphi 0, %s21
    %s25 = sphi 0, %s24
    %s41 = sphi 0, %s25
    %s45 = sphi 0, %s45
    %s47 = sphi 0, %s45
    %s48 = sphi 0, %s47
    %s62 = sphi 0, %s48
    %s66 = sphi 0, %s66
    %s68 = sphi 0, %s66
    %s69 = sphi 0, %s68
    %s83 = sphi 0, %s69
    %s89 = sphi 0, %s91
    %s92 = sphi 0, %s89
    %s93 = sphi 0, %s92
    %s109 = sphi 0, %s93
  $region4: #{gcea_forward.7} parent=0 // loop_header_branch
    %14 = sbr.rel (%p12) target = $region8
  $region5: #{gcea_forward.7} parent=0 // loop_body
    %s16 = ssub.s32 %s11, 1
    %s17 = ssub.s32 %s11, 2
    %s18 = sadd.s32 %s11, 1
    %s19 = ssub.s32 %s11, %s18
    %p20 = scmp.eq.s32.totalorder %s19, 0
    %s22 = sadd.s32 %s21, 1
    %s23 = scalar_select %p20, %s21, %s22
    %p26 = pneg %p20
    %p27 = scmp.eq.s32.totalorder %s11, 1
    %p28 = por %p26, %p27
    %p29 = scmp.ne.s32.totalorder %s21, %s24
    %p30 = scmp.eq.s32.totalorder %s11, 0
    %p31 = por %p29, %p30
    %p32 = scmp.ne.s32.totalorder %s21, %s24
    %p33 = scmp.eq.s32.totalorder %s16, 1
    %p34 = por %p32, %p33
    %p35 = scmp.ne.s32.totalorder %s24, %s25
    %p36 = scmp.eq.s32.totalorder %s16, 0
    %p37 = por %p35, %p36
    %p38 = scmp.ne.s32.totalorder %s24, %s25
    %p39 = scmp.eq.s32.totalorder %s17, 1
    %p40 = por %p38, %p39
    %p42 = scmp.ne.s32.totalorder %s25, %s41
    %p43 = scmp.eq.s32.totalorder %s17, 0
    %p44 = por %p42, %p43
    %s46 = sadd.s32 %s45, 1
    %p49 = scmp.eq.s32.totalorder %s11, 1
    %p50 = scmp.ne.s32.totalorder %s45, %s47
    %p51 = scmp.eq.s32.totalorder %s11, 0
    %p52 = por %p50, %p51
    %p53 = scmp.ne.s32.totalorder %s45, %s47
    %p54 = scmp.eq.s32.totalorder %s16, 1
    %p55 = por %p53, %p54
    %p56 = scmp.ne.s32.totalorder %s47, %s48
    %p57 = scmp.eq.s32.totalorder %s16, 0
    %p58 = por %p56, %p57
    %p59 = scmp.ne.s32.totalorder %s47, %s48
    %p60 = scmp.eq.s32.totalorder %s17, 1
    %p61 = por %p59, %p60
    %p63 = scmp.ne.s32.totalorder %s48, %s62
    %p64 = scmp.eq.s32.totalorder %s17, 0
    %p65 = por %p63, %p64
    %s67 = sadd.s32 %s66, 1
    %p70 = scmp.eq.s32.totalorder %s11, 1
    %p71 = scmp.ne.s32.totalorder %s66, %s68
    %p72 = scmp.eq.s32.totalorder %s11, 0
    %p73 = por %p71, %p72
    %p74 = scmp.ne.s32.totalorder %s66, %s68
    %p75 = scmp.eq.s32.totalorder %s16, 1
    %p76 = por %p74, %p75
    %p77 = scmp.ne.s32.totalorder %s68, %s69
    %p78 = scmp.eq.s32.totalorder %s16, 0
    %p79 = por %p77, %p78
    %p80 = scmp.ne.s32.totalorder %s68, %s69
    %p81 = scmp.eq.s32.totalorder %s17, 1
    %p82 = por %p80, %p81
    %p84 = scmp.ne.s32.totalorder %s69, %s83
    %p85 = scmp.eq.s32.totalorder %s17, 0
    %p86 = por %p84, %p85
    %s87 = ssub.s32 %s11, %s18
    %p88 = scmp.eq.s32.totalorder %s87, 0
    %s90 = sadd.s32 %s89, 1
    %s91 = scalar_select %p88, %s89, %s90
    %p94 = pneg %p88
    %p95 = scmp.eq.s32.totalorder %s11, 1
    %p96 = por %p94, %p95
    %p97 = scmp.ne.s32.totalorder %s89, %s92
    %p98 = scmp.eq.s32.totalorder %s11, 0
    %p99 = por %p97, %p98
    %p100 = scmp.ne.s32.totalorder %s89, %s92
    %p101 = scmp.eq.s32.totalorder %s16, 1
    %p102 = por %p100, %p101
    %p103 = scmp.ne.s32.totalorder %s92, %s93
    %p104 = scmp.eq.s32.totalorder %s16, 0
    %p105 = por %p103, %p104
    %p106 = scmp.ne.s32.totalorder %s92, %s93
    %p107 = scmp.eq.s32.totalorder %s17, 1
    %p108 = por %p106, %p107
    %p110 = scmp.ne.s32.totalorder %s93, %s109
    %p111 = scmp.eq.s32.totalorder %s17, 0
    %p112 = por %p110, %p111
    %p113 = scmp.le.s32.totalorder 1, %s11
    %p114 = scmp.lt.s32.totalorder %s11, 3
    %p115 = pnand %p113, %p114
    %p116 = pneg %p115
    // Predicated region
    $region9: #{gcea_forward.7} parent=5 // pred_check
      _
    $region10: #{gcea_forward.7} parent=5 // pred_check_branch
      %118 = sbr.rel (%p115) target = $region12
    $region11: #{gcea_forward.7} parent=5 // pred_region
      %s119 = ssub.s32 %s11, 1
      // Predicated region
      $region13: #{gcea_forward.7} parent=11 // pred_check
        %p120 = pneg %p58
      $region14: #{gcea_forward.7} parent=11 // pred_check_branch
        %122 = sbr.rel (%p120) target = $region16
      $region15: #{gcea_forward.7} parent=11 // pred_region
        _
      $region16: #{gcea_forward.7} parent=11 // pred_fallthru
        _
      // Predicated region
      $region17: #{gcea_forward.7} parent=11 // pred_check
        %p123 = pneg %p79
      $region18: #{gcea_forward.7} parent=11 // pred_check_branch
        %125 = sbr.rel (%p123) target = $region20
      $region19: #{gcea_forward.7} parent=11 // pred_region
        _
      $region20: #{gcea_forward.7} parent=11 // pred_fallthru
        _
    $region12: #{gcea_forward.7} parent=5 // pred_fallthru
      _
    %p126 = scmp.lt.s32.totalorder %s11, 2
    // Predicated region
    $region21: #{gcea_forward.7} parent=5 // pred_check
      %p127 = pneg %p126
    $region22: #{gcea_forward.7} parent=5 // pred_check_branch
      %129 = sbr.rel (%p127) target = $region24
    $region23: #{gcea_forward.7} parent=5 // pred_region
      // Predicated region
      $region25: #{gcea_forward.7} parent=23 // pred_check
        %p130 = pneg %p31
      $region26: #{gcea_forward.7} parent=23 // pred_check_branch
        %132 = sbr.rel (%p130) target = $region28
      $region27: #{gcea_forward.7} parent=23 // pred_region
        %p133 = scmp.lt.s32.totalorder %s11, 1
        %s134 = scalar_select %p133, %s11, 1
        %s135 = smul.addr %s134, 2
        %s136 = smul.addr %s135, 8
        %s137 = scalar_lea.vmem %s0, %s136
      $region28: #{gcea_forward.7} parent=23 // pred_fallthru
        _
    $region24: #{gcea_forward.7} parent=5 // pred_fallthru
      _
    %p138 = scmp.le.s32.totalorder 1, %s11
    %p139 = scmp.lt.s32.totalorder %s11, 3
    %p140 = pnand %p138, %p139
    %p141 = pneg %p140
    // Predicated region
    $region29: #{gcea_forward.7} parent=5 // pred_check
      _
    $region30: #{gcea_forward.7} parent=5 // pred_check_branch
      %143 = sbr.rel (%p140) target = $region32
    $region31: #{gcea_forward.7} parent=5 // pred_region
      %s144 = ssub.s32 %s11, 1
      %p145 = scmp.lt.s32.totalorder %s16, 1
      %s146 = scalar_select %p145, %s16, 1
      %s147 = smul.addr %s146, 2
      %s148 = smul.addr %s147, 8
      %s149 = scalar_lea.vmem %s0, %s148
      %p150 = pneg %p37
      %p151 = pneg %p34
      %p152 = pneg %p58
      %p153 = pneg %p55
      %p154 = pneg %p79
      %p155 = pneg %p76
      %p156 = pneg %p105
      %p157 = pneg %p102
      %p158 = scmp.lt.s32.totalorder %s16, 1
      %s159 = scalar_select %p158, %s16, 1
      %s160 = smul.addr %s159, 2
      %s161 = smul.addr %s160, 8
      %s162 = scalar_lea.vmem %s3, %s161
      %p163 = scmp.lt.s32.totalorder %s16, 1
      %s164 = scalar_select %p163, %s16, 1
      %s165 = smul.addr %s164, 2
      %s166 = smul.addr %s165, 8
      %s167 = scalar_lea.vmem %s0, %s166
      %p168 = scmp.lt.s32.totalorder %s16, 1
      %s169 = scalar_select %p168, %s16, 1
      %s170 = smul.addr %s169, 2
      %s171 = smul.addr %s170, 8
      %s172 = scalar_lea.vmem %s3, %s171
      %v173 = vld [vmem:[%s167] sm:$0xff]
      %v174 = vld [vmem:[%s167 + $0x8] sm:$0xff]
      %vm175 = vcmask 523264
      %v176 = vsel %vm175, %v173, 0.0
      %177 = vadd.xlane.f32.xlu0 %v176
      %v178 = vpop.xlane.xlu0 %177
      %v179 = vsel %vm175, %v174, 0.0
      %180 = vadd.xlane.f32.xlu0 %v179
      %v181 = vpop.xlane.xlu0 %180
      %v182 = vrcp.pop 64.0
      %v183 = vmul.f32 %v178, %v182
      %v184 = vmul.f32 %v181, %v182
      %v185 = vmul.f32 %v173, %v173
      %v186 = vmul.f32 %v174, %v174
      %v187 = vsel %vm175, %v185, 0.0
      %188 = vadd.xlane.f32.xlu0 %v187
      %v189 = vpop.xlane.xlu0 %188
      %v190 = vsel %vm175, %v186, 0.0
      %191 = vadd.xlane.f32.xlu0 %v190
      %v192 = vpop.xlane.xlu0 %191
      %v193 = vmul.f32 %v189, %v182
      %v194 = vmul.f32 %v192, %v182
      %v195 = vmul.f32 %v183, %v183
      %v196 = vmul.f32 %v184, %v184
      %v197 = vsub.f32 %v193, %v195
      %v198 = vsub.f32 %v194, %v196
      %v199 = vmul.f32 %v197, 1.0158731
      %v200 = vmul.f32 %v198, 1.0158731
      %v201 = vld [vmem:[%s1] sm:$0xff]
      %v202 = vld [vmem:[%s1 + $0x8] sm:$0xff]
      %v203 = vadd.f32 %v199, 1e-05
      %v204 = vadd.f32 %v200, 1e-05
      %v205 = vrsqrt.pop %v203
      %v206 = vrsqrt.pop %v204
      %v207 = vmul.f32 %v201, %v205
      %v208 = vmul.f32 %v202, %v206
      %v209 = vld [vmem:[#allocation2] sm:$0x1]
      %v210 = vmul.f32 %v207, %v183
      %v211 = vmul.f32 %v208, %v184
      %vm212 = vcmask 7168
      %v213 = vsel %vm212, %v210, 0.0
      %v214 = vsel %vm212, %v211, 0.0
      %v215 = vadd.f32 %v213, %v214
      %v216 = vrot.slane %v215, 4
      %v217 = vadd.f32 %v215, %v216
      %v218 = vrot.slane %v217, 2
      %v219 = vadd.f32 %v217, %v218
      %v220 = vrot.slane %v219, 1
      %v221 = vadd.f32 %v219, %v220
      %v222 = vsub.f32 %v209, %v221
      %224 = vset.pattern.permute.xlu0 0
      %225 = vperm.xlu0 %224, %v207
      %v226 = vpop.permute.xlu0 %225
      %229 = vset.pattern.permute.xlu0 0
      %230 = vperm.xlu0 %229, %v208
      %v231 = vpop.permute.xlu0 %230
      %v233 = vmul.f32 %v173, %v226
      %v234 = vmul.f32 %v174, %v231
      %v235 = vsel %vm175, %v233, 0.0
      %v236 = vsel %vm175, %v234, 0.0
      %v237 = vadd.f32 %v235, %v236
      %v238 = vrot.slane %v237, 4
      %v239 = vadd.f32 %v237, %v238
      %v240 = vrot.slane %v239, 2
      %v241 = vadd.f32 %v239, %v240
      %v242 = vrot.slane %v241, 1
      %v243 = vadd.f32 %v241, %v242
      %245 = vset.pattern.permute.xlu0 0
      %246 = vperm.xlu0 %245, %v222
      %v247 = vpop.permute.xlu0 %246
      %v249 = vlaneseq
      %v250 = vshrl.u32 %v249, 7
      %v251 = vsub.s32 0, %v250
      %v252 = vrot.slane %v247, %v251
      %v253 = vadd.f32 %v243, %v252
      %v254 = vsel %vm175, %v253, -inf
      %255 = vmax.xlane.f32.xlu0 %v254
      %v256 = vpop.xlane.xlu0 %255
      %v257 = vsub.f32 %v253, %v256
      %v258 = vmul.f32 %v257, 1.442695
      %v259 = vpow.pop %v258
      %v260 = vsel %vm175, %v259, 0.0
      %261 = vadd.xlane.f32.xlu0 %v260
      %v262 = vpop.xlane.xlu0 %261
      %v263 = vrcp.pop %v262
      %v264 = vmul.f32 %v259, %v263
      %v265 = vmul.f32 %v173, %v264
      %v266 = vmul.f32 %v174, %v264
      %v267 = vsel %vm175, %v265, 0.0
      %268 = vadd.xlane.f32.xlu0 %v267
      %v269 = vpop.xlane.xlu0 %268
      %v270 = vsel %vm175, %v266, 0.0
      %271 = vadd.xlane.f32.xlu0 %v270
      %v272 = vpop.xlane.xlu0 %271
      %273 = vst.msk [vmem:[%s172] sm:$0xff] %vm212, %v269
      %274 = vst.msk [vmem:[%s172 + $0x8] sm:$0xff] %vm212, %v272
      %p275 = scmp.lt.s32.totalorder %s16, 1
      %s276 = scalar_select %p275, %s16, 1
      %s277 = smul.addr %s276, 2
      %s278 = smul.addr %s277, 8
      %s279 = scalar_lea.vmem %s3, %s278
      // Predicated region
      $region33: #{gcea_forward.7} parent=31 // pred_check
        %p280 = pneg %p102
      $region34: #{gcea_forward.7} parent=31 // pred_check_branch
        %282 = sbr.rel (%p280) target = $region36
      $region35: #{gcea_forward.7} parent=31 // pred_region
        _
      $region36: #{gcea_forward.7} parent=31 // pred_fallthru
        _
    $region32: #{gcea_forward.7} parent=5 // pred_fallthru
      _
    %p283 = scmp.le.s32.totalorder 2, %s11
    // Predicated region
    $region37: #{gcea_forward.7} parent=5 // pred_check
      %p284 = pneg %p283
    $region38: #{gcea_forward.7} parent=5 // pred_check_branch
      %286 = sbr.rel (%p284) target = $region40
    $region39: #{gcea_forward.7} parent=5 // pred_region
      %s287 = ssub.s32 %s11, 2
      // Predicated region
      $region41: #{gcea_forward.7} parent=39 // pred_check
        %p288 = pneg %p108
      $region42: #{gcea_forward.7} parent=39 // pred_check_branch
        %290 = sbr.rel (%p288) target = $region44
      $region43: #{gcea_forward.7} parent=39 // pred_region
        %p291 = scmp.lt.s32.totalorder %s17, 1
        %s292 = scalar_select %p291, %s17, 1
        %s293 = smul.addr %s292, 2
        %s294 = smul.addr %s293, 8
        %s295 = scalar_lea.vmem %s3, %s294
      $region44: #{gcea_forward.7} parent=39 // pred_fallthru
        _
    $region40: #{gcea_forward.7} parent=5 // pred_fallthru
      _
  $region6: #{gcea_forward.7} parent=0 // loop_footer
    %s15 = sadd.s32 1, %s11
  $region7: #{gcea_forward.7} parent=0 // loop_footer_branch
    %10 = sbr.rel target = $region3
  $region8: #{gcea_forward.7} parent=0 // loop_exit
    _

// kernel: gcea_forward.8
$region0: #{gcea_forward.8}
  #allocation0 [shape = 'u32[]', space=smem, size = 0x4, offset = 0x4, fixed_abs, tag = 'smem constant byte address 0x4 - core index']
  #allocation1 [shape = 'u32[144,128]{1,0:T(1,128)}', space=vmem, size = 0x12000, scoped, tag = 'internal scratch']
  %s0 = inlined_call_operand.vmem [shape: f32[128,16], index: 0, kind: input, shape index: {}]
  %s1 = inlined_call_operand.vmem [shape: f32[128,1], index: 1, kind: input, shape index: {}]
  %s2 = inlined_call_operand.vmem [shape: f32[16,64], index: 2, kind: input, shape index: {}]
  %s3 = inlined_call_operand.vmem [shape: f32[64,16], index: 3, kind: input, shape index: {}]
  %s4 = inlined_call_operand.vmem [shape: f32[128,16], index: 4, kind: output, shape index: {}]
  %s5 = sld [smem:[#allocation0]]
  $region49: #{gcea_forward.8} parent=0
    _
  %s7 = ssub.s32 1, %s5
  %s8 = scalar_select 0, %s7, %s5
  loop: start=0, step=1, limit=4
  $region2: #{gcea_forward.8} parent=0 // loop_pre_header
    _
  $region3: #{gcea_forward.8} parent=0 // loop_header
    %s10 = sphi 0, %s14
    %p11 = scmp.ge.s32.totalorder %s10, 4
    %s20 = sphi 0, %s22
    %s23 = sphi 0, %s20
    %s24 = sphi 0, %s23
    %s40 = sphi 0, %s24
    %s46 = sphi 0, %s48
    %s49 = sphi 0, %s46
    %s50 = sphi 0, %s49
    %s66 = sphi 0, %s50
    %s70 = sphi 0, %s70
    %s72 = sphi 0, %s70
    %s73 = sphi 0, %s72
    %s87 = sphi 0, %s73
    %s91 = sphi 0, %s91
    %s93 = sphi 0, %s91
    %s94 = sphi 0, %s93
    %s108 = sphi 0, %s94
    %s114 = sphi 0, %s116
    %s117 = sphi 0, %s114
    %s118 = sphi 0, %s117
    %s134 = sphi 0, %s118
  $region4: #{gcea_forward.8} parent=0 // loop_header_branch
    %13 = sbr.rel (%p11) target = $region8
  $region5: #{gcea_forward.8} parent=0 // loop_body
    %s15 = ssub.s32 %s10, 1
    %s16 = ssub.s32 %s10, 2
    %s17 = sadd.s32 %s10, 1
    %s18 = ssub.s32 %s10, %s17
    %p19 = scmp.eq.s32.totalorder %s18, 0
    %s21 = sadd.s32 %s20, 1
    %s22 = scalar_select %p19, %s20, %s21
    %p25 = pneg %p19
    %p26 = scmp.eq.s32.totalorder %s10, 1
    %p27 = por %p25, %p26
    %p28 = scmp.ne.s32.totalorder %s20, %s23
    %p29 = scmp.eq.s32.totalorder %s10, 0
    %p30 = por %p28, %p29
    %p31 = scmp.ne.s32.totalorder %s20, %s23
    %p32 = scmp.eq.s32.totalorder %s15, 1
    %p33 = por %p31, %p32
    %p34 = scmp.ne.s32.totalorder %s23, %s24
    %p35 = scmp.eq.s32.totalorder %s15, 0
    %p36 = por %p34, %p35
    %p37 = scmp.ne.s32.totalorder %s23, %s24
    %p38 = scmp.eq.s32.totalorder %s16, 1
    %p39 = por %p37, %p38
    %p41 = scmp.ne.s32.totalorder %s24, %s40
    %p42 = scmp.eq.s32.totalorder %s16, 0
    %p43 = por %p41, %p42
    %s44 = ssub.s32 %s10, %s17
    %p45 = scmp.eq.s32.totalorder %s44, 0
    %s47 = sadd.s32 %s46, 1
    %s48 = scalar_select %p45, %s46, %s47
    %p51 = pneg %p45
    %p52 = scmp.eq.s32.totalorder %s10, 1
    %p53 = por %p51, %p52
    %p54 = scmp.ne.s32.totalorder %s46, %s49
    %p55 = scmp.eq.s32.totalorder %s10, 0
    %p56 = por %p54, %p55
    %p57 = scmp.ne.s32.totalorder %s46, %s49
    %p58 = scmp.eq.s32.totalorder %s15, 1
    %p59 = por %p57, %p58
    %p60 = scmp.ne.s32.totalorder %s49, %s50
    %p61 = scmp.eq.s32.totalorder %s15, 0
    %p62 = por %p60, %p61
    %p63 = scmp.ne.s32.totalorder %s49, %s50
    %p64 = scmp.eq.s32.totalorder %s16, 1
    %p65 = por %p63, %p64
    %p67 = scmp.ne.s32.totalorder %s50, %s66
    %p68 = scmp.eq.s32.totalorder %s16, 0
    %p69 = por %p67, %p68
    %s71 = sadd.s32 %s70, 1
    %p74 = scmp.eq.s32.totalorder %s10, 1
    %p75 = scmp.ne.s32.totalorder %s70, %s72
    %p76 = scmp.eq.s32.totalorder %s10, 0
    %p77 = por %p75, %p76
    %p78 = scmp.ne.s32.totalorder %s70, %s72
    %p79 = scmp.eq.s32.totalorder %s15, 1
    %p80 = por %p78, %p79
    %p81 = scmp.ne.s32.totalorder %s72, %s73
    %p82 = scmp.eq.s32.totalorder %s15, 0
    %p83 = por %p81, %p82
    %p84 = scmp.ne.s32.totalorder %s72, %s73
    %p85 = scmp.eq.s32.totalorder %s16, 1
    %p86 = por %p84, %p85
    %p88 = scmp.ne.s32.totalorder %s73, %s87
    %p89 = scmp.eq.s32.totalorder %s16, 0
    %p90 = por %p88, %p89
    %s92 = sadd.s32 %s91, 1
    %p95 = scmp.eq.s32.totalorder %s10, 1
    %p96 = scmp.ne.s32.totalorder %s91, %s93
    %p97 = scmp.eq.s32.totalorder %s10, 0
    %p98 = por %p96, %p97
    %p99 = scmp.ne.s32.totalorder %s91, %s93
    %p100 = scmp.eq.s32.totalorder %s15, 1
    %p101 = por %p99, %p100
    %p102 = scmp.ne.s32.totalorder %s93, %s94
    %p103 = scmp.eq.s32.totalorder %s15, 0
    %p104 = por %p102, %p103
    %p105 = scmp.ne.s32.totalorder %s93, %s94
    %p106 = scmp.eq.s32.totalorder %s16, 1
    %p107 = por %p105, %p106
    %p109 = scmp.ne.s32.totalorder %s94, %s108
    %p110 = scmp.eq.s32.totalorder %s16, 0
    %p111 = por %p109, %p110
    %s112 = ssub.s32 %s10, %s17
    %p113 = scmp.eq.s32.totalorder %s112, 0
    %s115 = sadd.s32 %s114, 1
    %s116 = scalar_select %p113, %s114, %s115
    %p119 = pneg %p113
    %p120 = scmp.eq.s32.totalorder %s10, 1
    %p121 = por %p119, %p120
    %p122 = scmp.ne.s32.totalorder %s114, %s117
    %p123 = scmp.eq.s32.totalorder %s10, 0
    %p124 = por %p122, %p123
    %p125 = scmp.ne.s32.totalorder %s114, %s117
    %p126 = scmp.eq.s32.totalorder %s15, 1
    %p127 = por %p125, %p126
    %p128 = scmp.ne.s32.totalorder %s117, %s118
    %p129 = scmp.eq.s32.totalorder %s15, 0
    %p130 = por %p128, %p129
    %p131 = scmp.ne.s32.totalorder %s117, %s118
    %p132 = scmp.eq.s32.totalorder %s16, 1
    %p133 = por %p131, %p132
    %p135 = scmp.ne.s32.totalorder %s118, %s134
    %p136 = scmp.eq.s32.totalorder %s16, 0
    %p137 = por %p135, %p136
    %p138 = scmp.le.s32.totalorder 1, %s10
    %p139 = scmp.lt.s32.totalorder %s10, 3
    %p140 = pnand %p138, %p139
    %p141 = pneg %p140
    // Predicated region
    $region9: #{gcea_forward.8} parent=5 // pred_check
      _
    $region10: #{gcea_forward.8} parent=5 // pred_check_branch
      %143 = sbr.rel (%p140) target = $region12
    $region11: #{gcea_forward.8} parent=5 // pred_region
      %s144 = ssub.s32 %s10, 1
      // Predicated region
      $region13: #{gcea_forward.8} parent=11 // pred_check
        %p145 = pneg %p83
      $region14: #{gcea_forward.8} parent=11 // pred_check_branch
        %147 = sbr.rel (%p145) target = $region16
      $region15: #{gcea_forward.8} parent=11 // pred_region
        _
      $region16: #{gcea_forward.8} parent=11 // pred_fallthru
        _
      // Predicated region
      $region17: #{gcea_forward.8} parent=11 // pred_check
        %p148 = pneg %p104
      $region18: #{gcea_forward.8} parent=11 // pred_check_branch
        %150 = sbr.rel (%p148) target = $region20
      $region19: #{gcea_forward.8} parent=11 // pred_region
        _
      $region20: #{gcea_forward.8} parent=11 // pred_fallthru
        _
    $region12: #{gcea_forward.8} parent=5 // pred_fallthru
      _
    %p151 = scmp.lt.s32.totalorder %s10, 2
    // Predicated region
    $region21: #{gcea_forward.8} parent=5 // pred_check
      %p152 = pneg %p151
    $region22: #{gcea_forward.8} parent=5 // pred_check_branch
      %154 = sbr.rel (%p152) target = $region24
    $region23: #{gcea_forward.8} parent=5 // pred_region
      // Predicated region
      $region25: #{gcea_forward.8} parent=23 // pred_check
        %p155 = pneg %p30
      $region26: #{gcea_forward.8} parent=23 // pred_check_branch
        %157 = sbr.rel (%p155) target = $region28
      $region27: #{gcea_forward.8} parent=23 // pred_region
        %s158 = smul.u32 8, %s10
        %p159 = scmp.lt.s32.totalorder %s158, 15
        %s160 = scalar_select %p159, %s158, 15
        %s161 = smul.addr %s160, 8
        %s162 = scalar_lea.vmem %s0, %s161
        %s163 = smul.u32 8, %s10
      $region28: #{gcea_forward.8} parent=23 // pred_fallthru
        _
      // Predicated region
      $region29: #{gcea_forward.8} parent=23 // pred_check
        %p164 = pneg %p56
      $region30: #{gcea_forward.8} parent=23 // pred_check_branch
        %166 = sbr.rel (%p164) target = $region32
      $region31: #{gcea_forward.8} parent=23 // pred_region
        %s167 = smul.u32 8, %s10
        %p168 = scmp.lt.s32.totalorder %s167, 15
        %s169 = scalar_select %p168, %s167, 15
        %s170 = smul.addr %s169, 8
        %s171 = scalar_lea.vmem %s1, %s170
        %s172 = smul.u32 8, %s10
      $region32: #{gcea_forward.8} parent=23 // pred_fallthru
        _
    $region24: #{gcea_forward.8} parent=5 // pred_fallthru
      _
    %p173 = scmp.le.s32.totalorder 1, %s10
    %p174 = scmp.lt.s32.totalorder %s10, 3
    %p175 = pnand %p173, %p174
    %p176 = pneg %p175
    // Predicated region
    $region33: #{gcea_forward.8} parent=5 // pred_check
      _
    $region34: #{gcea_forward.8} parent=5 // pred_check_branch
      %178 = sbr.rel (%p175) target = $region36
    $region35: #{gcea_forward.8} parent=5 // pred_region
      %s179 = ssub.s32 %s10, 1
      %s180 = smul.u32 8, %s15
      %p181 = scmp.lt.s32.totalorder %s180, 15
      %s182 = scalar_select %p181, %s180, 15
      %s183 = smul.addr %s182, 8
      %s184 = scalar_lea.vmem %s0, %s183
      %p185 = pneg %p36
      %p186 = pneg %p33
      %s187 = smul.u32 8, %s15
      %p188 = scmp.lt.s32.totalorder %s187, 15
      %s189 = scalar_select %p188, %s187, 15
      %s190 = smul.addr %s189, 8
      %s191 = scalar_lea.vmem %s1, %s190
      %p192 = pneg %p62
      %p193 = pneg %p59
      %p194 = pneg %p83
      %p195 = pneg %p80
      %p196 = pneg %p104
      %p197 = pneg %p101
      %p198 = pneg %p130
      %p199 = pneg %p127
      %s200 = smul.u32 8, %s15
      %p201 = scmp.lt.s32.totalorder %s200, 15
      %s202 = scalar_select %p201, %s200, 15
      %s203 = smul.addr %s202, 8
      %s204 = scalar_lea.vmem %s4, %s203
      %s205 = smul.u32 8, %s15
      %p206 = scmp.lt.s32.totalorder %s205, 15
      %s207 = scalar_select %p206, %s205, 15
      %s208 = smul.addr %s207, 8
      %s209 = scalar_lea.vmem %s0, %s208
      %s210 = smul.u32 8, %s15
      %s211 = smul.u32 8, %s15
      %p212 = scmp.lt.s32.totalorder %s211, 15
      %s213 = scalar_select %p212, %s211, 15
      %s214 = smul.addr %s213, 8
      %s215 = scalar_lea.vmem %s1, %s214
      %s216 = smul.u32 8, %s15
      %s217 = smul.u32 8, %s15
      %p218 = scmp.lt.s32.totalorder %s217, 15
      %s219 = scalar_select %p218, %s217, 15
      %s220 = smul.addr %s219, 8
      %s221 = scalar_lea.vmem %s4, %s220
      %s222 = smul.u32 8, %s15
      %v223 = vld [vmem:[%s209] sm:$0xff]
      %v224 = vld [vmem:[%s209 + $0x8] sm:$0xff]
      %v225 = vld [vmem:[%s209 + $0x10] sm:$0xff]
      %v226 = vld [vmem:[%s209 + $0x18] sm:$0xff]
      %v227 = vld [vmem:[%s209 + $0x20] sm:$0xff]
      %v228 = vld [vmem:[%s209 + $0x28] sm:$0xff]
      %v229 = vld [vmem:[%s209 + $0x30] sm:$0xff]
      %v230 = vld [vmem:[%s209 + $0x38] sm:$0xff]
      %v231 = vld [vmem:[%s215] sm:$0xff]
      %v232 = vld [vmem:[%s215 + $0x8] sm:$0xff]
      %v233 = vld [vmem:[%s215 + $0x10] sm:$0xff]
      %v234 = vld [vmem:[%s215 + $0x18] sm:$0xff]
      %v235 = vld [vmem:[%s215 + $0x20] sm:$0xff]
      %v236 = vld [vmem:[%s215 + $0x28] sm:$0xff]
      %v237 = vld [vmem:[%s215 + $0x30] sm:$0xff]
      %v238 = vld [vmem:[%s215 + $0x38] sm:$0xff]
      %240 = vset.pattern.permute.xlu0 0
      %241 = vperm.xlu0 %240, %v231
      %v242 = vpop.permute.xlu0 %241
      %245 = vset.pattern.permute.xlu0 0
      %246 = vperm.xlu0 %245, %v232
      %v247 = vpop.permute.xlu0 %246
      %250 = vset.pattern.permute.xlu0 0
      %251 = vperm.xlu0 %250, %v233
      %v252 = vpop.permute.xlu0 %251
      %255 = vset.pattern.permute.xlu0 0
      %256 = vperm.xlu0 %255, %v234
      %v257 = vpop.permute.xlu0 %256
      %260 = vset.pattern.permute.xlu0 0
      %261 = vperm.xlu0 %260, %v235
      %v262 = vpop.permute.xlu0 %261
      %265 = vset.pattern.permute.xlu0 0
      %266 = vperm.xlu0 %265, %v236
      %v267 = vpop.permute.xlu0 %266
      %270 = vset.pattern.permute.xlu0 0
      %271 = vperm.xlu0 %270, %v237
      %v272 = vpop.permute.xlu0 %271
      %275 = vset.pattern.permute.xlu0 0
      %276 = vperm.xlu0 %275, %v238
      %v277 = vpop.permute.xlu0 %276
      %v279 = vadd.f32 %v223, %v242
      %v280 = vadd.f32 %v224, %v247
      %v281 = vadd.f32 %v225, %v252
      %v282 = vadd.f32 %v226, %v257
      %v283 = vadd.f32 %v227, %v262
      %v284 = vadd.f32 %v228, %v267
      %v285 = vadd.f32 %v229, %v272
      %v286 = vadd.f32 %v230, %v277
      %v287 = vld [vmem:[%s2] sm:$0xff]
      %v288 = vld [vmem:[%s2 + $0x8] sm:$0xff]
      %vm289 = vcmask 130048
      %v291 = vsel %vm289, %v279, 0
      %v294 = vsel %vm289, %v280, 0
      %v297 = vsel %vm289, %v281, 0
      %v300 = vsel %vm289, %v282, 0
      %v303 = vsel %vm289, %v283, 0
      %v306 = vsel %vm289, %v284, 0
      %v309 = vsel %vm289, %v285, 0
      %v312 = vsel %vm289, %v286, 0
      %314 = vmatprep.subr.mxu0 0.0
      %315 = vmatpush1.msra.mxu0 0.0
      %316 = vmatprep.subr.mxu0 0.0
      %317 = vmatpush1.msra.mxu0 0.0
      %318 = vmatprep.subr.mxu0 0.0
      %319 = vmatpush1.msra.mxu0 0.0
      %320 = vmatprep.subr.mxu0 0.0
      %321 = vmatpush1.msra.mxu0 0.0
      %322 = vmatprep.subr.mxu0 0.0
      %323 = vmatpush1.msra.mxu0 0.0
      %324 = vmatprep.subr.mxu0 0.0
      %325 = vmatpush1.msra.mxu0 0.0
      %326 = vmatprep.subr.mxu0 0.0
      %327 = vmatpush1.msra.mxu0 0.0
      %328 = vmatprep.subr.mxu0 0.0
      %329 = vmatpush1.msra.mxu0 0.0
      %330 = vmatprep.subr.mxu0 0.0
      %331 = vmatpush1.msra.mxu0 0.0
      %332 = vmatprep.subr.mxu0 0.0
      %333 = vmatpush1.msra.mxu0 0.0
      %334 = vmatprep.subr.mxu0 0.0
      %335 = vmatpush1.msra.mxu0 0.0
      %336 = vmatprep.subr.mxu0 0.0
      %337 = vmatpush1.msra.mxu0 0.0
      %338 = vmatprep.subr.mxu0 0.0
      %339 = vmatpush1.msra.mxu0 0.0
      %340 = vmatprep.subr.mxu0 0.0
      %341 = vmatpush1.msra.mxu0 0.0
      %342 = vmatprep.subr.mxu0 0.0
      %343 = vmatpush1.msra.mxu0 %v288
      %344 = vmatprep.subr.mxu0 0.0
      %345 = vmatpush1.msra.mxu0 %v287
      %346 = vmatprep.subr.mxu0 0.0
      %347 = vmatpush2.msra.mxu0 0.0
      %348 = vmatprep.subr.mxu0 0.0
      %349 = vmatpush2.msra.mxu0 0.0
      %350 = vmatprep.subr.mxu0 0.0
      %351 = vmatpush2.msra.mxu0 0.0
      %352 = vmatprep.subr.mxu0 0.0
      %353 = vmatpush2.msra.mxu0 0.0
      %354 = vmatprep.subr.mxu0 0.0
      %355 = vmatpush2.msra.mxu0 0.0
      %356 = vmatprep.subr.mxu0 0.0
      %357 = vmatpush2.msra.mxu0 0.0
      %358 = vmatprep.subr.mxu0 0.0
      %359 = vmatpush2.msra.mxu0 0.0
      %360 = vmatprep.subr.mxu0 0.0
      %361 = vmatpush2.msra.mxu0 0.0
      %362 = vmatprep.subr.mxu0 0.0
      %363 = vmatpush2.msra.mxu0 0.0
      %364 = vmatprep.subr.mxu0 0.0
      %365 = vmatpush2.msra.mxu0 0.0
      %366 = vmatprep.subr.mxu0 0.0
      %367 = vmatpush2.msra.mxu0 0.0
      %368 = vmatprep.subr.mxu0 0.0
      %369 = vmatpush2.msra.mxu0 0.0
      %370 = vmatprep.subr.mxu0 0.0
      %371 = vmatpush2.msra.mxu0 0.0
      %372 = vmatprep.subr.mxu0 0.0
      %373 = vmatpush2.msra.mxu0 0.0
      %374 = vmatprep.subr.mxu0 0.0
      %375 = vmatpush2.msra.mxu0 0.0
      %376 = vmatprep.subr.mxu0 0.0
      %377 = vmatpush2.msra.mxu0 0.0
      %378 = vmatprep.mubr.f32.mxu0 0.0
      %379 = vmatmul.mubr.f32.gmra.mxu0 %v291
      %v380 = vpop.f32.mrf.mxu0
      %v381 = vadd.f32 0.0, %v380
      %v382 = vpop.f32.mrf.mxu0
      %383 = vmatprep.mubr.f32.mxu0 0.0
      %384 = vmatmul.mubr.f32.gmra.mxu0 %v294
      %v385 = vpop.f32.mrf.mxu0
      %v386 = vadd.f32 0.0, %v385
      %v387 = vpop.f32.mrf.mxu0
      %388 = vmatprep.mubr.f32.mxu0 0.0
      %389 = vmatmul.mubr.f32.gmra.mxu0 %v297
      %v390 = vpop.f32.mrf.mxu0
      %v391 = vadd.f32 0.0, %v390
      %v392 = vpop.f32.mrf.mxu0
      %393 = vmatprep.mubr.f32.mxu0 0.0
      %394 = vmatmul.mubr.f32.gmra.mxu0 %v300
      %v395 = vpop.f32.mrf.mxu0
      %v396 = vadd.f32 0.0, %v395
      %v397 = vpop.f32.mrf.mxu0
      %398 = vmatprep.mubr.f32.mxu0 0.0
      %399 = vmatmul.mubr.f32.gmra.mxu0 %v303
      %v400 = vpop.f32.mrf.mxu0
      %v401 = vadd.f32 0.0, %v400
      %v402 = vpop.f32.mrf.mxu0
      %403 = vmatprep.mubr.f32.mxu0 0.0
      %404 = vmatmul.mubr.f32.gmra.mxu0 %v306
      %v405 = vpop.f32.mrf.mxu0
      %v406 = vadd.f32 0.0, %v405
      %v407 = vpop.f32.mrf.mxu0
      %408 = vmatprep.mubr.f32.mxu0 0.0
      %409 = vmatmul.mubr.f32.gmra.mxu0 %v309
      %v410 = vpop.f32.mrf.mxu0
      %v411 = vadd.f32 0.0, %v410
      %v412 = vpop.f32.mrf.mxu0
      %413 = vmatprep.mubr.f32.mxu0 0.0
      %414 = vmatmul.mubr.f32.gmra.mxu0 %v312
      %v415 = vpop.f32.mrf.mxu0
      %v416 = vadd.f32 0.0, %v415
      %v417 = vpop.f32.mrf.mxu0
      %418 = vdwg.mxu0
      %vm419 = vcmask 523264
      %v420 = vsel %vm419, %v381, -inf
      %421 = vmax.xlane.f32.xlu0 %v420
      %v422 = vpop.xlane.xlu0 %421
      %v423 = vsel %vm419, %v386, -inf
      %424 = vmax.xlane.f32.xlu0 %v423
      %v425 = vpop.xlane.xlu0 %424
      %v426 = vsel %vm419, %v391, -inf
      %427 = vmax.xlane.f32.xlu0 %v426
      %v428 = vpop.xlane.xlu0 %427
      %v429 = vsel %vm419, %v396, -inf
      %430 = vmax.xlane.f32.xlu0 %v429
      %v431 = vpop.xlane.xlu0 %430
      %v432 = vsel %vm419, %v401, -inf
      %433 = vmax.xlane.f32.xlu0 %v432
      %v434 = vpop.xlane.xlu0 %433
      %v435 = vsel %vm419, %v406, -inf
      %436 = vmax.xlane.f32.xlu0 %v435
      %v437 = vpop.xlane.xlu0 %436
      %v438 = vsel %vm419, %v411, -inf
      %439 = vmax.xlane.f32.xlu0 %v438
      %v440 = vpop.xlane.xlu0 %439
      %v441 = vsel %vm419, %v416, -inf
      %442 = vmax.xlane.f32.xlu0 %v441
      %v443 = vpop.xlane.xlu0 %442
      %v444 = vsub.f32 %v381, %v422
      %v445 = vsub.f32 %v386, %v425
      %v446 = vsub.f32 %v391, %v428
      %v447 = vsub.f32 %v396, %v431
      %v448 = vsub.f32 %v401, %v434
      %v449 = vsub.f32 %v406, %v437
      %v450 = vsub.f32 %v411, %v440
      %v451 = vsub.f32 %v416, %v443
      %v452 = vmul.f32 %v444, 1.442695
      %v453 = vpow.pop %v452
      %v454 = vmul.f32 %v445, 1.442695
      %v455 = vpow.pop %v454
      %v456 = vmul.f32 %v446, 1.442695
      %v457 = vpow.pop %v456
      %v458 = vmul.f32 %v447, 1.442695
      %v459 = vpow.pop %v458
      %v460 = vmul.f32 %v448, 1.442695
      %v461 = vpow.pop %v460
      %v462 = vmul.f32 %v449, 1.442695
      %v463 = vpow.pop %v462
      %v464 = vmul.f32 %v450, 1.442695
      %v465 = vpow.pop %v464
      %v466 = vmul.f32 %v451, 1.442695
      %v467 = vpow.pop %v466
      %v468 = vsel %vm419, %v453, 0.0
      %469 = vadd.xlane.f32.xlu0 %v468
      %v470 = vpop.xlane.xlu0 %469
      %v471 = vsel %vm419, %v455, 0.0
      %472 = vadd.xlane.f32.xlu0 %v471
      %v473 = vpop.xlane.xlu0 %472
      %v474 = vsel %vm419, %v457, 0.0
      %475 = vadd.xlane.f32.xlu0 %v474
      %v476 = vpop.xlane.xlu0 %475
      %v477 = vsel %vm419, %v459, 0.0
      %478 = vadd.xlane.f32.xlu0 %v477
      %v479 = vpop.xlane.xlu0 %478
      %v480 = vsel %vm419, %v461, 0.0
      %481 = vadd.xlane.f32.xlu0 %v480
      %v482 = vpop.xlane.xlu0 %481
      %v483 = vsel %vm419, %v463, 0.0
      %484 = vadd.xlane.f32.xlu0 %v483
      %v485 = vpop.xlane.xlu0 %484
      %v486 = vsel %vm419, %v465, 0.0
      %487 = vadd.xlane.f32.xlu0 %v486
      %v488 = vpop.xlane.xlu0 %487
      %v489 = vsel %vm419, %v467, 0.0
      %490 = vadd.xlane.f32.xlu0 %v489
      %v491 = vpop.xlane.xlu0 %490
      %v492 = vrcp.pop %v470
      %v493 = vrcp.pop %v473
      %v494 = vrcp.pop %v476
      %v495 = vrcp.pop %v479
      %v496 = vrcp.pop %v482
      %v497 = vrcp.pop %v485
      %v498 = vrcp.pop %v488
      %v499 = vrcp.pop %v491
      %v500 = vmul.f32 %v453, %v492
      %v501 = vmul.f32 %v455, %v493
      %v502 = vmul.f32 %v457, %v494
      %v503 = vmul.f32 %v459, %v495
      %v504 = vmul.f32 %v461, %v496
      %v505 = vmul.f32 %v463, %v497
      %v506 = vmul.f32 %v465, %v498
      %v507 = vmul.f32 %v467, %v499
      %v508 = vld [vmem:[%s3] sm:$0xff]
      %v509 = vld [vmem:[%s3 + $0x8] sm:$0xff]
      %v510 = vld [vmem:[%s3 + $0x10] sm:$0xff]
      %v511 = vld [vmem:[%s3 + $0x18] sm:$0xff]
      %v512 = vld [vmem:[%s3 + $0x20] sm:$0xff]
      %v513 = vld [vmem:[%s3 + $0x28] sm:$0xff]
      %v514 = vld [vmem:[%s3 + $0x30] sm:$0xff]
      %v515 = vld [vmem:[%s3 + $0x38] sm:$0xff]
      %v517 = vsel %vm419, %v500, 0
      %v520 = vsel %vm419, %v501, 0
      %v523 = vsel %vm419, %v502, 0
      %v526 = vsel %vm419, %v503, 0
      %v529 = vsel %vm419, %v504, 0
      %v532 = vsel %vm419, %v505, 0
      %v535 = vsel %vm419, %v506, 0
      %v538 = vsel %vm419, %v507, 0
      %540 = vmatprep.subr.mxu0 0.0
      %541 = vmatpush1.msra.mxu0 0.0
      %542 = vmatprep.subr.mxu0 0.0
      %543 = vmatpush1.msra.mxu0 0.0
      %544 = vmatprep.subr.mxu0 0.0
      %545 = vmatpush1.msra.mxu0 0.0
      %546 = vmatprep.subr.mxu0 0.0
      %547 = vmatpush1.msra.mxu0 0.0
      %548 = vmatprep.subr.mxu0 0.0
      %549 = vmatpush1.msra.mxu0 0.0
      %550 = vmatprep.subr.mxu0 0.0
      %551 = vmatpush1.msra.mxu0 0.0
      %552 = vmatprep.subr.mxu0 0.0
      %553 = vmatpush1.msra.mxu0 0.0
      %554 = vmatprep.subr.mxu0 0.0
      %555 = vmatpush1.msra.mxu0 0.0
      %556 = vmatprep.subr.mxu0 0.0
      %557 = vmatpush1.msra.mxu0 %v515
      %558 = vmatprep.subr.mxu0 0.0
      %559 = vmatpush1.msra.mxu0 %v514
      %560 = vmatprep.subr.mxu0 0.0
      %561 = vmatpush1.msra.mxu0 %v513
      %562 = vmatprep.subr.mxu0 0.0
      %563 = vmatpush1.msra.mxu0 %v512
      %564 = vmatprep.subr.mxu0 0.0
      %565 = vmatpush1.msra.mxu0 %v511
      %566 = vmatprep.subr.mxu0 0.0
      %567 = vmatpush1.msra.mxu0 %v510
      %568 = vmatprep.subr.mxu0 0.0
      %569 = vmatpush1.msra.mxu0 %v509
      %570 = vmatprep.subr.mxu0 0.0
      %571 = vmatpush1.msra.mxu0 %v508
      %572 = vmatprep.subr.mxu0 0.0
      %573 = vmatpush2.msra.mxu0 0.0
      %574 = vmatprep.subr.mxu0 0.0
      %575 = vmatpush2.msra.mxu0 0.0
      %576 = vmatprep.subr.mxu0 0.0
      %577 = vmatpush2.msra.mxu0 0.0
      %578 = vmatprep.subr.mxu0 0.0
      %579 = vmatpush2.msra.mxu0 0.0
      %580 = vmatprep.subr.mxu0 0.0
      %581 = vmatpush2.msra.mxu0 0.0
      %582 = vmatprep.subr.mxu0 0.0
      %583 = vmatpush2.msra.mxu0 0.0
      %584 = vmatprep.subr.mxu0 0.0
      %585 = vmatpush2.msra.mxu0 0.0
      %586 = vmatprep.subr.mxu0 0.0
      %587 = vmatpush2.msra.mxu0 0.0
      %588 = vmatprep.subr.mxu0 0.0
      %589 = vmatpush2.msra.mxu0 0.0
      %590 = vmatprep.subr.mxu0 0.0
      %591 = vmatpush2.msra.mxu0 0.0
      %592 = vmatprep.subr.mxu0 0.0
      %593 = vmatpush2.msra.mxu0 0.0
      %594 = vmatprep.subr.mxu0 0.0
      %595 = vmatpush2.msra.mxu0 0.0
      %596 = vmatprep.subr.mxu0 0.0
      %597 = vmatpush2.msra.mxu0 0.0
      %598 = vmatprep.subr.mxu0 0.0
      %599 = vmatpush2.msra.mxu0 0.0
      %600 = vmatprep.subr.mxu0 0.0
      %601 = vmatpush2.msra.mxu0 0.0
      %602 = vmatprep.subr.mxu0 0.0
      %603 = vmatpush2.msra.mxu0 0.0
      %604 = vmatprep.mubr.f32.mxu0 0.0
      %605 = vmatmul.mubr.f32.gmra.mxu0 %v517
      %v606 = vpop.f32.mrf.mxu0
      %v607 = vadd.f32 0.0, %v606
      %v608 = vpop.f32.mrf.mxu0
      %609 = vmatprep.mubr.f32.mxu0 0.0
      %610 = vmatmul.mubr.f32.gmra.mxu0 %v520
      %v611 = vpop.f32.mrf.mxu0
      %v612 = vadd.f32 0.0, %v611
      %v613 = vpop.f32.mrf.mxu0
      %614 = vmatprep.mubr.f32.mxu0 0.0
      %615 = vmatmul.mubr.f32.gmra.mxu0 %v523
      %v616 = vpop.f32.mrf.mxu0
      %v617 = vadd.f32 0.0, %v616
      %v618 = vpop.f32.mrf.mxu0
      %619 = vmatprep.mubr.f32.mxu0 0.0
      %620 = vmatmul.mubr.f32.gmra.mxu0 %v526
      %v621 = vpop.f32.mrf.mxu0
      %v622 = vadd.f32 0.0, %v621
      %v623 = vpop.f32.mrf.mxu0
      %624 = vmatprep.mubr.f32.mxu0 0.0
      %625 = vmatmul.mubr.f32.gmra.mxu0 %v529
      %v626 = vpop.f32.mrf.mxu0
      %v627 = vadd.f32 0.0, %v626
      %v628 = vpop.f32.mrf.mxu0
      %629 = vmatprep.mubr.f32.mxu0 0.0
      %630 = vmatmul.mubr.f32.gmra.mxu0 %v532
      %v631 = vpop.f32.mrf.mxu0
      %v632 = vadd.f32 0.0, %v631
      %v633 = vpop.f32.mrf.mxu0
      %634 = vmatprep.mubr.f32.mxu0 0.0
      %635 = vmatmul.mubr.f32.gmra.mxu0 %v535
      %v636 = vpop.f32.mrf.mxu0
      %v637 = vadd.f32 0.0, %v636
      %v638 = vpop.f32.mrf.mxu0
      %639 = vmatprep.mubr.f32.mxu0 0.0
      %640 = vmatmul.mubr.f32.gmra.mxu0 %v538
      %v641 = vpop.f32.mrf.mxu0
      %v642 = vadd.f32 0.0, %v641
      %v643 = vpop.f32.mrf.mxu0
      %644 = vdwg.mxu0
      %645 = vst.msk [vmem:[%s221] sm:$0xff] %vm289, %v607
      %646 = vst.msk [vmem:[%s221 + $0x8] sm:$0xff] %vm289, %v612
      %647 = vst.msk [vmem:[%s221 + $0x10] sm:$0xff] %vm289, %v617
      %648 = vst.msk [vmem:[%s221 + $0x18] sm:$0xff] %vm289, %v622
      %649 = vst.msk [vmem:[%s221 + $0x20] sm:$0xff] %vm289, %v627
      %650 = vst.msk [vmem:[%s221 + $0x28] sm:$0xff] %vm289, %v632
      %651 = vst.msk [vmem:[%s221 + $0x30] sm:$0xff] %vm289, %v637
      %652 = vst.msk [vmem:[%s221 + $0x38] sm:$0xff] %vm289, %v642
      %s653 = smul.u32 8, %s15
      %p654 = scmp.lt.s32.totalorder %s653, 15
      %s655 = scalar_select %p654, %s653, 15
      %s656 = smul.addr %s655, 8
      %s657 = scalar_lea.vmem %s4, %s656
      // Predicated region
      $region37: #{gcea_forward.8} parent=35 // pred_check
        %p658 = pneg %p127
      $region38: #{gcea_forward.8} parent=35 // pred_check_branch
        %660 = sbr.rel (%p658) target = $region40
      $region39: #{gcea_forward.8} parent=35 // pred_region
        %s661 = smul.u32 8, %s15
      $region40: #{gcea_forward.8} parent=35 // pred_fallthru
        _
    $region36: #{gcea_forward.8} parent=5 // pred_fallthru
      _
    %p662 = scmp.le.s32.totalorder 2, %s10
    // Predicated region
    $region41: #{gcea_forward.8} parent=5 // pred_check
      %p663 = pneg %p662
    $region42: #{gcea_forward.8} parent=5 // pred_check_branch
      %665 = sbr.rel (%p663) target = $region44
    $region43: #{gcea_forward.8} parent=5 // pred_region
      %s666 = ssub.s32 %s10, 2
      // Predicated region
      $region45: #{gcea_forward.8} parent=43 // pred_check
        %p667 = pneg %p133
      $region46: #{gcea_forward.8} parent=43 // pred_check_branch
        %669 = sbr.rel (%p667) target = $region48
      $region47: #{gcea_forward.8} parent=43 // pred_region
        %s670 = smul.u32 8, %s16
        %p671 = scmp.lt.s32.totalorder %s670, 15
        %s672 = scalar_select %p671, %s670, 15
        %s673 = smul.addr %s672, 8
        %s674 = scalar_lea.vmem %s4, %s673
      $region48: #{gcea_forward.8} parent=43 // pred_fallthru
        _
    $region44: #{gcea_forward.8} parent=5 // pred_fallthru
      _
  $region6: #{gcea_forward.8} parent=0 // loop_footer
    %s14 = sadd.s32 1, %s10
  $region7: #{gcea_forward.8} parent=0 // loop_footer_branch
    %9 = sbr.rel target = $region3
  $region8: #{gcea_forward.8} parent=0 // loop_exit
    _

// kernel: gcea_forward.9
$region0: #{gcea_forward.9}
  #allocation0 [shape = 'u32[]', space=smem, size = 0x4, offset = 0x4, fixed_abs, tag = 'smem constant byte address 0x4 - core index']
  #allocation1 [shape = 'u32[144,128]{1,0:T(1,128)}', space=vmem, size = 0x12000, scoped, tag = 'internal scratch']
  %s0 = inlined_call_operand.vmem [shape: f32[2,16,326], index: 0, kind: input, shape index: {}]
  %s1 = inlined_call_operand.vmem [shape: f32[16,144], index: 1, kind: input, shape index: {}]
  %s2 = inlined_call_operand.vmem [shape: f32[16,1], index: 2, kind: input, shape index: {}]
  %s3 = inlined_call_operand.vmem [shape: f32[2,16,256], index: 3, kind: output, shape index: {}]
  %s4 = sld [smem:[#allocation0]]
  $region45: #{gcea_forward.9} parent=0
    _
  %s6 = ssub.s32 1, %s4
  %s7 = scalar_select 0, %s6, %s4
  loop: start=0, step=1, limit=4
  $region2: #{gcea_forward.9} parent=0 // loop_pre_header
    _
  $region3: #{gcea_forward.9} parent=0 // loop_header
    %s9 = sphi 0, %s13
    %p10 = scmp.ge.s32.totalorder %s9, 4
    %s19 = sphi 0, %s21
    %s22 = sphi 0, %s19
    %s23 = sphi 0, %s22
    %s39 = sphi 0, %s23
    %s43 = sphi 0, %s43
    %s45 = sphi 0, %s43
    %s46 = sphi 0, %s45
    %s60 = sphi 0, %s46
    %s64 = sphi 0, %s64
    %s66 = sphi 0, %s64
    %s67 = sphi 0, %s66
    %s81 = sphi 0, %s67
    %s87 = sphi 0, %s89
    %s90 = sphi 0, %s87
    %s91 = sphi 0, %s90
    %s107 = sphi 0, %s91
  $region4: #{gcea_forward.9} parent=0 // loop_header_branch
    %12 = sbr.rel (%p10) target = $region8
  $region5: #{gcea_forward.9} parent=0 // loop_body
    %s14 = ssub.s32 %s9, 1
    %s15 = ssub.s32 %s9, 2
    %s16 = sadd.s32 %s9, 1
    %s17 = ssub.s32 %s9, %s16
    %p18 = scmp.eq.s32.totalorder %s17, 0
    %s20 = sadd.s32 %s19, 1
    %s21 = scalar_select %p18, %s19, %s20
    %p24 = pneg %p18
    %p25 = scmp.eq.s32.totalorder %s9, 1
    %p26 = por %p24, %p25
    %p27 = scmp.ne.s32.totalorder %s19, %s22
    %p28 = scmp.eq.s32.totalorder %s9, 0
    %p29 = por %p27, %p28
    %p30 = scmp.ne.s32.totalorder %s19, %s22
    %p31 = scmp.eq.s32.totalorder %s14, 1
    %p32 = por %p30, %p31
    %p33 = scmp.ne.s32.totalorder %s22, %s23
    %p34 = scmp.eq.s32.totalorder %s14, 0
    %p35 = por %p33, %p34
    %p36 = scmp.ne.s32.totalorder %s22, %s23
    %p37 = scmp.eq.s32.totalorder %s15, 1
    %p38 = por %p36, %p37
    %p40 = scmp.ne.s32.totalorder %s23, %s39
    %p41 = scmp.eq.s32.totalorder %s15, 0
    %p42 = por %p40, %p41
    %s44 = sadd.s32 %s43, 1
    %p47 = scmp.eq.s32.totalorder %s9, 1
    %p48 = scmp.ne.s32.totalorder %s43, %s45
    %p49 = scmp.eq.s32.totalorder %s9, 0
    %p50 = por %p48, %p49
    %p51 = scmp.ne.s32.totalorder %s43, %s45
    %p52 = scmp.eq.s32.totalorder %s14, 1
    %p53 = por %p51, %p52
    %p54 = scmp.ne.s32.totalorder %s45, %s46
    %p55 = scmp.eq.s32.totalorder %s14, 0
    %p56 = por %p54, %p55
    %p57 = scmp.ne.s32.totalorder %s45, %s46
    %p58 = scmp.eq.s32.totalorder %s15, 1
    %p59 = por %p57, %p58
    %p61 = scmp.ne.s32.totalorder %s46, %s60
    %p62 = scmp.eq.s32.totalorder %s15, 0
    %p63 = por %p61, %p62
    %s65 = sadd.s32 %s64, 1
    %p68 = scmp.eq.s32.totalorder %s9, 1
    %p69 = scmp.ne.s32.totalorder %s64, %s66
    %p70 = scmp.eq.s32.totalorder %s9, 0
    %p71 = por %p69, %p70
    %p72 = scmp.ne.s32.totalorder %s64, %s66
    %p73 = scmp.eq.s32.totalorder %s14, 1
    %p74 = por %p72, %p73
    %p75 = scmp.ne.s32.totalorder %s66, %s67
    %p76 = scmp.eq.s32.totalorder %s14, 0
    %p77 = por %p75, %p76
    %p78 = scmp.ne.s32.totalorder %s66, %s67
    %p79 = scmp.eq.s32.totalorder %s15, 1
    %p80 = por %p78, %p79
    %p82 = scmp.ne.s32.totalorder %s67, %s81
    %p83 = scmp.eq.s32.totalorder %s15, 0
    %p84 = por %p82, %p83
    %s85 = ssub.s32 %s9, %s16
    %p86 = scmp.eq.s32.totalorder %s85, 0
    %s88 = sadd.s32 %s87, 1
    %s89 = scalar_select %p86, %s87, %s88
    %p92 = pneg %p86
    %p93 = scmp.eq.s32.totalorder %s9, 1
    %p94 = por %p92, %p93
    %p95 = scmp.ne.s32.totalorder %s87, %s90
    %p96 = scmp.eq.s32.totalorder %s9, 0
    %p97 = por %p95, %p96
    %p98 = scmp.ne.s32.totalorder %s87, %s90
    %p99 = scmp.eq.s32.totalorder %s14, 1
    %p100 = por %p98, %p99
    %p101 = scmp.ne.s32.totalorder %s90, %s91
    %p102 = scmp.eq.s32.totalorder %s14, 0
    %p103 = por %p101, %p102
    %p104 = scmp.ne.s32.totalorder %s90, %s91
    %p105 = scmp.eq.s32.totalorder %s15, 1
    %p106 = por %p104, %p105
    %p108 = scmp.ne.s32.totalorder %s91, %s107
    %p109 = scmp.eq.s32.totalorder %s15, 0
    %p110 = por %p108, %p109
    %p111 = scmp.le.s32.totalorder 1, %s9
    %p112 = scmp.lt.s32.totalorder %s9, 3
    %p113 = pnand %p111, %p112
    %p114 = pneg %p113
    // Predicated region
    $region9: #{gcea_forward.9} parent=5 // pred_check
      _
    $region10: #{gcea_forward.9} parent=5 // pred_check_branch
      %116 = sbr.rel (%p113) target = $region12
    $region11: #{gcea_forward.9} parent=5 // pred_region
      %s117 = ssub.s32 %s9, 1
      // Predicated region
      $region13: #{gcea_forward.9} parent=11 // pred_check
        %p118 = pneg %p56
      $region14: #{gcea_forward.9} parent=11 // pred_check_branch
        %120 = sbr.rel (%p118) target = $region16
      $region15: #{gcea_forward.9} parent=11 // pred_region
        _
      $region16: #{gcea_forward.9} parent=11 // pred_fallthru
        _
      // Predicated region
      $region17: #{gcea_forward.9} parent=11 // pred_check
        %p121 = pneg %p77
      $region18: #{gcea_forward.9} parent=11 // pred_check_branch
        %123 = sbr.rel (%p121) target = $region20
      $region19: #{gcea_forward.9} parent=11 // pred_region
        _
      $region20: #{gcea_forward.9} parent=11 // pred_fallthru
        _
    $region12: #{gcea_forward.9} parent=5 // pred_fallthru
      _
    %p124 = scmp.lt.s32.totalorder %s9, 2
    // Predicated region
    $region21: #{gcea_forward.9} parent=5 // pred_check
      %p125 = pneg %p124
    $region22: #{gcea_forward.9} parent=5 // pred_check_branch
      %127 = sbr.rel (%p125) target = $region24
    $region23: #{gcea_forward.9} parent=5 // pred_region
      // Predicated region
      $region25: #{gcea_forward.9} parent=23 // pred_check
        %p128 = pneg %p29
      $region26: #{gcea_forward.9} parent=23 // pred_check_branch
        %130 = sbr.rel (%p128) target = $region28
      $region27: #{gcea_forward.9} parent=23 // pred_region
        %p131 = scmp.lt.s32.totalorder %s9, 1
        %s132 = scalar_select %p131, %s9, 1
        %s133 = smul.addr %s132, 6
        %s134 = smul.addr %s133, 8
        %s135 = scalar_lea.vmem %s0, %s134
      $region28: #{gcea_forward.9} parent=23 // pred_fallthru
        _
    $region24: #{gcea_forward.9} parent=5 // pred_fallthru
      _
    %p136 = scmp.le.s32.totalorder 1, %s9
    %p137 = scmp.lt.s32.totalorder %s9, 3
    %p138 = pnand %p136, %p137
    %p139 = pneg %p138
    // Predicated region
    $region29: #{gcea_forward.9} parent=5 // pred_check
      _
    $region30: #{gcea_forward.9} parent=5 // pred_check_branch
      %141 = sbr.rel (%p138) target = $region32
    $region31: #{gcea_forward.9} parent=5 // pred_region
      %s142 = ssub.s32 %s9, 1
      %p143 = scmp.lt.s32.totalorder %s14, 1
      %s144 = scalar_select %p143, %s14, 1
      %s145 = smul.addr %s144, 6
      %s146 = smul.addr %s145, 8
      %s147 = scalar_lea.vmem %s0, %s146
      %p148 = pneg %p35
      %p149 = pneg %p32
      %p150 = pneg %p56
      %p151 = pneg %p53
      %p152 = pneg %p77
      %p153 = pneg %p74
      %p154 = pneg %p103
      %p155 = pneg %p100
      %p156 = scmp.lt.s32.totalorder %s14, 1
      %s157 = scalar_select %p156, %s14, 1
      %s158 = smul.addr %s157, 4
      %s159 = smul.addr %s158, 8
      %s160 = scalar_lea.vmem %s3, %s159
      %p161 = scmp.lt.s32.totalorder %s14, 1
      %s162 = scalar_select %p161, %s14, 1
      %s163 = smul.addr %s162, 6
      %s164 = smul.addr %s163, 8
      %s165 = scalar_lea.vmem %s0, %s164
      %p166 = scmp.lt.s32.totalorder %s14, 1
      %s167 = scalar_select %p166, %s14, 1
      %s168 = smul.addr %s167, 4
      %s169 = smul.addr %s168, 8
      %s170 = scalar_lea.vmem %s3, %s169
      %v171 = vld [vmem:[%s165] sm:$0xff]
      %v172 = vld [vmem:[%s165 + $0x8] sm:$0xff]
      %v173 = vld [vmem:[%s165 + $0x10] sm:$0xff]
      %v174 = vld [vmem:[%s165 + $0x18] sm:$0xff]
      %v175 = vld [vmem:[%s165 + $0x20] sm:$0xff]
      %v176 = vld [vmem:[%s165 + $0x28] sm:$0xff]
      %183 = vrot.lane.b32.xlu0 %v171, 127
      %v184 = vpop.permute.xlu0 %183
      %185 = vrot.lane.b32.xlu0 %v172, 127
      %v186 = vpop.permute.xlu0 %185
      %187 = vrot.lane.b32.xlu0 %v173, 127
      %v188 = vpop.permute.xlu0 %187
      %189 = vrot.lane.b32.xlu0 %v174, 127
      %v190 = vpop.permute.xlu0 %189
      %191 = vrot.lane.b32.xlu0 %v175, 127
      %v192 = vpop.permute.xlu0 %191
      %193 = vrot.lane.b32.xlu0 %v176, 127
      %v194 = vpop.permute.xlu0 %193
      %vm195 = vcmask 1039360
      %v196 = vsel %vm195, %v184, %v186
      %v197 = vsel %vm195, %v186, %v188
      %v198 = vsel %vm195, %v190, %v192
      %v199 = vsel %vm195, %v192, %v194
      %206 = vrot.lane.b32.xlu0 %v171, 126
      %v207 = vpop.permute.xlu0 %206
      %208 = vrot.lane.b32.xlu0 %v172, 126
      %v209 = vpop.permute.xlu0 %208
      %210 = vrot.lane.b32.xlu0 %v173, 126
      %v211 = vpop.permute.xlu0 %210
      %212 = vrot.lane.b32.xlu0 %v174, 126
      %v213 = vpop.permute.xlu0 %212
      %214 = vrot.lane.b32.xlu0 %v175, 126
      %v215 = vpop.permute.xlu0 %214
      %216 = vrot.lane.b32.xlu0 %v176, 126
      %v217 = vpop.permute.xlu0 %216
      %vm218 = vcmask 1031168
      %v219 = vsel %vm218, %v207, %v209
      %v220 = vsel %vm218, %v209, %v211
      %v221 = vsel %vm218, %v213, %v215
      %v222 = vsel %vm218, %v215, %v217
      %229 = vrot.lane.b32.xlu0 %v171, 110
      %v230 = vpop.permute.xlu0 %229
      %231 = vrot.lane.b32.xlu0 %v172, 110
      %v232 = vpop.permute.xlu0 %231
      %233 = vrot.lane.b32.xlu0 %v173, 110
      %v234 = vpop.permute.xlu0 %233
      %235 = vrot.lane.b32.xlu0 %v174, 110
      %v236 = vpop.permute.xlu0 %235
      %237 = vrot.lane.b32.xlu0 %v175, 110
      %v238 = vpop.permute.xlu0 %237
      %239 = vrot.lane.b32.xlu0 %v176, 110
      %v240 = vpop.permute.xlu0 %239
      %vm241 = vcmask 900096
      %v242 = vsel %vm241, %v230, %v232
      %v243 = vsel %vm241, %v232, %v234
      %v244 = vsel %vm241, %v236, %v238
      %v245 = vsel %vm241, %v238, %v240
      %252 = vrot.lane.b32.xlu0 %v171, 109
      %v253 = vpop.permute.xlu0 %252
      %254 = vrot.lane.b32.xlu0 %v172, 109
      %v255 = vpop.permute.xlu0 %254
      %256 = vrot.lane.b32.xlu0 %v173, 109
      %v257 = vpop.permute.xlu0 %256
      %258 = vrot.lane.b32.xlu0 %v174, 109
      %v259 = vpop.permute.xlu0 %258
      %260 = vrot.lane.b32.xlu0 %v175, 109
      %v261 = vpop.permute.xlu0 %260
      %262 = vrot.lane.b32.xlu0 %v176, 109
      %v263 = vpop.permute.xlu0 %262
      %vm264 = vcmask 891904
      %v265 = vsel %vm264, %v253, %v255
      %v266 = vsel %vm264, %v255, %v257
      %v267 = vsel %vm264, %v259, %v261
      %v268 = vsel %vm264, %v261, %v263
      %275 = vrot.lane.b32.xlu0 %v171, 108
      %v276 = vpop.permute.xlu0 %275
      %277 = vrot.lane.b32.xlu0 %v172, 108
      %v278 = vpop.permute.xlu0 %277
      %279 = vrot.lane.b32.xlu0 %v173, 108
      %v280 = vpop.permute.xlu0 %279
      %281 = vrot.lane.b32.xlu0 %v174, 108
      %v282 = vpop.permute.xlu0 %281
      %283 = vrot.lane.b32.xlu0 %v175, 108
      %v284 = vpop.permute.xlu0 %283
      %285 = vrot.lane.b32.xlu0 %v176, 108
      %v286 = vpop.permute.xlu0 %285
      %vm287 = vcmask 883712
      %v288 = vsel %vm287, %v276, %v278
      %v289 = vsel %vm287, %v278, %v280
      %v290 = vsel %vm287, %v282, %v284
      %v291 = vsel %vm287, %v284, %v286
      %298 = vrot.lane.b32.xlu0 %v171, 92
      %v299 = vpop.permute.xlu0 %298
      %300 = vrot.lane.b32.xlu0 %v172, 92
      %v301 = vpop.permute.xlu0 %300
      %302 = vrot.lane.b32.xlu0 %v173, 92
      %v303 = vpop.permute.xlu0 %302
      %304 = vrot.lane.b32.xlu0 %v174, 92
      %v305 = vpop.permute.xlu0 %304
      %306 = vrot.lane.b32.xlu0 %v175, 92
      %v307 = vpop.permute.xlu0 %306
      %308 = vrot.lane.b32.xlu0 %v176, 92
      %v309 = vpop.permute.xlu0 %308
      %vm310 = vcmask 752640
      %v311 = vsel %vm310, %v299, %v301
      %v312 = vsel %vm310, %v301, %v303
      %v313 = vsel %vm310, %v305, %v307
      %v314 = vsel %vm310, %v307, %v309
      %321 = vrot.lane.b32.xlu0 %v171, 91
      %v322 = vpop.permute.xlu0 %321
      %323 = vrot.lane.b32.xlu0 %v172, 91
      %v324 = vpop.permute.xlu0 %323
      %325 = vrot.lane.b32.xlu0 %v173, 91
      %v326 = vpop.permute.xlu0 %325
      %327 = vrot.lane.b32.xlu0 %v174, 91
      %v328 = vpop.permute.xlu0 %327
      %329 = vrot.lane.b32.xlu0 %v175, 91
      %v330 = vpop.permute.xlu0 %329
      %331 = vrot.lane.b32.xlu0 %v176, 91
      %v332 = vpop.permute.xlu0 %331
      %vm333 = vcmask 744448
      %v334 = vsel %vm333, %v322, %v324
      %v335 = vsel %vm333, %v324, %v326
      %v336 = vsel %vm333, %v328, %v330
      %v337 = vsel %vm333, %v330, %v332
      %344 = vrot.lane.b32.xlu0 %v171, 90
      %v345 = vpop.permute.xlu0 %344
      %346 = vrot.lane.b32.xlu0 %v172, 90
      %v347 = vpop.permute.xlu0 %346
      %348 = vrot.lane.b32.xlu0 %v173, 90
      %v349 = vpop.permute.xlu0 %348
      %350 = vrot.lane.b32.xlu0 %v174, 90
      %v351 = vpop.permute.xlu0 %350
      %352 = vrot.lane.b32.xlu0 %v175, 90
      %v353 = vpop.permute.xlu0 %352
      %354 = vrot.lane.b32.xlu0 %v176, 90
      %v355 = vpop.permute.xlu0 %354
      %vm356 = vcmask 736256
      %v357 = vsel %vm356, %v345, %v347
      %v358 = vsel %vm356, %v347, %v349
      %v359 = vsel %vm356, %v351, %v353
      %v360 = vsel %vm356, %v353, %v355
      %v367 = vld [vmem:[%s1] sm:$0xff]
      %v368 = vld [vmem:[%s1 + $0x8] sm:$0xff]
      %v369 = vld [vmem:[%s1 + $0x10] sm:$0xff]
      %v370 = vld [vmem:[%s1 + $0x18] sm:$0xff]
      %v371 = vld [vmem:[%s2] sm:$0xff]
      %v372 = vld [vmem:[%s2 + $0x8] sm:$0xff]
      %374 = vset.pattern.permute.xlu0 0
      %375 = vperm.xlu0 %374, %v371
      %v376 = vpop.permute.xlu0 %375
      %379 = vset.pattern.permute.xlu0 0
      %380 = vperm.xlu0 %379, %v372
      %v381 = vpop.permute.xlu0 %380
      %vm383 = vcmask 130048
      %v385 = vsel %vm383, %v368, 0
      %v388 = vsel %vm383, %v370, 0
      %390 = vmatprep.subr.mxu0 %v337
      %391 = vmatpush1.msra.mxu0 %v336
      %392 = vmatprep.subr.mxu0 %v335
      %393 = vmatpush1.msra.mxu0 %v334
      %394 = vmatprep.subr.mxu0 %v314
      %395 = vmatpush1.msra.mxu0 %v313
      %396 = vmatprep.subr.mxu0 %v312
      %397 = vmatpush1.msra.mxu0 %v311
      %398 = vmatprep.subr.mxu0 %v291
      %399 = vmatpush1.msra.mxu0 %v290
      %400 = vmatprep.subr.mxu0 %v289
      %401 = vmatpush1.msra.mxu0 %v288
      %402 = vmatprep.subr.mxu0 %v268
      %403 = vmatpush1.msra.mxu0 %v267
      %404 = vmatprep.subr.mxu0 %v266
      %405 = vmatpush1.msra.mxu0 %v265
      %406 = vmatprep.subr.mxu0 %v245
      %407 = vmatpush1.msra.mxu0 %v244
      %408 = vmatprep.subr.mxu0 %v243
      %409 = vmatpush1.msra.mxu0 %v242
      %410 = vmatprep.subr.mxu0 %v222
      %411 = vmatpush1.msra.mxu0 %v221
      %412 = vmatprep.subr.mxu0 %v220
      %413 = vmatpush1.msra.mxu0 %v219
      %414 = vmatprep.subr.mxu0 %v199
      %415 = vmatpush1.msra.mxu0 %v198
      %416 = vmatprep.subr.mxu0 %v197
      %417 = vmatpush1.msra.mxu0 %v196
      %418 = vmatprep.subr.mxu0 %v175
      %419 = vmatpush1.msra.mxu0 %v174
      %420 = vmatprep.subr.mxu0 %v172
      %421 = vmatpush1.msra.mxu0 %v171
      %422 = vmatprep.subr.mxu0 0.0
      %423 = vmatpush2.msra.mxu0 0.0
      %424 = vmatprep.subr.mxu0 0.0
      %425 = vmatpush2.msra.mxu0 0.0
      %426 = vmatprep.subr.mxu0 0.0
      %427 = vmatpush2.msra.mxu0 0.0
      %428 = vmatprep.subr.mxu0 0.0
      %429 = vmatpush2.msra.mxu0 0.0
      %430 = vmatprep.subr.mxu0 0.0
      %431 = vmatpush2.msra.mxu0 0.0
      %432 = vmatprep.subr.mxu0 0.0
      %433 = vmatpush2.msra.mxu0 0.0
      %434 = vmatprep.subr.mxu0 0.0
      %435 = vmatpush2.msra.mxu0 0.0
      %436 = vmatprep.subr.mxu0 0.0
      %437 = vmatpush2.msra.mxu0 0.0
      %438 = vmatprep.subr.mxu0 0.0
      %439 = vmatpush2.msra.mxu0 0.0
      %440 = vmatprep.subr.mxu0 0.0
      %441 = vmatpush2.msra.mxu0 0.0
      %442 = vmatprep.subr.mxu0 0.0
      %443 = vmatpush2.msra.mxu0 0.0
      %444 = vmatprep.subr.mxu0 0.0
      %445 = vmatpush2.msra.mxu0 0.0
      %446 = vmatprep.subr.mxu0 0.0
      %447 = vmatpush2.msra.mxu0 0.0
      %448 = vmatprep.subr.mxu0 0.0
      %449 = vmatpush2.msra.mxu0 0.0
      %450 = vmatprep.subr.mxu0 %v360
      %451 = vmatpush2.msra.mxu0 %v359
      %452 = vmatprep.subr.mxu0 %v358
      %453 = vmatpush2.msra.mxu0 %v357
      %454 = vmatprep.mubr.f32.mxu0 %v385
      %455 = vmatmul.mubr.f32.gmra.mxu0 %v367
      %v456 = vpop.f32.mrf.mxu0
      %v457 = vadd.f32 %v376, %v456
      %v458 = vpop.f32.mrf.mxu0
      %v459 = vadd.f32 %v376, %v458
      %460 = vmatprep.mubr.f32.mxu0 %v388
      %461 = vmatmul.mubr.f32.gmra.mxu0 %v369
      %v462 = vpop.f32.mrf.mxu0
      %v463 = vadd.f32 %v381, %v462
      %v464 = vpop.f32.mrf.mxu0
      %v465 = vadd.f32 %v381, %v464
      %466 = vdwg.mxu0
      %467 = vmatprep.subr.mxu0 0.0
      %468 = vmatpush1.msra.mxu0 %v332
      %469 = vmatprep.subr.mxu0 0.0
      %470 = vmatpush1.msra.mxu0 %v326
      %471 = vmatprep.subr.mxu0 0.0
      %472 = vmatpush1.msra.mxu0 %v309
      %473 = vmatprep.subr.mxu0 0.0
      %474 = vmatpush1.msra.mxu0 %v303
      %475 = vmatprep.subr.mxu0 0.0
      %476 = vmatpush1.msra.mxu0 %v286
      %477 = vmatprep.subr.mxu0 0.0
      %478 = vmatpush1.msra.mxu0 %v280
      %479 = vmatprep.subr.mxu0 0.0
      %480 = vmatpush1.msra.mxu0 %v263
      %481 = vmatprep.subr.mxu0 0.0
      %482 = vmatpush1.msra.mxu0 %v257
      %483 = vmatprep.subr.mxu0 0.0
      %484 = vmatpush1.msra.mxu0 %v240
      %485 = vmatprep.subr.mxu0 0.0
      %486 = vmatpush1.msra.mxu0 %v234
      %487 = vmatprep.subr.mxu0 0.0
      %488 = vmatpush1.msra.mxu0 %v217
      %489 = vmatprep.subr.mxu0 0.0
      %490 = vmatpush1.msra.mxu0 %v211
      %491 = vmatprep.subr.mxu0 0.0
      %492 = vmatpush1.msra.mxu0 %v194
      %493 = vmatprep.subr.mxu0 0.0
      %494 = vmatpush1.msra.mxu0 %v188
      %495 = vmatprep.subr.mxu0 0.0
      %496 = vmatpush1.msra.mxu0 %v176
      %497 = vmatprep.subr.mxu0 0.0
      %498 = vmatpush1.msra.mxu0 %v173
      %499 = vmatprep.subr.mxu0 0.0
      %500 = vmatpush2.msra.mxu0 0.0
      %501 = vmatprep.subr.mxu0 0.0
      %502 = vmatpush2.msra.mxu0 0.0
      %503 = vmatprep.subr.mxu0 0.0
      %504 = vmatpush2.msra.mxu0 0.0
      %505 = vmatprep.subr.mxu0 0.0
      %506 = vmatpush2.msra.mxu0 0.0
      %507 = vmatprep.subr.mxu0 0.0
      %508 = vmatpush2.msra.mxu0 0.0
      %509 = vmatprep.subr.mxu0 0.0
      %510 = vmatpush2.msra.mxu0 0.0
      %511 = vmatprep.subr.mxu0 0.0
      %512 = vmatpush2.msra.mxu0 0.0
      %513 = vmatprep.subr.mxu0 0.0
      %514 = vmatpush2.msra.mxu0 0.0
      %515 = vmatprep.subr.mxu0 0.0
      %516 = vmatpush2.msra.mxu0 0.0
      %517 = vmatprep.subr.mxu0 0.0
      %518 = vmatpush2.msra.mxu0 0.0
      %519 = vmatprep.subr.mxu0 0.0
      %520 = vmatpush2.msra.mxu0 0.0
      %521 = vmatprep.subr.mxu0 0.0
      %522 = vmatpush2.msra.mxu0 0.0
      %523 = vmatprep.subr.mxu0 0.0
      %524 = vmatpush2.msra.mxu0 0.0
      %525 = vmatprep.subr.mxu0 0.0
      %526 = vmatpush2.msra.mxu0 0.0
      %527 = vmatprep.subr.mxu0 0.0
      %528 = vmatpush2.msra.mxu0 %v355
      %529 = vmatprep.subr.mxu0 0.0
      %530 = vmatpush2.msra.mxu0 %v349
      %531 = vmatprep.mubr.f32.mxu0 %v385
      %532 = vmatmul.mubr.f32.gmra.mxu0 %v367
      %v533 = vpop.f32.mrf.mxu0
      %v534 = vadd.f32 %v376, %v533
      %v535 = vpop.f32.mrf.mxu0
      %536 = vmatprep.mubr.f32.mxu0 %v388
      %537 = vmatmul.mubr.f32.gmra.mxu0 %v369
      %v538 = vpop.f32.mrf.mxu0
      %v539 = vadd.f32 %v381, %v538
      %v540 = vpop.f32.mrf.mxu0
      %541 = vdwg.mxu0
      %542 = vst.msk [vmem:[%s170] sm:$0xff] %vm383, %v457
      %543 = vst.msk [vmem:[%s170 + $0x10] sm:$0xff] %vm383, %v463
      %546 = vrot.lane.b32.xlu0 %v457, 126
      %v547 = vpop.permute.xlu0 %546
      %548 = vrot.lane.b32.xlu0 %v463, 126
      %v549 = vpop.permute.xlu0 %548
      %vm552 = vcmask 261248
      %553 = vst.msk [vmem:[%s170] sm:$0xff] %vm552, %v547
      %554 = vst.msk [vmem:[%s170 + $0x10] sm:$0xff] %vm552, %v549
      %555 = vrot.lane.b32.xlu0 %v457, 124
      %v556 = vpop.permute.xlu0 %555
      %557 = vrot.lane.b32.xlu0 %v463, 124
      %v558 = vpop.permute.xlu0 %557
      %vm561 = vcmask 392448
      %562 = vst.msk [vmem:[%s170] sm:$0xff] %vm561, %v556
      %563 = vst.msk [vmem:[%s170 + $0x10] sm:$0xff] %vm561, %v558
      %564 = vrot.lane.b32.xlu0 %v457, 122
      %v565 = vpop.permute.xlu0 %564
      %566 = vrot.lane.b32.xlu0 %v463, 122
      %v567 = vpop.permute.xlu0 %566
      %vm570 = vcmask 523648
      %571 = vst.msk [vmem:[%s170] sm:$0xff] %vm570, %v565
      %572 = vst.msk [vmem:[%s170 + $0x10] sm:$0xff] %vm570, %v567
      %573 = vrot.lane.b32.xlu0 %v457, 120
      %v574 = vpop.permute.xlu0 %573
      %575 = vrot.lane.b32.xlu0 %v463, 120
      %v576 = vpop.permute.xlu0 %575
      %vm579 = vcmask 654848
      %580 = vst.msk [vmem:[%s170] sm:$0xff] %vm579, %v574
      %581 = vst.msk [vmem:[%s170 + $0x10] sm:$0xff] %vm579, %v576
      %582 = vrot.lane.b32.xlu0 %v457, 118
      %v583 = vpop.permute.xlu0 %582
      %584 = vrot.lane.b32.xlu0 %v463, 118
      %v585 = vpop.permute.xlu0 %584
      %vm588 = vcmask 786048
      %589 = vst.msk [vmem:[%s170] sm:$0xff] %vm588, %v583
      %590 = vst.msk [vmem:[%s170 + $0x10] sm:$0xff] %vm588, %v585
      %591 = vrot.lane.b32.xlu0 %v457, 116
      %v592 = vpop.permute.xlu0 %591
      %593 = vrot.lane.b32.xlu0 %v463, 116
      %v594 = vpop.permute.xlu0 %593
      %vm597 = vcmask 917248
      %598 = vst.msk [vmem:[%s170] sm:$0xff] %vm597, %v592
      %599 = vst.msk [vmem:[%s170 + $0x10] sm:$0xff] %vm597, %v594
      %602 = vrot.lane.b32.xlu0 %v457, 114
      %v603 = vpop.permute.xlu0 %602
      %604 = vrot.lane.b32.xlu0 %v459, 114
      %v605 = vpop.permute.xlu0 %604
      %606 = vrot.lane.b32.xlu0 %v463, 114
      %v607 = vpop.permute.xlu0 %606
      %608 = vrot.lane.b32.xlu0 %v465, 114
      %v609 = vpop.permute.xlu0 %608
      %vm610 = vcmask 932864
      %v611 = vsel %vm610, %v603, %v605
      %v612 = vsel %vm610, %v607, %v609
      %vm615 = vcmask 1048448
      %616 = vst.msk [vmem:[%s170] sm:$0xff] %vm615, %v611
      %617 = vst.msk [vmem:[%s170 + $0x10] sm:$0xff] %vm615, %v612
      %618 = vrot.lane.b32.xlu0 %v459, 112
      %v619 = vpop.permute.xlu0 %618
      %620 = vrot.lane.b32.xlu0 %v465, 112
      %v621 = vpop.permute.xlu0 %620
      %624 = vst.msk [vmem:[%s170 + $0x8] sm:$0xff] %vm383, %v619
      %625 = vst.msk [vmem:[%s170 + $0x18] sm:$0xff] %vm383, %v621
      %626 = vrot.lane.b32.xlu0 %v459, 110
      %v627 = vpop.permute.xlu0 %626
      %628 = vrot.lane.b32.xlu0 %v465, 110
      %v629 = vpop.permute.xlu0 %628
      %632 = vst.msk [vmem:[%s170 + $0x8] sm:$0xff] %vm552, %v627
      %633 = vst.msk [vmem:[%s170 + $0x18] sm:$0xff] %vm552, %v629
      %634 = vrot.lane.b32.xlu0 %v459, 108
      %v635 = vpop.permute.xlu0 %634
      %636 = vrot.lane.b32.xlu0 %v465, 108
      %v637 = vpop.permute.xlu0 %636
      %640 = vst.msk [vmem:[%s170 + $0x8] sm:$0xff] %vm561, %v635
      %641 = vst.msk [vmem:[%s170 + $0x18] sm:$0xff] %vm561, %v637
      %642 = vrot.lane.b32.xlu0 %v459, 106
      %v643 = vpop.permute.xlu0 %642
      %644 = vrot.lane.b32.xlu0 %v465, 106
      %v645 = vpop.permute.xlu0 %644
      %648 = vst.msk [vmem:[%s170 + $0x8] sm:$0xff] %vm570, %v643
      %649 = vst.msk [vmem:[%s170 + $0x18] sm:$0xff] %vm570, %v645
      %650 = vrot.lane.b32.xlu0 %v459, 104
      %v651 = vpop.permute.xlu0 %650
      %652 = vrot.lane.b32.xlu0 %v465, 104
      %v653 = vpop.permute.xlu0 %652
      %656 = vst.msk [vmem:[%s170 + $0x8] sm:$0xff] %vm579, %v651
      %657 = vst.msk [vmem:[%s170 + $0x18] sm:$0xff] %vm579, %v653
      %658 = vrot.lane.b32.xlu0 %v459, 102
      %v659 = vpop.permute.xlu0 %658
      %660 = vrot.lane.b32.xlu0 %v465, 102
      %v661 = vpop.permute.xlu0 %660
      %664 = vst.msk [vmem:[%s170 + $0x8] sm:$0xff] %vm588, %v659
      %665 = vst.msk [vmem:[%s170 + $0x18] sm:$0xff] %vm588, %v661
      %668 = vrot.lane.b32.xlu0 %v459, 100
      %v669 = vpop.permute.xlu0 %668
      %670 = vrot.lane.b32.xlu0 %v534, 100
      %v671 = vpop.permute.xlu0 %670
      %672 = vrot.lane.b32.xlu0 %v465, 100
      %v673 = vpop.permute.xlu0 %672
      %674 = vrot.lane.b32.xlu0 %v539, 100
      %v675 = vpop.permute.xlu0 %674
      %vm676 = vcmask 818176
      %v677 = vsel %vm676, %v669, %v671
      %v678 = vsel %vm676, %v673, %v675
      %681 = vst.msk [vmem:[%s170 + $0x8] sm:$0xff] %vm597, %v677
      %682 = vst.msk [vmem:[%s170 + $0x18] sm:$0xff] %vm597, %v678
      %683 = vrot.lane.b32.xlu0 %v534, 98
      %v684 = vpop.permute.xlu0 %683
      %685 = vrot.lane.b32.xlu0 %v539, 98
      %v686 = vpop.permute.xlu0 %685
      %689 = vst.msk [vmem:[%s170 + $0x8] sm:$0xff] %vm615, %v684
      %690 = vst.msk [vmem:[%s170 + $0x18] sm:$0xff] %vm615, %v686
      %p691 = scmp.lt.s32.totalorder %s14, 1
      %s692 = scalar_select %p691, %s14, 1
      %s693 = smul.addr %s692, 4
      %s694 = smul.addr %s693, 8
      %s695 = scalar_lea.vmem %s3, %s694
      // Predicated region
      $region33: #{gcea_forward.9} parent=31 // pred_check
        %p696 = pneg %p100
      $region34: #{gcea_forward.9} parent=31 // pred_check_branch
        %698 = sbr.rel (%p696) target = $region36
      $region35: #{gcea_forward.9} parent=31 // pred_region
        _
      $region36: #{gcea_forward.9} parent=31 // pred_fallthru
        _
    $region32: #{gcea_forward.9} parent=5 // pred_fallthru
      _
    %p699 = scmp.le.s32.totalorder 2, %s9
    // Predicated region
    $region37: #{gcea_forward.9} parent=5 // pred_check
      %p700 = pneg %p699
    $region38: #{gcea_forward.9} parent=5 // pred_check_branch
      %702 = sbr.rel (%p700) target = $region40
    $region39: #{gcea_forward.9} parent=5 // pred_region
      %s703 = ssub.s32 %s9, 2
      // Predicated region
      $region41: #{gcea_forward.9} parent=39 // pred_check
        %p704 = pneg %p106
      $region42: #{gcea_forward.9} parent=39 // pred_check_branch
        %706 = sbr.rel (%p704) target = $region44
      $region43: #{gcea_forward.9} parent=39 // pred_region
        %p707 = scmp.lt.s32.totalorder %s15, 1
        %s708 = scalar_select %p707, %s15, 1
        %s709 = smul.addr %s708, 4
        %s710 = smul.addr %s709, 8
        %s711 = scalar_lea.vmem %s3, %s710
      $region44: #{gcea_forward.9} parent=39 // pred_fallthru
        _
    $region40: #{gcea_forward.9} parent=5 // pred_fallthru
      _
  $region6: #{gcea_forward.9} parent=0 // loop_footer
    %s13 = sadd.s32 1, %s9
  $region7: #{gcea_forward.9} parent=0 // loop_footer_branch
    %8 = sbr.rel target = $region3
  $region8: #{gcea_forward.9} parent=0 // loop_exit
    _

</llo_original>
